<compile_context>
chip_gen: v5e
topology: v5e:2x2
jax: 0.10.0
libtpu: 0.0.40
codegen_flags: <defaults>
</compile_context>

<pallas_src>
import functools
import numpy as np
import jax
import jax.numpy as jnp
from jax import lax
from jax.experimental import pallas as pl
from jax.experimental.pallas import tpu as pltpu


# ---------------------------------------------------------------------------
# Fused conv kernel: BN-affine (+opt relu) + in-VMEM zero halo + im2col +
# single big-K matmul + bias + relu/tanh + residual + per-block channel stats.
# ---------------------------------------------------------------------------
def _make_fused_kernel(B, H, W, C, P, *, relu_in, relu_out, tanh_out,
                       residual, compute_dtype):
  M = B * H * W

  def kernel(x_ref, sc_ref, sh_ref, w_ref, b_ref, o_ref, s_ref, ss_ref):
    x = x_ref[...].astype(jnp.float32)                      # [B, H, W, C]
    sc = sc_ref[...].reshape(1, 1, 1, C)
    sh = sh_ref[...].reshape(1, 1, 1, C)
    xb = x * sc + sh                                        # BatchNorm affine
    if relu_in:
      xb = jnp.maximum(xb, 0.0)

    # Zero 1-pixel halo, built in VMEM (activations are stored un-padded in HBM).
    zc = jnp.zeros((B, H, 1, C), jnp.float32)
    zr = jnp.zeros((B, 1, W + 2, C), jnp.float32)
    xp = jnp.concatenate([zr, jnp.concatenate([zc, xb, zc], axis=2), zr],
                         axis=1)                            # [B, H+2, W+2, C]

    # im2col: nine shifted views, channel-concatenated -> one big-K MXU dot.
    taps = [xp[:, th:th + H, tw:tw + W, :] for th in range(3) for tw in range(3)]
    patches = jnp.concatenate(taps, axis=-1)                # [B, H, W, 9*C]
    patches = patches.reshape(M, 9 * C).astype(compute_dtype)

    acc = jnp.dot(patches, w_ref[...],
                  preferred_element_type=jnp.float32)       # [M, P] f32
    acc = acc + b_ref[...]
    if relu_out:
      acc = jnp.maximum(acc, 0.0)
    if residual:                       # y = BN(x) + relu(conv(BN(x)) + b)
      acc = acc + xb.reshape(M, C)
    if tanh_out:
      acc = jnp.tanh(acc)

    # Per-block channel sum / sum-of-squares -> batch stats for the next BN.
    s_ref[0] = jnp.sum(acc, axis=0, keepdims=True)
    ss_ref[0] = jnp.sum(acc * acc, axis=0, keepdims=True)

    o_ref[...] = acc.reshape(B, H, W, P).astype(o_ref.dtype)

  return kernel


def _batch_block(n, hw, target_m=256, min_steps=2):
  """Images per grid step: fill the MXU M dim (~256 rows) but prefer keeping
  >= min_steps grid steps so both v7x TensorCores get work."""
  want = max(1, target_m // max(hw, 1))
  cands = [d for d in range(1, n + 1) if n % d == 0 and d <= want]
  multi = [d for d in cands if n // d >= min_steps]
  return max(multi if multi else cands)


def fused_patch_conv(x, scale, shift, w_packed, bias, *,
                     relu_in=False, relu_out=False, tanh_out=False,
                     residual=False, compute_dtype=jnp.bfloat16):
  """x: [N, H, W, C] (real channels, no spatial padding)."""
  N, H, W, C = x.shape
  K9, P = w_packed.shape
  assert K9 == 9 * C, (K9, C)
  if residual:
    assert P == C

  B = _batch_block(N, H * W)
  G = N // B

  kernel = _make_fused_kernel(B, H, W, C, P, relu_in=relu_in, relu_out=relu_out,
                              tanh_out=tanh_out, residual=residual,
                              compute_dtype=compute_dtype)

  y, s, ss = pl.pallas_call(
      kernel,
      grid=(G,),
      in_specs=[
          pl.BlockSpec((B, H, W, C), lambda g: (g, 0, 0, 0)),   # activation
          pl.BlockSpec((1, C), lambda g: (0, 0)),               # BN scale
          pl.BlockSpec((1, C), lambda g: (0, 0)),               # BN shift
          pl.BlockSpec((K9, P), lambda g: (0, 0)),              # packed weights
          pl.BlockSpec((1, P), lambda g: (0, 0)),               # bias
      ],
      out_specs=[
          pl.BlockSpec((B, H, W, P), lambda g: (g, 0, 0, 0)),
          pl.BlockSpec((1, 1, P), lambda g: (g, 0, 0)),
          pl.BlockSpec((1, 1, P), lambda g: (g, 0, 0)),
      ],
      out_shape=[
          jax.ShapeDtypeStruct((N, H, W, P), compute_dtype),
          jax.ShapeDtypeStruct((G, 1, P), jnp.float32),
          jax.ShapeDtypeStruct((G, 1, P), jnp.float32),
      ],
      compiler_params=pltpu.CompilerParams(
          dimension_semantics=("parallel",),
          vmem_limit_bytes=40 * 1024 * 1024),
  )(x.astype(compute_dtype), scale, shift, w_packed, bias)
  return y, s, ss


# ---------------------------------------------------------------------------
# Wrapper-side packing / glue (trace-time XLA; tiny weight-sized tensors only)
# ---------------------------------------------------------------------------
def _bn_affine(gamma, beta, mean, var, eps):
  s = gamma / jnp.sqrt(var + eps)
  t = beta - mean * s
  return (s.reshape(1, -1).astype(jnp.float32),
          t.reshape(1, -1).astype(jnp.float32))


def _finalize_stats(s, ss, count, parity_groups=1):
  s = jnp.sum(s[:, 0, :], axis=0)
  ss = jnp.sum(ss[:, 0, :], axis=0)
  if parity_groups > 1:                 # deconv output columns are (a, b, co)
    c = s.shape[0] // parity_groups
    s = jnp.sum(s.reshape(parity_groups, c), axis=0)
    ss = jnp.sum(ss.reshape(parity_groups, c), axis=0)
  mean = s / count
  var = ss / count - mean * mean
  return mean, var


def _pack_conv3x3(w_hwio, bias, dtype):
  """Regular 3x3 conv (pad=1): rows ordered (kh, kw, ci), real channels."""
  kh, kw, cin, cout = w_hwio.shape
  assert kh == 3 and kw == 3
  w = w_hwio.astype(jnp.float32).reshape(9 * cin, cout)
  b = bias.astype(jnp.float32).reshape(1, cout)
  return w.astype(dtype), b


def _pack_deconv(w_t, bias, dtype):
  """ConvTranspose2d(k=4, s=2, p=1) as 4 subpixel phases of a 3x3-tap window.

  w_t: [Cin, Cout, 4, 4] (PyTorch layout).  Output columns ordered (a, b, co)
  where (a, b) is the output-pixel parity; rows ordered (th, tw, ci) matching
  the kernel's im2col taps on a 1-padded input.
  """
  cin, cout, K, _ = w_t.shape
  assert K == 4
  w9 = jnp.zeros((3, 3, cin, 2, 2, cout), jnp.float32)
  for a in range(2):            # output row parity
    for th in range(3):         # tap row offset on the 1-padded input
      if not 0 <= th - a <= 1:
        continue
      kh = 3 + a - 2 * th
      for b in range(2):        # output col parity
        for tw in range(3):     # tap col offset
          if not 0 <= tw - b <= 1:
            continue
          kw = 3 + b - 2 * tw
          w9 = w9.at[th, tw, :, a, b, :].set(w_t[:, :, kh, kw].astype(jnp.float32))
  w = w9.reshape(9 * cin, 4 * cout).astype(dtype)
  bb = jnp.tile(bias.astype(jnp.float32), 4).reshape(1, 4 * cout)
  return w, bb


def _uninterleave(y, cout):
  """[N, H, W, 4*cout] parity-packed -> [N, 2H, 2W, cout]."""
  n, h, w, p = y.shape
  assert p == 4 * cout
  z = y.reshape(n, h, w, 2, 2, cout)
  z = jnp.transpose(z, (0, 1, 3, 2, 4, 5))
  return z.reshape(n, 2 * h, 2 * w, cout)


# ---------------------------------------------------------------------------
# Decoder forward (Pallas path)
# ---------------------------------------------------------------------------
def decoder_forward(x_nchw, params, compute_dtype=jnp.bfloat16, eps=1e-5):
  x = jnp.transpose(x_nchw, (0, 2, 3, 1)).astype(jnp.float32)   # NHWC
  N, H, W, c_embed = x.shape
  hidden = params["dc1_w"].shape[1]
  c_out = params["dc2_w"].shape[1]

  # Batch statistics of the decoder input (first BatchNorm2d application).
  mean = jnp.mean(x, axis=(0, 1, 2))
  var = jnp.mean(x * x, axis=(0, 1, 2)) - mean * mean

  xk = x.astype(compute_dtype)                       # [N, H, W, c_embed]
  count = N * H * W

  # --- residual blocks:  x <- BN1(x);  x <- x + relu(conv3x3(x) + b) --------
  for (w_hwio, b) in params["res"]:
    sc, sh = _bn_affine(params["bn1_g"], params["bn1_b"], mean, var, eps)
    wp, bp = _pack_conv3x3(w_hwio, b, compute_dtype)
    xk, s, ss = fused_patch_conv(xk, sc, sh, wp, bp,
                                 relu_out=True, residual=True,
                                 compute_dtype=compute_dtype)
    mean, var = _finalize_stats(s, ss, count)

  # --- deconv1 (ConvTranspose2d k4 s2 p1), identity affine on its input -----
  sc1 = jnp.ones((1, c_embed), jnp.float32)
  sh1 = jnp.zeros((1, c_embed), jnp.float32)
  wd1, bd1 = _pack_deconv(params["dc1_w"], params["dc1_b"], compute_dtype)
  y1, s1, ss1 = fused_patch_conv(xk, sc1, sh1, wd1, bd1,
                                 compute_dtype=compute_dtype)
  mean2, var2 = _finalize_stats(s1, ss1, count * 4, parity_groups=4)
  x1 = _uninterleave(y1, hidden)                     # [N, 2H, 2W, hidden]

  # --- deconv2 with fused BN2 + relu on its input, tanh on the output -------
  sc2, sh2 = _bn_affine(params["bn2_g"], params["bn2_b"], mean2, var2, eps)
  wd2, bd2 = _pack_deconv(params["dc2_w"], params["dc2_b"], compute_dtype)
  y2, _, _ = fused_patch_conv(x1, sc2, sh2, wd2, bd2,
                              relu_in=True, tanh_out=True,
                              compute_dtype=compute_dtype)
  out = _uninterleave(y2, c_out)                     # [N, 4H, 4W, c_out]
  return jnp.transpose(out.astype(jnp.float32), (0, 3, 1, 2))


# ---------------------------------------------------------------------------
# Pure-JAX reference (XLA convs) for verification
# ---------------------------------------------------------------------------
def decoder_reference(x_nchw, params, eps=1e-5):
  x = jnp.transpose(x_nchw, (0, 2, 3, 1)).astype(jnp.float32)
  dn = ("NHWC", "HWIO", "NHWC")

  def bn(x, g, b):
    m = jnp.mean(x, axis=(0, 1, 2))
    v = jnp.mean((x - m) ** 2, axis=(0, 1, 2))
    return (x - m) / jnp.sqrt(v + eps) * g + b

  def deconv(x, w_t, b):
    K = w_t.shape[2]
    w_conv = jnp.flip(w_t, axis=(2, 3)).transpose(2, 3, 0, 1)   # HWIO
    y = lax.conv_general_dilated(x, w_conv, (1, 1),
                                 ((K - 2, K - 2), (K - 2, K - 2)),
                                 lhs_dilation=(2, 2), dimension_numbers=dn)
    return y + b

  for (w, b) in params["res"]:
    xb = bn(x, params["bn1_g"], params["bn1_b"])
    y = lax.conv_general_dilated(xb, w, (1, 1), ((1, 1), (1, 1)),
                                 dimension_numbers=dn) + b
    x = xb + jax.nn.relu(y)
  x = deconv(x, params["dc1_w"], params["dc1_b"])
  x = jax.nn.relu(bn(x, params["bn2_g"], params["bn2_b"]))
  x = jnp.tanh(deconv(x, params["dc2_w"], params["dc2_b"]))
  return jnp.transpose(x, (0, 3, 1, 2))


# ---------------------------------------------------------------------------
def init_params(key, embedding_dim, hidden_dim, output_dim, num_resblocks):
  keys = jax.random.split(key, 2 * num_resblocks + 8)
  params = {}
  res = []
  for i in range(num_resblocks):
    w = jax.random.normal(keys[2 * i], (3, 3, embedding_dim, embedding_dim),
                          jnp.float32) * 0.1
    b = jax.random.normal(keys[2 * i + 1], (embedding_dim,), jnp.float32) * 0.05
    res.append((w, b))
  params["res"] = res
  params["bn1_g"] = 1.0 + 0.1 * jax.random.normal(keys[-8], (embedding_dim,), jnp.float32)
  params["bn1_b"] = 0.1 * jax.random.normal(keys[-7], (embedding_dim,), jnp.float32)
  # PyTorch ConvTranspose2d weight layout: [Cin, Cout, K, K]
  params["dc1_w"] = jax.random.normal(keys[-6], (embedding_dim, hidden_dim, 4, 4),
                                      jnp.float32) * 0.1
  params["dc1_b"] = jax.random.normal(keys[-5], (hidden_dim,), jnp.float32) * 0.05
  params["bn2_g"] = 1.0 + 0.1 * jax.random.normal(keys[-4], (hidden_dim,), jnp.float32)
  params["bn2_b"] = 0.1 * jax.random.normal(keys[-3], (hidden_dim,), jnp.float32)
  params["dc2_w"] = jax.random.normal(keys[-2], (hidden_dim, output_dim, 4, 4),
                                      jnp.float32) * 0.1
  params["dc2_b"] = jax.random.normal(keys[-1], (output_dim,), jnp.float32) * 0.05
  return params


if __name__ == "__main__":
  batch, embedding_dim, hidden_dim, output_dim, num_resblocks = 2, 8, 16, 4, 2
  H = W = 8

  key = jax.random.PRNGKey(0)
  k_x, k_p = jax.random.split(key)
  x = jax.random.normal(k_x, (batch, embedding_dim, H, W), jnp.float32)  # NCHW
  params = init_params(k_p, embedding_dim, hidden_dim, output_dim, num_resblocks)

  # Default path: bf16 MXU feed + bf16 inter-layer activations, f32 accumulation.
  fwd = jax.jit(decoder_forward)
  out = jax.block_until_ready(fwd(x, params))
  assert out.shape == (batch, output_dim, 4 * H, 4 * W), out.shape

  ref = jax.block_until_ready(jax.jit(decoder_reference)(x, params))
  np.testing.assert_allclose(np.asarray(out), np.asarray(ref),
                             rtol=1e-1, atol=1e-1)

  # f32 compute path for a tighter numerical check.
  fwd_f32 = jax.jit(functools.partial(decoder_forward, compute_dtype=jnp.float32))
  out_f32 = jax.block_until_ready(fwd_f32(x, params))
  np.testing.assert_allclose(np.asarray(out_f32), np.asarray(ref),
                             rtol=2e-2, atol=2e-2)

  print("KERNEL_OK")
</pallas_src>

<mosaic_0001>
module attributes {stable_mosaic.version = 11 : i64} {
  func.func @kernel(%arg0: i32, %arg1: memref<1x8x8x8xbf16, #tpu.memory_space<vmem>>, %arg2: memref<1x8xf32, #tpu.memory_space<vmem>>, %arg3: memref<1x8xf32, #tpu.memory_space<vmem>>, %arg4: memref<72x8xbf16, #tpu.memory_space<vmem>>, %arg5: memref<1x8xf32, #tpu.memory_space<vmem>>, %arg6: memref<1x8x8x8xbf16, #tpu.memory_space<vmem>>, %arg7: memref<1x1x8xf32, #tpu.memory_space<vmem>>, %arg8: memref<1x1x8xf32, #tpu.memory_space<vmem>>) attributes {dimension_semantics = [#tpu.dimension_semantics<parallel>], iteration_bounds = array<i64: 2>, scalar_prefetch = 0 : i64, scratch_operands = 0 : i64, tpu.core_type = #tpu.core_type<tc>, window_params = [{transform_indices = @transform_0, window_bounds = array<i64: 1, 8, 8, 8>}, {pipeline_mode = #tpu.pipeline_mode<synchronous>, transform_indices = @transform_1, window_bounds = array<i64: 1, 8>}, {pipeline_mode = #tpu.pipeline_mode<synchronous>, transform_indices = @transform_2, window_bounds = array<i64: 1, 8>}, {pipeline_mode = #tpu.pipeline_mode<synchronous>, transform_indices = @transform_3, window_bounds = array<i64: 72, 8>}, {pipeline_mode = #tpu.pipeline_mode<synchronous>, transform_indices = @transform_4, window_bounds = array<i64: 1, 8>}, {transform_indices = @transform_5, window_bounds = array<i64: 1, 8, 8, 8>}, {transform_indices = @transform_6, window_bounds = array<i64: 1, 1, 8>}, {transform_indices = @transform_7, window_bounds = array<i64: 1, 1, 8>}]} {
    %c0 = arith.constant 0 : index
    %c0_0 = arith.constant 0 : index
    %c0_1 = arith.constant 0 : index
    %c0_2 = arith.constant 0 : index
    %0 = vector.load %arg1[%c0, %c0_0, %c0_1, %c0_2] : memref<1x8x8x8xbf16, #tpu.memory_space<vmem>>, vector<1x8x8x8xbf16>
    %1 = arith.extf %0 : vector<1x8x8x8xbf16> to vector<1x8x8x8xf32>
    %c0_3 = arith.constant 0 : index
    %c0_4 = arith.constant 0 : index
    %2 = vector.load %arg2[%c0_3, %c0_4] : memref<1x8xf32, #tpu.memory_space<vmem>>, vector<1x8xf32>
    %3 = vector.shape_cast %2 : vector<1x8xf32> to vector<1x1x1x8xf32>
    %c0_5 = arith.constant 0 : index
    %c0_6 = arith.constant 0 : index
    %4 = vector.load %arg3[%c0_5, %c0_6] : memref<1x8xf32, #tpu.memory_space<vmem>>, vector<1x8xf32>
    %5 = vector.shape_cast %4 : vector<1x8xf32> to vector<1x1x1x8xf32>
    %6 = vector.broadcast %3 : vector<1x1x1x8xf32> to vector<1x8x8x8xf32>
    %7 = arith.mulf %1, %6 : vector<1x8x8x8xf32>
    %8 = vector.broadcast %5 : vector<1x1x1x8xf32> to vector<1x8x8x8xf32>
    %9 = arith.addf %7, %8 : vector<1x8x8x8xf32>
    %cst = arith.constant 0.000000e+00 : f32
    %10 = vector.broadcast %cst : f32 to vector<1x8x1x8xf32>
    %cst_7 = arith.constant 0.000000e+00 : f32
    %11 = vector.broadcast %cst_7 : f32 to vector<1x1x10x8xf32>
    %12 = tpu.concatenate %10, %9, %10 in 2 : vector<1x8x1x8xf32>, vector<1x8x8x8xf32>, vector<1x8x1x8xf32> -> vector<1x8x10x8xf32>
    %13 = tpu.concatenate %11, %12, %11 in 1 : vector<1x1x10x8xf32>, vector<1x8x10x8xf32>, vector<1x1x10x8xf32> -> vector<1x10x10x8xf32>
    %14 = vector.extract_strided_slice %13 {offsets = [0, 0, 0, 0], sizes = [1, 8, 8, 8], strides = [1, 1, 1, 1]} : vector<1x10x10x8xf32> to vector<1x8x8x8xf32>
    %15 = vector.extract_strided_slice %13 {offsets = [0, 0, 1, 0], sizes = [1, 8, 8, 8], strides = [1, 1, 1, 1]} : vector<1x10x10x8xf32> to vector<1x8x8x8xf32>
    %16 = vector.extract_strided_slice %13 {offsets = [0, 0, 2, 0], sizes = [1, 8, 8, 8], strides = [1, 1, 1, 1]} : vector<1x10x10x8xf32> to vector<1x8x8x8xf32>
    %17 = vector.extract_strided_slice %13 {offsets = [0, 1, 0, 0], sizes = [1, 8, 8, 8], strides = [1, 1, 1, 1]} : vector<1x10x10x8xf32> to vector<1x8x8x8xf32>
    %18 = vector.extract_strided_slice %13 {offsets = [0, 1, 1, 0], sizes = [1, 8, 8, 8], strides = [1, 1, 1, 1]} : vector<1x10x10x8xf32> to vector<1x8x8x8xf32>
    %19 = vector.extract_strided_slice %13 {offsets = [0, 1, 2, 0], sizes = [1, 8, 8, 8], strides = [1, 1, 1, 1]} : vector<1x10x10x8xf32> to vector<1x8x8x8xf32>
    %20 = vector.extract_strided_slice %13 {offsets = [0, 2, 0, 0], sizes = [1, 8, 8, 8], strides = [1, 1, 1, 1]} : vector<1x10x10x8xf32> to vector<1x8x8x8xf32>
    %21 = vector.extract_strided_slice %13 {offsets = [0, 2, 1, 0], sizes = [1, 8, 8, 8], strides = [1, 1, 1, 1]} : vector<1x10x10x8xf32> to vector<1x8x8x8xf32>
    %22 = vector.extract_strided_slice %13 {offsets = [0, 2, 2, 0], sizes = [1, 8, 8, 8], strides = [1, 1, 1, 1]} : vector<1x10x10x8xf32> to vector<1x8x8x8xf32>
    %23 = tpu.concatenate %14, %15, %16, %17, %18, %19, %20, %21, %22 in 3 : vector<1x8x8x8xf32>, vector<1x8x8x8xf32>, vector<1x8x8x8xf32>, vector<1x8x8x8xf32>, vector<1x8x8x8xf32>, vector<1x8x8x8xf32>, vector<1x8x8x8xf32>, vector<1x8x8x8xf32>, vector<1x8x8x8xf32> -> vector<1x8x8x72xf32>
    %24 = vector.shape_cast %23 : vector<1x8x8x72xf32> to vector<64x72xf32>
    %25 = arith.truncf %24 : vector<64x72xf32> to vector<64x72xbf16>
    %c0_8 = arith.constant 0 : index
    %c0_9 = arith.constant 0 : index
    %26 = vector.load %arg4[%c0_8, %c0_9] : memref<72x8xbf16, #tpu.memory_space<vmem>>, vector<72x8xbf16>
    %cst_10 = arith.constant dense<0.000000e+00> : vector<64x8xf32>
    %27 = tpu.matmul %25, %26, %cst_10 {dimension_numbers = #tpu.dot_dimension_numbers<[1], [0], [0], [1], [0, 0, 1, 1], [], []>} : vector<64x72xbf16>, vector<72x8xbf16>, vector<64x8xf32> -> vector<64x8xf32>
    %c0_11 = arith.constant 0 : index
    %c0_12 = arith.constant 0 : index
    %28 = vector.load %arg5[%c0_11, %c0_12] : memref<1x8xf32, #tpu.memory_space<vmem>>, vector<1x8xf32>
    %29 = vector.broadcast %28 : vector<1x8xf32> to vector<64x8xf32>
    %30 = arith.addf %27, %29 : vector<64x8xf32>
    %cst_13 = arith.constant 0.000000e+00 : f32
    %31 = vector.broadcast %cst_13 : f32 to vector<64x8xf32>
    %32 = arith.maximumf %30, %31 : vector<64x8xf32>
    %33 = vector.shape_cast %9 : vector<1x8x8x8xf32> to vector<64x8xf32>
    %34 = arith.addf %32, %33 : vector<64x8xf32>
    %cst_14 = arith.constant dense<0.000000e+00> : vector<8xf32>
    %35 = vector.multi_reduction <add>, %34, %cst_14 [0] : vector<64x8xf32> to vector<8xf32>
    %36 = vector.shape_cast %35 : vector<8xf32> to vector<1x8xf32>
    %c0_15 = arith.constant 0 : index
    %c0_16 = arith.constant 0 : index
    %c0_17 = arith.constant 0 : index
    %37 = vector.load %arg7[%c0_15, %c0_16, %c0_17] : memref<1x1x8xf32, #tpu.memory_space<vmem>>, vector<1x1x8xf32>
    %38 = vector.shape_cast %37 : vector<1x1x8xf32> to vector<1x8xf32>
    %39 = vector.shape_cast %36 : vector<1x8xf32> to vector<1x1x8xf32>
    tpu.vector_store %arg7[%c0_15, %c0_16, %c0_17], %39 {strides = array<i32>} : memref<1x1x8xf32, #tpu.memory_space<vmem>>, vector<1x1x8xf32>,
    %40 = arith.mulf %34, %34 : vector<64x8xf32>
    %cst_18 = arith.constant dense<0.000000e+00> : vector<8xf32>
    %41 = vector.multi_reduction <add>, %40, %cst_18 [0] : vector<64x8xf32> to vector<8xf32>
    %42 = vector.shape_cast %41 : vector<8xf32> to vector<1x8xf32>
    %c0_19 = arith.constant 0 : index
    %c0_20 = arith.constant 0 : index
    %c0_21 = arith.constant 0 : index
    %43 = vector.load %arg8[%c0_19, %c0_20, %c0_21] : memref<1x1x8xf32, #tpu.memory_space<vmem>>, vector<1x1x8xf32>
    %44 = vector.shape_cast %43 : vector<1x1x8xf32> to vector<1x8xf32>
    %45 = vector.shape_cast %42 : vector<1x8xf32> to vector<1x1x8xf32>
    tpu.vector_store %arg8[%c0_19, %c0_20, %c0_21], %45 {strides = array<i32>} : memref<1x1x8xf32, #tpu.memory_space<vmem>>, vector<1x1x8xf32>,
    %46 = vector.shape_cast %34 : vector<64x8xf32> to vector<1x8x8x8xf32>
    %47 = arith.truncf %46 : vector<1x8x8x8xf32> to vector<1x8x8x8xbf16>
    %c0_22 = arith.constant 0 : index
    %c0_23 = arith.constant 0 : index
    %c0_24 = arith.constant 0 : index
    %c0_25 = arith.constant 0 : index
    %48 = vector.load %arg6[%c0_22, %c0_23, %c0_24, %c0_25] : memref<1x8x8x8xbf16, #tpu.memory_space<vmem>>, vector<1x8x8x8xbf16>
    tpu.vector_store %arg6[%c0_22, %c0_23, %c0_24, %c0_25], %47 {strides = array<i32>} : memref<1x8x8x8xbf16, #tpu.memory_space<vmem>>, vector<1x8x8x8xbf16>,
    return
  }
  func.func @transform_0(%arg0: i32) -> (i32, i32, i32, i32) {
    %c0_i32 = arith.constant 0 : i32
    %c0_i32_0 = arith.constant 0 : i32
    %c0_i32_1 = arith.constant 0 : i32
    %c0_i32_2 = arith.constant 0 : i32
    return %arg0, %c0_i32, %c0_i32_0, %c0_i32_1 : i32, i32, i32, i32
  }
  func.func @transform_1(%arg0: i32) -> (i32, i32) {
    %c0_i32 = arith.constant 0 : i32
    %c0_i32_0 = arith.constant 0 : i32
    %c0_i32_1 = arith.constant 0 : i32
    return %c0_i32, %c0_i32_0 : i32, i32
  }
  func.func @transform_2(%arg0: i32) -> (i32, i32) {
    %c0_i32 = arith.constant 0 : i32
    %c0_i32_0 = arith.constant 0 : i32
    %c0_i32_1 = arith.constant 0 : i32
    return %c0_i32, %c0_i32_0 : i32, i32
  }
  func.func @transform_3(%arg0: i32) -> (i32, i32) {
    %c0_i32 = arith.constant 0 : i32
    %c0_i32_0 = arith.constant 0 : i32
    %c0_i32_1 = arith.constant 0 : i32
    return %c0_i32, %c0_i32_0 : i32, i32
  }
  func.func @transform_4(%arg0: i32) -> (i32, i32) {
    %c0_i32 = arith.constant 0 : i32
    %c0_i32_0 = arith.constant 0 : i32
    %c0_i32_1 = arith.constant 0 : i32
    return %c0_i32, %c0_i32_0 : i32, i32
  }
  func.func @transform_5(%arg0: i32) -> (i32, i32, i32, i32) {
    %c0_i32 = arith.constant 0 : i32
    %c0_i32_0 = arith.constant 0 : i32
    %c0_i32_1 = arith.constant 0 : i32
    %c0_i32_2 = arith.constant 0 : i32
    return %arg0, %c0_i32, %c0_i32_0, %c0_i32_1 : i32, i32, i32, i32
  }
  func.func @transform_6(%arg0: i32) -> (i32, i32, i32) {
    %c0_i32 = arith.constant 0 : i32
    %c0_i32_0 = arith.constant 0 : i32
    %c0_i32_1 = arith.constant 0 : i32
    return %arg0, %c0_i32, %c0_i32_0 : i32, i32, i32
  }
  func.func @transform_7(%arg0: i32) -> (i32, i32, i32) {
    %c0_i32 = arith.constant 0 : i32
    %c0_i32_0 = arith.constant 0 : i32
    %c0_i32_1 = arith.constant 0 : i32
    return %arg0, %c0_i32, %c0_i32_0 : i32, i32, i32
  }
}

module attributes {stable_mosaic.version = 11 : i64} {
  func.func @kernel(%arg0: i32, %arg1: memref<1x8x8x8xbf16, #tpu.memory_space<vmem>>, %arg2: memref<1x8xf32, #tpu.memory_space<vmem>>, %arg3: memref<1x8xf32, #tpu.memory_space<vmem>>, %arg4: memref<72x8xbf16, #tpu.memory_space<vmem>>, %arg5: memref<1x8xf32, #tpu.memory_space<vmem>>, %arg6: memref<1x8x8x8xbf16, #tpu.memory_space<vmem>>, %arg7: memref<1x1x8xf32, #tpu.memory_space<vmem>>, %arg8: memref<1x1x8xf32, #tpu.memory_space<vmem>>) attributes {dimension_semantics = [#tpu.dimension_semantics<parallel>], iteration_bounds = array<i64: 2>, scalar_prefetch = 0 : i64, scratch_operands = 0 : i64, tpu.core_type = #tpu.core_type<tc>, window_params = [{transform_indices = @transform_0, window_bounds = array<i64: 1, 8, 8, 8>}, {pipeline_mode = #tpu.pipeline_mode<synchronous>, transform_indices = @transform_1, window_bounds = array<i64: 1, 8>}, {pipeline_mode = #tpu.pipeline_mode<synchronous>, transform_indices = @transform_2, window_bounds = array<i64: 1, 8>}, {pipeline_mode = #tpu.pipeline_mode<synchronous>, transform_indices = @transform_3, window_bounds = array<i64: 72, 8>}, {pipeline_mode = #tpu.pipeline_mode<synchronous>, transform_indices = @transform_4, window_bounds = array<i64: 1, 8>}, {transform_indices = @transform_5, window_bounds = array<i64: 1, 8, 8, 8>}, {transform_indices = @transform_6, window_bounds = array<i64: 1, 1, 8>}, {transform_indices = @transform_7, window_bounds = array<i64: 1, 1, 8>}]} {
    %c0 = arith.constant 0 : index
    %c0_0 = arith.constant 0 : index
    %c0_1 = arith.constant 0 : index
    %c0_2 = arith.constant 0 : index
    %0 = vector.load %arg1[%c0, %c0_0, %c0_1, %c0_2] : memref<1x8x8x8xbf16, #tpu.memory_space<vmem>>, vector<1x8x8x8xbf16>
    %1 = arith.extf %0 : vector<1x8x8x8xbf16> to vector<1x8x8x8xf32>
    %c0_3 = arith.constant 0 : index
    %c0_4 = arith.constant 0 : index
    %2 = vector.load %arg2[%c0_3, %c0_4] : memref<1x8xf32, #tpu.memory_space<vmem>>, vector<1x8xf32>
    %3 = vector.shape_cast %2 : vector<1x8xf32> to vector<1x1x1x8xf32>
    %c0_5 = arith.constant 0 : index
    %c0_6 = arith.constant 0 : index
    %4 = vector.load %arg3[%c0_5, %c0_6] : memref<1x8xf32, #tpu.memory_space<vmem>>, vector<1x8xf32>
    %5 = vector.shape_cast %4 : vector<1x8xf32> to vector<1x1x1x8xf32>
    %6 = vector.broadcast %3 : vector<1x1x1x8xf32> to vector<1x8x8x8xf32>
    %7 = arith.mulf %1, %6 : vector<1x8x8x8xf32>
    %8 = vector.broadcast %5 : vector<1x1x1x8xf32> to vector<1x8x8x8xf32>
    %9 = arith.addf %7, %8 : vector<1x8x8x8xf32>
    %cst = arith.constant 0.000000e+00 : f32
    %10 = vector.broadcast %cst : f32 to vector<1x8x1x8xf32>
    %cst_7 = arith.constant 0.000000e+00 : f32
    %11 = vector.broadcast %cst_7 : f32 to vector<1x1x10x8xf32>
    %12 = tpu.concatenate %10, %9, %10 in 2 : vector<1x8x1x8xf32>, vector<1x8x8x8xf32>, vector<1x8x1x8xf32> -> vector<1x8x10x8xf32>
    %13 = tpu.concatenate %11, %12, %11 in 1 : vector<1x1x10x8xf32>, vector<1x8x10x8xf32>, vector<1x1x10x8xf32> -> vector<1x10x10x8xf32>
    %14 = vector.extract_strided_slice %13 {offsets = [0, 0, 0, 0], sizes = [1, 8, 8, 8], strides = [1, 1, 1, 1]} : vector<1x10x10x8xf32> to vector<1x8x8x8xf32>
    %15 = vector.extract_strided_slice %13 {offsets = [0, 0, 1, 0], sizes = [1, 8, 8, 8], strides = [1, 1, 1, 1]} : vector<1x10x10x8xf32> to vector<1x8x8x8xf32>
    %16 = vector.extract_strided_slice %13 {offsets = [0, 0, 2, 0], sizes = [1, 8, 8, 8], strides = [1, 1, 1, 1]} : vector<1x10x10x8xf32> to vector<1x8x8x8xf32>
    %17 = vector.extract_strided_slice %13 {offsets = [0, 1, 0, 0], sizes = [1, 8, 8, 8], strides = [1, 1, 1, 1]} : vector<1x10x10x8xf32> to vector<1x8x8x8xf32>
    %18 = vector.extract_strided_slice %13 {offsets = [0, 1, 1, 0], sizes = [1, 8, 8, 8], strides = [1, 1, 1, 1]} : vector<1x10x10x8xf32> to vector<1x8x8x8xf32>
    %19 = vector.extract_strided_slice %13 {offsets = [0, 1, 2, 0], sizes = [1, 8, 8, 8], strides = [1, 1, 1, 1]} : vector<1x10x10x8xf32> to vector<1x8x8x8xf32>
    %20 = vector.extract_strided_slice %13 {offsets = [0, 2, 0, 0], sizes = [1, 8, 8, 8], strides = [1, 1, 1, 1]} : vector<1x10x10x8xf32> to vector<1x8x8x8xf32>
    %21 = vector.extract_strided_slice %13 {offsets = [0, 2, 1, 0], sizes = [1, 8, 8, 8], strides = [1, 1, 1, 1]} : vector<1x10x10x8xf32> to vector<1x8x8x8xf32>
    %22 = vector.extract_strided_slice %13 {offsets = [0, 2, 2, 0], sizes = [1, 8, 8, 8], strides = [1, 1, 1, 1]} : vector<1x10x10x8xf32> to vector<1x8x8x8xf32>
    %23 = tpu.concatenate %14, %15, %16, %17, %18, %19, %20, %21, %22 in 3 : vector<1x8x8x8xf32>, vector<1x8x8x8xf32>, vector<1x8x8x8xf32>, vector<1x8x8x8xf32>, vector<1x8x8x8xf32>, vector<1x8x8x8xf32>, vector<1x8x8x8xf32>, vector<1x8x8x8xf32>, vector<1x8x8x8xf32> -> vector<1x8x8x72xf32>
    %24 = vector.shape_cast %23 : vector<1x8x8x72xf32> to vector<64x72xf32>
    %25 = arith.truncf %24 : vector<64x72xf32> to vector<64x72xbf16>
    %c0_8 = arith.constant 0 : index
    %c0_9 = arith.constant 0 : index
    %26 = vector.load %arg4[%c0_8, %c0_9] : memref<72x8xbf16, #tpu.memory_space<vmem>>, vector<72x8xbf16>
    %cst_10 = arith.constant dense<0.000000e+00> : vector<64x8xf32>
    %27 = tpu.matmul %25, %26, %cst_10 {dimension_numbers = #tpu.dot_dimension_numbers<[1], [0], [0], [1], [0, 0, 1, 1], [], []>} : vector<64x72xbf16>, vector<72x8xbf16>, vector<64x8xf32> -> vector<64x8xf32>
    %c0_11 = arith.constant 0 : index
    %c0_12 = arith.constant 0 : index
    %28 = vector.load %arg5[%c0_11, %c0_12] : memref<1x8xf32, #tpu.memory_space<vmem>>, vector<1x8xf32>
    %29 = vector.broadcast %28 : vector<1x8xf32> to vector<64x8xf32>
    %30 = arith.addf %27, %29 : vector<64x8xf32>
    %cst_13 = arith.constant 0.000000e+00 : f32
    %31 = vector.broadcast %cst_13 : f32 to vector<64x8xf32>
    %32 = arith.maximumf %30, %31 : vector<64x8xf32>
    %33 = vector.shape_cast %9 : vector<1x8x8x8xf32> to vector<64x8xf32>
    %34 = arith.addf %32, %33 : vector<64x8xf32>
    %cst_14 = arith.constant dense<0.000000e+00> : vector<8xf32>
    %35 = vector.multi_reduction <add>, %34, %cst_14 [0] : vector<64x8xf32> to vector<8xf32>
    %36 = vector.shape_cast %35 : vector<8xf32> to vector<1x8xf32>
    %c0_15 = arith.constant 0 : index
    %c0_16 = arith.constant 0 : index
    %c0_17 = arith.constant 0 : index
    %37 = vector.load %arg7[%c0_15, %c0_16, %c0_17] : memref<1x1x8xf32, #tpu.memory_space<vmem>>, vector<1x1x8xf32>
    %38 = vector.shape_cast %37 : vector<1x1x8xf32> to vector<1x8xf32>
    %39 = vector.shape_cast %36 : vector<1x8xf32> to vector<1x1x8xf32>
    tpu.vector_store %arg7[%c0_15, %c0_16, %c0_17], %39 {strides = array<i32>} : memref<1x1x8xf32, #tpu.memory_space<vmem>>, vector<1x1x8xf32>,
    %40 = arith.mulf %34, %34 : vector<64x8xf32>
    %cst_18 = arith.constant dense<0.000000e+00> : vector<8xf32>
    %41 = vector.multi_reduction <add>, %40, %cst_18 [0] : vector<64x8xf32> to vector<8xf32>
    %42 = vector.shape_cast %41 : vector<8xf32> to vector<1x8xf32>
    %c0_19 = arith.constant 0 : index
    %c0_20 = arith.constant 0 : index
    %c0_21 = arith.constant 0 : index
    %43 = vector.load %arg8[%c0_19, %c0_20, %c0_21] : memref<1x1x8xf32, #tpu.memory_space<vmem>>, vector<1x1x8xf32>
    %44 = vector.shape_cast %43 : vector<1x1x8xf32> to vector<1x8xf32>
    %45 = vector.shape_cast %42 : vector<1x8xf32> to vector<1x1x8xf32>
    tpu.vector_store %arg8[%c0_19, %c0_20, %c0_21], %45 {strides = array<i32>} : memref<1x1x8xf32, #tpu.memory_space<vmem>>, vector<1x1x8xf32>,
    %46 = vector.shape_cast %34 : vector<64x8xf32> to vector<1x8x8x8xf32>
    %47 = arith.truncf %46 : vector<1x8x8x8xf32> to vector<1x8x8x8xbf16>
    %c0_22 = arith.constant 0 : index
    %c0_23 = arith.constant 0 : index
    %c0_24 = arith.constant 0 : index
    %c0_25 = arith.constant 0 : index
    %48 = vector.load %arg6[%c0_22, %c0_23, %c0_24, %c0_25] : memref<1x8x8x8xbf16, #tpu.memory_space<vmem>>, vector<1x8x8x8xbf16>
    tpu.vector_store %arg6[%c0_22, %c0_23, %c0_24, %c0_25], %47 {strides = array<i32>} : memref<1x8x8x8xbf16, #tpu.memory_space<vmem>>, vector<1x8x8x8xbf16>,
    return
  }
  func.func @transform_0(%arg0: i32) -> (i32, i32, i32, i32) {
    %c0_i32 = arith.constant 0 : i32
    %c0_i32_0 = arith.constant 0 : i32
    %c0_i32_1 = arith.constant 0 : i32
    %c0_i32_2 = arith.constant 0 : i32
    return %arg0, %c0_i32, %c0_i32_0, %c0_i32_1 : i32, i32, i32, i32
  }
  func.func @transform_1(%arg0: i32) -> (i32, i32) {
    %c0_i32 = arith.constant 0 : i32
    %c0_i32_0 = arith.constant 0 : i32
    %c0_i32_1 = arith.constant 0 : i32
    return %c0_i32, %c0_i32_0 : i32, i32
  }
  func.func @transform_2(%arg0: i32) -> (i32, i32) {
    %c0_i32 = arith.constant 0 : i32
    %c0_i32_0 = arith.constant 0 : i32
    %c0_i32_1 = arith.constant 0 : i32
    return %c0_i32, %c0_i32_0 : i32, i32
  }
  func.func @transform_3(%arg0: i32) -> (i32, i32) {
    %c0_i32 = arith.constant 0 : i32
    %c0_i32_0 = arith.constant 0 : i32
    %c0_i32_1 = arith.constant 0 : i32
    return %c0_i32, %c0_i32_0 : i32, i32
  }
  func.func @transform_4(%arg0: i32) -> (i32, i32) {
    %c0_i32 = arith.constant 0 : i32
    %c0_i32_0 = arith.constant 0 : i32
    %c0_i32_1 = arith.constant 0 : i32
    return %c0_i32, %c0_i32_0 : i32, i32
  }
  func.func @transform_5(%arg0: i32) -> (i32, i32, i32, i32) {
    %c0_i32 = arith.constant 0 : i32
    %c0_i32_0 = arith.constant 0 : i32
    %c0_i32_1 = arith.constant 0 : i32
    %c0_i32_2 = arith.constant 0 : i32
    return %arg0, %c0_i32, %c0_i32_0, %c0_i32_1 : i32, i32, i32, i32
  }
  func.func @transform_6(%arg0: i32) -> (i32, i32, i32) {
    %c0_i32 = arith.constant 0 : i32
    %c0_i32_0 = arith.constant 0 : i32
    %c0_i32_1 = arith.constant 0 : i32
    return %arg0, %c0_i32, %c0_i32_0 : i32, i32, i32
  }
  func.func @transform_7(%arg0: i32) -> (i32, i32, i32) {
    %c0_i32 = arith.constant 0 : i32
    %c0_i32_0 = arith.constant 0 : i32
    %c0_i32_1 = arith.constant 0 : i32
    return %arg0, %c0_i32, %c0_i32_0 : i32, i32, i32
  }
}

module attributes {stable_mosaic.version = 11 : i64} {
  func.func @kernel(%arg0: i32, %arg1: memref<1x8x8x8xbf16, #tpu.memory_space<vmem>>, %arg2: memref<1x8xf32, #tpu.memory_space<vmem>>, %arg3: memref<1x8xf32, #tpu.memory_space<vmem>>, %arg4: memref<72x64xbf16, #tpu.memory_space<vmem>>, %arg5: memref<1x64xf32, #tpu.memory_space<vmem>>, %arg6: memref<1x8x8x64xbf16, #tpu.memory_space<vmem>>, %arg7: memref<1x1x64xf32, #tpu.memory_space<vmem>>, %arg8: memref<1x1x64xf32, #tpu.memory_space<vmem>>) attributes {dimension_semantics = [#tpu.dimension_semantics<parallel>], iteration_bounds = array<i64: 2>, scalar_prefetch = 0 : i64, scratch_operands = 0 : i64, tpu.core_type = #tpu.core_type<tc>, window_params = [{transform_indices = @transform_0, window_bounds = array<i64: 1, 8, 8, 8>}, {pipeline_mode = #tpu.pipeline_mode<synchronous>, transform_indices = @transform_1, window_bounds = array<i64: 1, 8>}, {pipeline_mode = #tpu.pipeline_mode<synchronous>, transform_indices = @transform_2, window_bounds = array<i64: 1, 8>}, {pipeline_mode = #tpu.pipeline_mode<synchronous>, transform_indices = @transform_3, window_bounds = array<i64: 72, 64>}, {pipeline_mode = #tpu.pipeline_mode<synchronous>, transform_indices = @transform_4, window_bounds = array<i64: 1, 64>}, {transform_indices = @transform_5, window_bounds = array<i64: 1, 8, 8, 64>}, {transform_indices = @transform_6, window_bounds = array<i64: 1, 1, 64>}, {transform_indices = @transform_7, window_bounds = array<i64: 1, 1, 64>}]} {
    %c0 = arith.constant 0 : index
    %c0_0 = arith.constant 0 : index
    %c0_1 = arith.constant 0 : index
    %c0_2 = arith.constant 0 : index
    %0 = vector.load %arg1[%c0, %c0_0, %c0_1, %c0_2] : memref<1x8x8x8xbf16, #tpu.memory_space<vmem>>, vector<1x8x8x8xbf16>
    %1 = arith.extf %0 : vector<1x8x8x8xbf16> to vector<1x8x8x8xf32>
    %c0_3 = arith.constant 0 : index
    %c0_4 = arith.constant 0 : index
    %2 = vector.load %arg2[%c0_3, %c0_4] : memref<1x8xf32, #tpu.memory_space<vmem>>, vector<1x8xf32>
    %3 = vector.shape_cast %2 : vector<1x8xf32> to vector<1x1x1x8xf32>
    %c0_5 = arith.constant 0 : index
    %c0_6 = arith.constant 0 : index
    %4 = vector.load %arg3[%c0_5, %c0_6] : memref<1x8xf32, #tpu.memory_space<vmem>>, vector<1x8xf32>
    %5 = vector.shape_cast %4 : vector<1x8xf32> to vector<1x1x1x8xf32>
    %6 = vector.broadcast %3 : vector<1x1x1x8xf32> to vector<1x8x8x8xf32>
    %7 = arith.mulf %1, %6 : vector<1x8x8x8xf32>
    %8 = vector.broadcast %5 : vector<1x1x1x8xf32> to vector<1x8x8x8xf32>
    %9 = arith.addf %7, %8 : vector<1x8x8x8xf32>
    %cst = arith.constant 0.000000e+00 : f32
    %10 = vector.broadcast %cst : f32 to vector<1x8x1x8xf32>
    %cst_7 = arith.constant 0.000000e+00 : f32
    %11 = vector.broadcast %cst_7 : f32 to vector<1x1x10x8xf32>
    %12 = tpu.concatenate %10, %9, %10 in 2 : vector<1x8x1x8xf32>, vector<1x8x8x8xf32>, vector<1x8x1x8xf32> -> vector<1x8x10x8xf32>
    %13 = tpu.concatenate %11, %12, %11 in 1 : vector<1x1x10x8xf32>, vector<1x8x10x8xf32>, vector<1x1x10x8xf32> -> vector<1x10x10x8xf32>
    %14 = vector.extract_strided_slice %13 {offsets = [0, 0, 0, 0], sizes = [1, 8, 8, 8], strides = [1, 1, 1, 1]} : vector<1x10x10x8xf32> to vector<1x8x8x8xf32>
    %15 = vector.extract_strided_slice %13 {offsets = [0, 0, 1, 0], sizes = [1, 8, 8, 8], strides = [1, 1, 1, 1]} : vector<1x10x10x8xf32> to vector<1x8x8x8xf32>
    %16 = vector.extract_strided_slice %13 {offsets = [0, 0, 2, 0], sizes = [1, 8, 8, 8], strides = [1, 1, 1, 1]} : vector<1x10x10x8xf32> to vector<1x8x8x8xf32>
    %17 = vector.extract_strided_slice %13 {offsets = [0, 1, 0, 0], sizes = [1, 8, 8, 8], strides = [1, 1, 1, 1]} : vector<1x10x10x8xf32> to vector<1x8x8x8xf32>
    %18 = vector.extract_strided_slice %13 {offsets = [0, 1, 1, 0], sizes = [1, 8, 8, 8], strides = [1, 1, 1, 1]} : vector<1x10x10x8xf32> to vector<1x8x8x8xf32>
    %19 = vector.extract_strided_slice %13 {offsets = [0, 1, 2, 0], sizes = [1, 8, 8, 8], strides = [1, 1, 1, 1]} : vector<1x10x10x8xf32> to vector<1x8x8x8xf32>
    %20 = vector.extract_strided_slice %13 {offsets = [0, 2, 0, 0], sizes = [1, 8, 8, 8], strides = [1, 1, 1, 1]} : vector<1x10x10x8xf32> to vector<1x8x8x8xf32>
    %21 = vector.extract_strided_slice %13 {offsets = [0, 2, 1, 0], sizes = [1, 8, 8, 8], strides = [1, 1, 1, 1]} : vector<1x10x10x8xf32> to vector<1x8x8x8xf32>
    %22 = vector.extract_strided_slice %13 {offsets = [0, 2, 2, 0], sizes = [1, 8, 8, 8], strides = [1, 1, 1, 1]} : vector<1x10x10x8xf32> to vector<1x8x8x8xf32>
    %23 = tpu.concatenate %14, %15, %16, %17, %18, %19, %20, %21, %22 in 3 : vector<1x8x8x8xf32>, vector<1x8x8x8xf32>, vector<1x8x8x8xf32>, vector<1x8x8x8xf32>, vector<1x8x8x8xf32>, vector<1x8x8x8xf32>, vector<1x8x8x8xf32>, vector<1x8x8x8xf32>, vector<1x8x8x8xf32> -> vector<1x8x8x72xf32>
    %24 = vector.shape_cast %23 : vector<1x8x8x72xf32> to vector<64x72xf32>
    %25 = arith.truncf %24 : vector<64x72xf32> to vector<64x72xbf16>
    %c0_8 = arith.constant 0 : index
    %c0_9 = arith.constant 0 : index
    %26 = vector.load %arg4[%c0_8, %c0_9] : memref<72x64xbf16, #tpu.memory_space<vmem>>, vector<72x64xbf16>
    %cst_10 = arith.constant dense<0.000000e+00> : vector<64x64xf32>
    %27 = tpu.matmul %25, %26, %cst_10 {dimension_numbers = #tpu.dot_dimension_numbers<[1], [0], [0], [1], [0, 0, 1, 1], [], []>} : vector<64x72xbf16>, vector<72x64xbf16>, vector<64x64xf32> -> vector<64x64xf32>
    %c0_11 = arith.constant 0 : index
    %c0_12 = arith.constant 0 : index
    %28 = vector.load %arg5[%c0_11, %c0_12] : memref<1x64xf32, #tpu.memory_space<vmem>>, vector<1x64xf32>
    %29 = vector.broadcast %28 : vector<1x64xf32> to vector<64x64xf32>
    %30 = arith.addf %27, %29 : vector<64x64xf32>
    %cst_13 = arith.constant dense<0.000000e+00> : vector<64xf32>
    %31 = vector.multi_reduction <add>, %30, %cst_13 [0] : vector<64x64xf32> to vector<64xf32>
    %32 = vector.shape_cast %31 : vector<64xf32> to vector<1x64xf32>
    %c0_14 = arith.constant 0 : index
    %c0_15 = arith.constant 0 : index
    %c0_16 = arith.constant 0 : index
    %33 = vector.load %arg7[%c0_14, %c0_15, %c0_16] : memref<1x1x64xf32, #tpu.memory_space<vmem>>, vector<1x1x64xf32>
    %34 = vector.shape_cast %33 : vector<1x1x64xf32> to vector<1x64xf32>
    %35 = vector.shape_cast %32 : vector<1x64xf32> to vector<1x1x64xf32>
    tpu.vector_store %arg7[%c0_14, %c0_15, %c0_16], %35 {strides = array<i32>} : memref<1x1x64xf32, #tpu.memory_space<vmem>>, vector<1x1x64xf32>,
    %36 = arith.mulf %30, %30 : vector<64x64xf32>
    %cst_17 = arith.constant dense<0.000000e+00> : vector<64xf32>
    %37 = vector.multi_reduction <add>, %36, %cst_17 [0] : vector<64x64xf32> to vector<64xf32>
    %38 = vector.shape_cast %37 : vector<64xf32> to vector<1x64xf32>
    %c0_18 = arith.constant 0 : index
    %c0_19 = arith.constant 0 : index
    %c0_20 = arith.constant 0 : index
    %39 = vector.load %arg8[%c0_18, %c0_19, %c0_20] : memref<1x1x64xf32, #tpu.memory_space<vmem>>, vector<1x1x64xf32>
    %40 = vector.shape_cast %39 : vector<1x1x64xf32> to vector<1x64xf32>
    %41 = vector.shape_cast %38 : vector<1x64xf32> to vector<1x1x64xf32>
    tpu.vector_store %arg8[%c0_18, %c0_19, %c0_20], %41 {strides = array<i32>} : memref<1x1x64xf32, #tpu.memory_space<vmem>>, vector<1x1x64xf32>,
    %42 = vector.shape_cast %30 : vector<64x64xf32> to vector<1x8x8x64xf32>
    %43 = arith.truncf %42 : vector<1x8x8x64xf32> to vector<1x8x8x64xbf16>
    %c0_21 = arith.constant 0 : index
    %c0_22 = arith.constant 0 : index
    %c0_23 = arith.constant 0 : index
    %c0_24 = arith.constant 0 : index
    %44 = vector.load %arg6[%c0_21, %c0_22, %c0_23, %c0_24] : memref<1x8x8x64xbf16, #tpu.memory_space<vmem>>, vector<1x8x8x64xbf16>
    tpu.vector_store %arg6[%c0_21, %c0_22, %c0_23, %c0_24], %43 {strides = array<i32>} : memref<1x8x8x64xbf16, #tpu.memory_space<vmem>>, vector<1x8x8x64xbf16>,
    return
  }
  func.func @transform_0(%arg0: i32) -> (i32, i32, i32, i32) {
    %c0_i32 = arith.constant 0 : i32
    %c0_i32_0 = arith.constant 0 : i32
    %c0_i32_1 = arith.constant 0 : i32
    %c0_i32_2 = arith.constant 0 : i32
    return %arg0, %c0_i32, %c0_i32_0, %c0_i32_1 : i32, i32, i32, i32
  }
  func.func @transform_1(%arg0: i32) -> (i32, i32) {
    %c0_i32 = arith.constant 0 : i32
    %c0_i32_0 = arith.constant 0 : i32
    %c0_i32_1 = arith.constant 0 : i32
    return %c0_i32, %c0_i32_0 : i32, i32
  }
  func.func @transform_2(%arg0: i32) -> (i32, i32) {
    %c0_i32 = arith.constant 0 : i32
    %c0_i32_0 = arith.constant 0 : i32
    %c0_i32_1 = arith.constant 0 : i32
    return %c0_i32, %c0_i32_0 : i32, i32
  }
  func.func @transform_3(%arg0: i32) -> (i32, i32) {
    %c0_i32 = arith.constant 0 : i32
    %c0_i32_0 = arith.constant 0 : i32
    %c0_i32_1 = arith.constant 0 : i32
    return %c0_i32, %c0_i32_0 : i32, i32
  }
  func.func @transform_4(%arg0: i32) -> (i32, i32) {
    %c0_i32 = arith.constant 0 : i32
    %c0_i32_0 = arith.constant 0 : i32
    %c0_i32_1 = arith.constant 0 : i32
    return %c0_i32, %c0_i32_0 : i32, i32
  }
  func.func @transform_5(%arg0: i32) -> (i32, i32, i32, i32) {
    %c0_i32 = arith.constant 0 : i32
    %c0_i32_0 = arith.constant 0 : i32
    %c0_i32_1 = arith.constant 0 : i32
    %c0_i32_2 = arith.constant 0 : i32
    return %arg0, %c0_i32, %c0_i32_0, %c0_i32_1 : i32, i32, i32, i32
  }
  func.func @transform_6(%arg0: i32) -> (i32, i32, i32) {
    %c0_i32 = arith.constant 0 : i32
    %c0_i32_0 = arith.constant 0 : i32
    %c0_i32_1 = arith.constant 0 : i32
    return %arg0, %c0_i32, %c0_i32_0 : i32, i32, i32
  }
  func.func @transform_7(%arg0: i32) -> (i32, i32, i32) {
    %c0_i32 = arith.constant 0 : i32
    %c0_i32_0 = arith.constant 0 : i32
    %c0_i32_1 = arith.constant 0 : i32
    return %arg0, %c0_i32, %c0_i32_0 : i32, i32, i32
  }
}

module attributes {stable_mosaic.version = 11 : i64} {
  func.func @kernel(%arg0: i32, %arg1: memref<1x16x16x16xbf16, #tpu.memory_space<vmem>>, %arg2: memref<1x16xf32, #tpu.memory_space<vmem>>, %arg3: memref<1x16xf32, #tpu.memory_space<vmem>>, %arg4: memref<144x16xbf16, #tpu.memory_space<vmem>>, %arg5: memref<1x16xf32, #tpu.memory_space<vmem>>, %arg6: memref<1x16x16x16xbf16, #tpu.memory_space<vmem>>, %arg7: memref<1x1x16xf32, #tpu.memory_space<vmem>>, %arg8: memref<1x1x16xf32, #tpu.memory_space<vmem>>) attributes {dimension_semantics = [#tpu.dimension_semantics<parallel>], iteration_bounds = array<i64: 2>, scalar_prefetch = 0 : i64, scratch_operands = 0 : i64, tpu.core_type = #tpu.core_type<tc>, window_params = [{transform_indices = @transform_0, window_bounds = array<i64: 1, 16, 16, 16>}, {pipeline_mode = #tpu.pipeline_mode<synchronous>, transform_indices = @transform_1, window_bounds = array<i64: 1, 16>}, {pipeline_mode = #tpu.pipeline_mode<synchronous>, transform_indices = @transform_2, window_bounds = array<i64: 1, 16>}, {pipeline_mode = #tpu.pipeline_mode<synchronous>, transform_indices = @transform_3, window_bounds = array<i64: 144, 16>}, {pipeline_mode = #tpu.pipeline_mode<synchronous>, transform_indices = @transform_4, window_bounds = array<i64: 1, 16>}, {transform_indices = @transform_5, window_bounds = array<i64: 1, 16, 16, 16>}, {transform_indices = @transform_6, window_bounds = array<i64: 1, 1, 16>}, {transform_indices = @transform_7, window_bounds = array<i64: 1, 1, 16>}]} {
    %c0 = arith.constant 0 : index
    %c0_0 = arith.constant 0 : index
    %c0_1 = arith.constant 0 : index
    %c0_2 = arith.constant 0 : index
    %0 = vector.load %arg1[%c0, %c0_0, %c0_1, %c0_2] : memref<1x16x16x16xbf16, #tpu.memory_space<vmem>>, vector<1x16x16x16xbf16>
    %1 = arith.extf %0 : vector<1x16x16x16xbf16> to vector<1x16x16x16xf32>
    %c0_3 = arith.constant 0 : index
    %c0_4 = arith.constant 0 : index
    %2 = vector.load %arg2[%c0_3, %c0_4] : memref<1x16xf32, #tpu.memory_space<vmem>>, vector<1x16xf32>
    %3 = vector.shape_cast %2 : vector<1x16xf32> to vector<1x1x1x16xf32>
    %c0_5 = arith.constant 0 : index
    %c0_6 = arith.constant 0 : index
    %4 = vector.load %arg3[%c0_5, %c0_6] : memref<1x16xf32, #tpu.memory_space<vmem>>, vector<1x16xf32>
    %5 = vector.shape_cast %4 : vector<1x16xf32> to vector<1x1x1x16xf32>
    %6 = vector.broadcast %3 : vector<1x1x1x16xf32> to vector<1x16x16x16xf32>
    %7 = arith.mulf %1, %6 : vector<1x16x16x16xf32>
    %8 = vector.broadcast %5 : vector<1x1x1x16xf32> to vector<1x16x16x16xf32>
    %9 = arith.addf %7, %8 : vector<1x16x16x16xf32>
    %cst = arith.constant 0.000000e+00 : f32
    %10 = vector.broadcast %cst : f32 to vector<1x16x16x16xf32>
    %11 = arith.maximumf %9, %10 : vector<1x16x16x16xf32>
    %cst_7 = arith.constant 0.000000e+00 : f32
    %12 = vector.broadcast %cst_7 : f32 to vector<1x16x1x16xf32>
    %cst_8 = arith.constant 0.000000e+00 : f32
    %13 = vector.broadcast %cst_8 : f32 to vector<1x1x18x16xf32>
    %14 = tpu.concatenate %12, %11, %12 in 2 : vector<1x16x1x16xf32>, vector<1x16x16x16xf32>, vector<1x16x1x16xf32> -> vector<1x16x18x16xf32>
    %15 = tpu.concatenate %13, %14, %13 in 1 : vector<1x1x18x16xf32>, vector<1x16x18x16xf32>, vector<1x1x18x16xf32> -> vector<1x18x18x16xf32>
    %16 = vector.extract_strided_slice %15 {offsets = [0, 0, 0, 0], sizes = [1, 16, 16, 16], strides = [1, 1, 1, 1]} : vector<1x18x18x16xf32> to vector<1x16x16x16xf32>
    %17 = vector.extract_strided_slice %15 {offsets = [0, 0, 1, 0], sizes = [1, 16, 16, 16], strides = [1, 1, 1, 1]} : vector<1x18x18x16xf32> to vector<1x16x16x16xf32>
    %18 = vector.extract_strided_slice %15 {offsets = [0, 0, 2, 0], sizes = [1, 16, 16, 16], strides = [1, 1, 1, 1]} : vector<1x18x18x16xf32> to vector<1x16x16x16xf32>
    %19 = vector.extract_strided_slice %15 {offsets = [0, 1, 0, 0], sizes = [1, 16, 16, 16], strides = [1, 1, 1, 1]} : vector<1x18x18x16xf32> to vector<1x16x16x16xf32>
    %20 = vector.extract_strided_slice %15 {offsets = [0, 1, 1, 0], sizes = [1, 16, 16, 16], strides = [1, 1, 1, 1]} : vector<1x18x18x16xf32> to vector<1x16x16x16xf32>
    %21 = vector.extract_strided_slice %15 {offsets = [0, 1, 2, 0], sizes = [1, 16, 16, 16], strides = [1, 1, 1, 1]} : vector<1x18x18x16xf32> to vector<1x16x16x16xf32>
    %22 = vector.extract_strided_slice %15 {offsets = [0, 2, 0, 0], sizes = [1, 16, 16, 16], strides = [1, 1, 1, 1]} : vector<1x18x18x16xf32> to vector<1x16x16x16xf32>
    %23 = vector.extract_strided_slice %15 {offsets = [0, 2, 1, 0], sizes = [1, 16, 16, 16], strides = [1, 1, 1, 1]} : vector<1x18x18x16xf32> to vector<1x16x16x16xf32>
    %24 = vector.extract_strided_slice %15 {offsets = [0, 2, 2, 0], sizes = [1, 16, 16, 16], strides = [1, 1, 1, 1]} : vector<1x18x18x16xf32> to vector<1x16x16x16xf32>
    %25 = tpu.concatenate %16, %17, %18, %19, %20, %21, %22, %23, %24 in 3 : vector<1x16x16x16xf32>, vector<1x16x16x16xf32>, vector<1x16x16x16xf32>, vector<1x16x16x16xf32>, vector<1x16x16x16xf32>, vector<1x16x16x16xf32>, vector<1x16x16x16xf32>, vector<1x16x16x16xf32>, vector<1x16x16x16xf32> -> vector<1x16x16x144xf32>
    %26 = vector.shape_cast %25 : vector<1x16x16x144xf32> to vector<256x144xf32>
    %27 = arith.truncf %26 : vector<256x144xf32> to vector<256x144xbf16>
    %c0_9 = arith.constant 0 : index
    %c0_10 = arith.constant 0 : index
    %28 = vector.load %arg4[%c0_9, %c0_10] : memref<144x16xbf16, #tpu.memory_space<vmem>>, vector<144x16xbf16>
    %cst_11 = arith.constant dense<0.000000e+00> : vector<256x16xf32>
    %29 = tpu.matmul %27, %28, %cst_11 {dimension_numbers = #tpu.dot_dimension_numbers<[1], [0], [0], [1], [0, 0, 1, 1], [], []>} : vector<256x144xbf16>, vector<144x16xbf16>, vector<256x16xf32> -> vector<256x16xf32>
    %c0_12 = arith.constant 0 : index
    %c0_13 = arith.constant 0 : index
    %30 = vector.load %arg5[%c0_12, %c0_13] : memref<1x16xf32, #tpu.memory_space<vmem>>, vector<1x16xf32>
    %31 = vector.broadcast %30 : vector<1x16xf32> to vector<256x16xf32>
    %32 = arith.addf %29, %31 : vector<256x16xf32>
    %33 = math.tanh %32 : vector<256x16xf32>
    %cst_14 = arith.constant dense<0.000000e+00> : vector<16xf32>
    %34 = vector.multi_reduction <add>, %33, %cst_14 [0] : vector<256x16xf32> to vector<16xf32>
    %35 = vector.shape_cast %34 : vector<16xf32> to vector<1x16xf32>
    %c0_15 = arith.constant 0 : index
    %c0_16 = arith.constant 0 : index
    %c0_17 = arith.constant 0 : index
    %36 = vector.load %arg7[%c0_15, %c0_16, %c0_17] : memref<1x1x16xf32, #tpu.memory_space<vmem>>, vector<1x1x16xf32>
    %37 = vector.shape_cast %36 : vector<1x1x16xf32> to vector<1x16xf32>
    %38 = vector.shape_cast %35 : vector<1x16xf32> to vector<1x1x16xf32>
    tpu.vector_store %arg7[%c0_15, %c0_16, %c0_17], %38 {strides = array<i32>} : memref<1x1x16xf32, #tpu.memory_space<vmem>>, vector<1x1x16xf32>,
    %39 = arith.mulf %33, %33 : vector<256x16xf32>
    %cst_18 = arith.constant dense<0.000000e+00> : vector<16xf32>
    %40 = vector.multi_reduction <add>, %39, %cst_18 [0] : vector<256x16xf32> to vector<16xf32>
    %41 = vector.shape_cast %40 : vector<16xf32> to vector<1x16xf32>
    %c0_19 = arith.constant 0 : index
    %c0_20 = arith.constant 0 : index
    %c0_21 = arith.constant 0 : index
    %42 = vector.load %arg8[%c0_19, %c0_20, %c0_21] : memref<1x1x16xf32, #tpu.memory_space<vmem>>, vector<1x1x16xf32>
    %43 = vector.shape_cast %42 : vector<1x1x16xf32> to vector<1x16xf32>
    %44 = vector.shape_cast %41 : vector<1x16xf32> to vector<1x1x16xf32>
    tpu.vector_store %arg8[%c0_19, %c0_20, %c0_21], %44 {strides = array<i32>} : memref<1x1x16xf32, #tpu.memory_space<vmem>>, vector<1x1x16xf32>,
    %45 = vector.shape_cast %33 : vector<256x16xf32> to vector<1x16x16x16xf32>
    %46 = arith.truncf %45 : vector<1x16x16x16xf32> to vector<1x16x16x16xbf16>
    %c0_22 = arith.constant 0 : index
    %c0_23 = arith.constant 0 : index
    %c0_24 = arith.constant 0 : index
    %c0_25 = arith.constant 0 : index
    %47 = vector.load %arg6[%c0_22, %c0_23, %c0_24, %c0_25] : memref<1x16x16x16xbf16, #tpu.memory_space<vmem>>, vector<1x16x16x16xbf16>
    tpu.vector_store %arg6[%c0_22, %c0_23, %c0_24, %c0_25], %46 {strides = array<i32>} : memref<1x16x16x16xbf16, #tpu.memory_space<vmem>>, vector<1x16x16x16xbf16>,
    return
  }
  func.func @transform_0(%arg0: i32) -> (i32, i32, i32, i32) {
    %c0_i32 = arith.constant 0 : i32
    %c0_i32_0 = arith.constant 0 : i32
    %c0_i32_1 = arith.constant 0 : i32
    %c0_i32_2 = arith.constant 0 : i32
    return %arg0, %c0_i32, %c0_i32_0, %c0_i32_1 : i32, i32, i32, i32
  }
  func.func @transform_1(%arg0: i32) -> (i32, i32) {
    %c0_i32 = arith.constant 0 : i32
    %c0_i32_0 = arith.constant 0 : i32
    %c0_i32_1 = arith.constant 0 : i32
    return %c0_i32, %c0_i32_0 : i32, i32
  }
  func.func @transform_2(%arg0: i32) -> (i32, i32) {
    %c0_i32 = arith.constant 0 : i32
    %c0_i32_0 = arith.constant 0 : i32
    %c0_i32_1 = arith.constant 0 : i32
    return %c0_i32, %c0_i32_0 : i32, i32
  }
  func.func @transform_3(%arg0: i32) -> (i32, i32) {
    %c0_i32 = arith.constant 0 : i32
    %c0_i32_0 = arith.constant 0 : i32
    %c0_i32_1 = arith.constant 0 : i32
    return %c0_i32, %c0_i32_0 : i32, i32
  }
  func.func @transform_4(%arg0: i32) -> (i32, i32) {
    %c0_i32 = arith.constant 0 : i32
    %c0_i32_0 = arith.constant 0 : i32
    %c0_i32_1 = arith.constant 0 : i32
    return %c0_i32, %c0_i32_0 : i32, i32
  }
  func.func @transform_5(%arg0: i32) -> (i32, i32, i32, i32) {
    %c0_i32 = arith.constant 0 : i32
    %c0_i32_0 = arith.constant 0 : i32
    %c0_i32_1 = arith.constant 0 : i32
    %c0_i32_2 = arith.constant 0 : i32
    return %arg0, %c0_i32, %c0_i32_0, %c0_i32_1 : i32, i32, i32, i32
  }
  func.func @transform_6(%arg0: i32) -> (i32, i32, i32) {
    %c0_i32 = arith.constant 0 : i32
    %c0_i32_0 = arith.constant 0 : i32
    %c0_i32_1 = arith.constant 0 : i32
    return %arg0, %c0_i32, %c0_i32_0 : i32, i32, i32
  }
  func.func @transform_7(%arg0: i32) -> (i32, i32, i32) {
    %c0_i32 = arith.constant 0 : i32
    %c0_i32_0 = arith.constant 0 : i32
    %c0_i32_1 = arith.constant 0 : i32
    return %arg0, %c0_i32, %c0_i32_0 : i32, i32, i32
  }
}

</mosaic_0001>

<llo_original>
// kernel: tile.13
$region0: #{tile.13}
  #allocation0 [shape = 's32[1]{0}', space=sflag, size = 0x4, scoped, tag = 'scoped memory for tile.13']
  %s0 = inlined_call_operand.vmem [shape: f32[16], index: 0, kind: input, shape index: {}]
  %s1 = inlined_call_operand.vmem [shape: f32[4,16], index: 1, kind: output, shape index: {}]
  // Predicated region
  $region2: #{tile.13} parent=0 // pred_check
    _
  $region3: #{tile.13} parent=0 // pred_check_branch
    %3 = sbr.rel (0) target = $region5
  $region4: #{tile.13} parent=0 // pred_region
    _
  $region5: #{tile.13} parent=0 // pred_fallthru
    _
  %v4 = vld [vmem:[%s0] ss:$0 sm:$0xff]
  %5 = vst [vmem:[%s1] sm:$0xf] %v4

// kernel: tile.14
$region0: #{tile.14}
  %s0 = inlined_call_operand.vmem [shape: f32[4,16], index: 0, kind: input, shape index: {}]
  %s1 = inlined_call_operand.vmem [shape: f32[1,64], index: 1, kind: output, shape index: {}]
  $region1: #{tile.14} parent=0
    #allocation0 [shape = 'u8[4096]{0}', space=vmem, size = 0x1000, scoped, tag = 'scoped mem for output reshape']
    #allocation1 [shape = 'u8[4096]{0}', space=vmem, size = 0x1000, scoped, tag = 'scoped mem for input reshape']
    %s3 = ssub.s32 16, 1
    %v4 = vld [vmem:[%s0] sm:%s3]
    %5 = vst [vmem:[#allocation1] sm:%s3] %v4
    %v6 = vld [vmem:[#allocation1] sm:$0x1]
    %vm7 = vcmask 130048
    %8 = vst.msk [vmem:[#allocation0] sm:$0x1] %vm7, %v6
    %s9 = scalar_lea.vmem [#allocation1], 3
    %v10 = vld [vmem:[%s9] sm:$0x1]
    %11 = vrot.lane.b32.xlu0 %v10, 48
    %v12 = vpop.permute.xlu0 %11
    %vm13 = vcmask 523648
    %14 = vst.msk [vmem:[#allocation0] sm:$0x1] %vm13, %v12
    %s15 = scalar_lea.vmem [#allocation1], 2
    %v16 = vld [vmem:[%s15] sm:$0x1]
    %17 = vrot.lane.b32.xlu0 %v16, 32
    %v18 = vpop.permute.xlu0 %17
    %vm19 = vcmask 392448
    %20 = vst.msk [vmem:[#allocation0] sm:$0x1] %vm19, %v18
    %s21 = scalar_lea.vmem [#allocation1], 1
    %v22 = vld [vmem:[%s21] sm:$0x1]
    %23 = vrot.lane.b32.xlu0 %v22, 16
    %v24 = vpop.permute.xlu0 %23
    %vm25 = vcmask 261248
    %26 = vst.msk [vmem:[#allocation0] sm:$0x1] %vm25, %v24
    %s28 = ssub.s32 2, 1
    %v29 = vld [vmem:[#allocation0] sm:%s28]
    %s31 = ssub.s32 2, 1
    %32 = vst [vmem:[%s1] sm:%s31] %v29

// kernel: tile.18
$region0: #{tile.18}
  #allocation0 [shape = 's32[1]{0}', space=sflag, size = 0x4, scoped, tag = 'scoped memory for tile.18']
  %s0 = inlined_call_operand.vmem [shape: f32[4], index: 0, kind: input, shape index: {}]
  %s1 = inlined_call_operand.vmem [shape: f32[4,4], index: 1, kind: output, shape index: {}]
  // Predicated region
  $region2: #{tile.18} parent=0 // pred_check
    _
  $region3: #{tile.18} parent=0 // pred_check_branch
    %3 = sbr.rel (0) target = $region5
  $region4: #{tile.18} parent=0 // pred_region
    _
  $region5: #{tile.18} parent=0 // pred_fallthru
    _
  %v4 = vld [vmem:[%s0] ss:$0 sm:$0xff]
  %5 = vst [vmem:[%s1] sm:$0xf] %v4

// kernel: tile.19
$region0: #{tile.19}
  %s0 = inlined_call_operand.vmem [shape: f32[4,4], index: 0, kind: input, shape index: {}]
  %s1 = inlined_call_operand.vmem [shape: f32[1,16], index: 1, kind: output, shape index: {}]
  $region1: #{tile.19} parent=0
    #allocation0 [shape = 'u8[4096]{0}', space=vmem, size = 0x1000, scoped, tag = 'scoped mem for output reshape']
    #allocation1 [shape = 'u8[4096]{0}', space=vmem, size = 0x1000, scoped, tag = 'scoped mem for input reshape']
    %s3 = ssub.s32 16, 1
    %v4 = vld [vmem:[%s0] sm:%s3]
    %5 = vst [vmem:[#allocation1] sm:%s3] %v4
    %v6 = vld [vmem:[#allocation1] sm:$0x1]
    %vm7 = vcmask 31744
    %8 = vst.msk [vmem:[#allocation0] sm:$0x1] %vm7, %v6
    %s9 = scalar_lea.vmem [#allocation1], 3
    %v10 = vld [vmem:[%s9] sm:$0x1]
    %11 = vrot.lane.b32.xlu0 %v10, 12
    %v12 = vpop.permute.xlu0 %11
    %vm13 = vcmask 130144
    %14 = vst.msk [vmem:[#allocation0] sm:$0x1] %vm13, %v12
    %s15 = scalar_lea.vmem [#allocation1], 2
    %v16 = vld [vmem:[%s15] sm:$0x1]
    %17 = vrot.lane.b32.xlu0 %v16, 8
    %v18 = vpop.permute.xlu0 %17
    %vm19 = vcmask 97344
    %20 = vst.msk [vmem:[#allocation0] sm:$0x1] %vm19, %v18
    %s21 = scalar_lea.vmem [#allocation1], 1
    %v22 = vld [vmem:[%s21] sm:$0x1]
    %23 = vrot.lane.b32.xlu0 %v22, 4
    %v24 = vpop.permute.xlu0 %23
    %vm25 = vcmask 64544
    %26 = vst.msk [vmem:[#allocation0] sm:$0x1] %vm25, %v24
    %s28 = ssub.s32 2, 1
    %v29 = vld [vmem:[#allocation0] sm:%s28]
    %s31 = ssub.s32 2, 1
    %32 = vst [vmem:[%s1] sm:%s31] %v29

// kernel: decoder_forward.5
$region0: #{decoder_forward.5}
  #allocation0 [shape = 'u32[]', space=smem, size = 0x4, offset = 0x4, fixed_abs, tag = 'smem constant byte address 0x4 - core index']
  #allocation1 [shape = 'u32[72,128]{1,0:T(1,128)}', space=vmem, size = 0x9000, scoped, tag = 'internal scratch']
  %s0 = inlined_call_operand.vmem [shape: bf16[2,8,8,8], index: 0, kind: input, shape index: {}]
  %s1 = inlined_call_operand.vmem [shape: f32[1,8], index: 1, kind: input, shape index: {}]
  %s2 = inlined_call_operand.vmem [shape: f32[1,8], index: 2, kind: input, shape index: {}]
  %s3 = inlined_call_operand.vmem [shape: bf16[72,8], index: 3, kind: input, shape index: {}]
  %s4 = inlined_call_operand.vmem [shape: f32[1,8], index: 4, kind: input, shape index: {}]
  %s5 = inlined_call_operand.vmem [shape: bf16[2,8,8,8], index: 5, kind: output, shape index: {0}]
  %s6 = inlined_call_operand.hbm [shape: f32[2,1,8], index: 6, kind: output, shape index: {1}]
  %s7 = inlined_call_operand.hbm [shape: f32[2,1,8], index: 7, kind: output, shape index: {2}]
  %8 = xla_tuple %s5, %s6, %s7
  %s9 = sld [smem:[#allocation0]]
  $region69: #{decoder_forward.5} parent=0
    _
  %s11 = ssub.s32 1, %s9
  %s12 = scalar_select 0, %s11, %s9
  $region1: #{decoder_forward.5} parent=0
    #allocation2 [shape = 'u8[1024]{0}', space=vmem, size = 0x400, scoped, tag = 'output window, operand 1']
    #allocation3 [shape = 's32[2]{0}', space=sflag, size = 0x8, scoped, tag = 'scoped memory for decoder_forward.5']
    #allocation4 [shape = 'u8[1024]{0}', space=vmem, size = 0x400, scoped, tag = 'output window, operand 2']
    #allocation5 [shape = 's32[2]{0}', space=sflag, size = 0x8, scoped, tag = 'scoped memory for decoder_forward.5']
    %13 = vsyncpa [#allocation3], 0
    %s14 = scalar_lea.sflag [#allocation3], 1
    %15 = vsyncpa %s14, 0
    %16 = vsyncpa [#allocation5], 0
    %s17 = scalar_lea.sflag [#allocation5], 1
    %18 = vsyncpa %s17, 0
    loop: start=0, step=1, limit=4
    $region2: #{decoder_forward.5} parent=1 // loop_pre_header
      _
    $region3: #{decoder_forward.5} parent=1 // loop_header
      %s20 = sphi 0, %s24
      %p21 = scmp.ge.s32.totalorder %s20, 4
      %s30 = sphi 0, %s32
      %s33 = sphi 0, %s30
      %s34 = sphi 0, %s33
      %s50 = sphi 0, %s34
      %s54 = sphi 0, %s54
      %s56 = sphi 0, %s54
      %s57 = sphi 0, %s56
      %s71 = sphi 0, %s57
      %s75 = sphi 0, %s75
      %s77 = sphi 0, %s75
      %s78 = sphi 0, %s77
      %s92 = sphi 0, %s78
      %s96 = sphi 0, %s96
      %s98 = sphi 0, %s96
      %s99 = sphi 0, %s98
      %s113 = sphi 0, %s99
      %s117 = sphi 0, %s117
      %s119 = sphi 0, %s117
      %s120 = sphi 0, %s119
      %s134 = sphi 0, %s120
      %s140 = sphi 0, %s142
      %s143 = sphi 0, %s140
      %s144 = sphi 0, %s143
      %s160 = sphi 0, %s144
      %s166 = sphi 0, %s168
      %s169 = sphi 0, %s166
      %s170 = sphi 0, %s169
      %s186 = sphi 0, %s170
      %s192 = sphi 0, %s194
      %s195 = sphi 0, %s192
      %s196 = sphi 0, %s195
      %s212 = sphi 0, %s196
    $region4: #{decoder_forward.5} parent=1 // loop_header_branch
      %23 = sbr.rel (%p21) target = $region8
    $region5: #{decoder_forward.5} parent=1 // loop_body
      %s25 = ssub.s32 %s20, 1
      %s26 = ssub.s32 %s20, 2
      %s27 = sadd.s32 %s20, 1
      %s28 = ssub.s32 %s20, %s27
      %p29 = scmp.eq.s32.totalorder %s28, 0
      %s31 = sadd.s32 %s30, 1
      %s32 = scalar_select %p29, %s30, %s31
      %p35 = pneg %p29
      %p36 = scmp.eq.s32.totalorder %s20, 1
      %p37 = por %p35, %p36
      %p38 = scmp.ne.s32.totalorder %s30, %s33
      %p39 = scmp.eq.s32.totalorder %s20, 0
      %p40 = por %p38, %p39
      %p41 = scmp.ne.s32.totalorder %s30, %s33
      %p42 = scmp.eq.s32.totalorder %s25, 1
      %p43 = por %p41, %p42
      %p44 = scmp.ne.s32.totalorder %s33, %s34
      %p45 = scmp.eq.s32.totalorder %s25, 0
      %p46 = por %p44, %p45
      %p47 = scmp.ne.s32.totalorder %s33, %s34
      %p48 = scmp.eq.s32.totalorder %s26, 1
      %p49 = por %p47, %p48
      %p51 = scmp.ne.s32.totalorder %s34, %s50
      %p52 = scmp.eq.s32.totalorder %s26, 0
      %p53 = por %p51, %p52
      %s55 = sadd.s32 %s54, 1
      %p58 = scmp.eq.s32.totalorder %s20, 1
      %p59 = scmp.ne.s32.totalorder %s54, %s56
      %p60 = scmp.eq.s32.totalorder %s20, 0
      %p61 = por %p59, %p60
      %p62 = scmp.ne.s32.totalorder %s54, %s56
      %p63 = scmp.eq.s32.totalorder %s25, 1
      %p64 = por %p62, %p63
      %p65 = scmp.ne.s32.totalorder %s56, %s57
      %p66 = scmp.eq.s32.totalorder %s25, 0
      %p67 = por %p65, %p66
      %p68 = scmp.ne.s32.totalorder %s56, %s57
      %p69 = scmp.eq.s32.totalorder %s26, 1
      %p70 = por %p68, %p69
      %p72 = scmp.ne.s32.totalorder %s57, %s71
      %p73 = scmp.eq.s32.totalorder %s26, 0
      %p74 = por %p72, %p73
      %s76 = sadd.s32 %s75, 1
      %p79 = scmp.eq.s32.totalorder %s20, 1
      %p80 = scmp.ne.s32.totalorder %s75, %s77
      %p81 = scmp.eq.s32.totalorder %s20, 0
      %p82 = por %p80, %p81
      %p83 = scmp.ne.s32.totalorder %s75, %s77
      %p84 = scmp.eq.s32.totalorder %s25, 1
      %p85 = por %p83, %p84
      %p86 = scmp.ne.s32.totalorder %s77, %s78
      %p87 = scmp.eq.s32.totalorder %s25, 0
      %p88 = por %p86, %p87
      %p89 = scmp.ne.s32.totalorder %s77, %s78
      %p90 = scmp.eq.s32.totalorder %s26, 1
      %p91 = por %p89, %p90
      %p93 = scmp.ne.s32.totalorder %s78, %s92
      %p94 = scmp.eq.s32.totalorder %s26, 0
      %p95 = por %p93, %p94
      %s97 = sadd.s32 %s96, 1
      %p100 = scmp.eq.s32.totalorder %s20, 1
      %p101 = scmp.ne.s32.totalorder %s96, %s98
      %p102 = scmp.eq.s32.totalorder %s20, 0
      %p103 = por %p101, %p102
      %p104 = scmp.ne.s32.totalorder %s96, %s98
      %p105 = scmp.eq.s32.totalorder %s25, 1
      %p106 = por %p104, %p105
      %p107 = scmp.ne.s32.totalorder %s98, %s99
      %p108 = scmp.eq.s32.totalorder %s25, 0
      %p109 = por %p107, %p108
      %p110 = scmp.ne.s32.totalorder %s98, %s99
      %p111 = scmp.eq.s32.totalorder %s26, 1
      %p112 = por %p110, %p111
      %p114 = scmp.ne.s32.totalorder %s99, %s113
      %p115 = scmp.eq.s32.totalorder %s26, 0
      %p116 = por %p114, %p115
      %s118 = sadd.s32 %s117, 1
      %p121 = scmp.eq.s32.totalorder %s20, 1
      %p122 = scmp.ne.s32.totalorder %s117, %s119
      %p123 = scmp.eq.s32.totalorder %s20, 0
      %p124 = por %p122, %p123
      %p125 = scmp.ne.s32.totalorder %s117, %s119
      %p126 = scmp.eq.s32.totalorder %s25, 1
      %p127 = por %p125, %p126
      %p128 = scmp.ne.s32.totalorder %s119, %s120
      %p129 = scmp.eq.s32.totalorder %s25, 0
      %p130 = por %p128, %p129
      %p131 = scmp.ne.s32.totalorder %s119, %s120
      %p132 = scmp.eq.s32.totalorder %s26, 1
      %p133 = por %p131, %p132
      %p135 = scmp.ne.s32.totalorder %s120, %s134
      %p136 = scmp.eq.s32.totalorder %s26, 0
      %p137 = por %p135, %p136
      %s138 = ssub.s32 %s20, %s27
      %p139 = scmp.eq.s32.totalorder %s138, 0
      %s141 = sadd.s32 %s140, 1
      %s142 = scalar_select %p139, %s140, %s141
      %p145 = pneg %p139
      %p146 = scmp.eq.s32.totalorder %s20, 1
      %p147 = por %p145, %p146
      %p148 = scmp.ne.s32.totalorder %s140, %s143
      %p149 = scmp.eq.s32.totalorder %s20, 0
      %p150 = por %p148, %p149
      %p151 = scmp.ne.s32.totalorder %s140, %s143
      %p152 = scmp.eq.s32.totalorder %s25, 1
      %p153 = por %p151, %p152
      %p154 = scmp.ne.s32.totalorder %s143, %s144
      %p155 = scmp.eq.s32.totalorder %s25, 0
      %p156 = por %p154, %p155
      %p157 = scmp.ne.s32.totalorder %s143, %s144
      %p158 = scmp.eq.s32.totalorder %s26, 1
      %p159 = por %p157, %p158
      %p161 = scmp.ne.s32.totalorder %s144, %s160
      %p162 = scmp.eq.s32.totalorder %s26, 0
      %p163 = por %p161, %p162
      %s164 = ssub.s32 %s20, %s27
      %p165 = scmp.eq.s32.totalorder %s164, 0
      %s167 = sadd.s32 %s166, 1
      %s168 = scalar_select %p165, %s166, %s167
      %p171 = pneg %p165
      %p172 = scmp.eq.s32.totalorder %s20, 1
      %p173 = por %p171, %p172
      %p174 = scmp.ne.s32.totalorder %s166, %s169
      %p175 = scmp.eq.s32.totalorder %s20, 0
      %p176 = por %p174, %p175
      %p177 = scmp.ne.s32.totalorder %s166, %s169
      %p178 = scmp.eq.s32.totalorder %s25, 1
      %p179 = por %p177, %p178
      %p180 = scmp.ne.s32.totalorder %s169, %s170
      %p181 = scmp.eq.s32.totalorder %s25, 0
      %p182 = por %p180, %p181
      %p183 = scmp.ne.s32.totalorder %s169, %s170
      %p184 = scmp.eq.s32.totalorder %s26, 1
      %p185 = por %p183, %p184
      %p187 = scmp.ne.s32.totalorder %s170, %s186
      %p188 = scmp.eq.s32.totalorder %s26, 0
      %p189 = por %p187, %p188
      %s190 = ssub.s32 %s20, %s27
      %p191 = scmp.eq.s32.totalorder %s190, 0
      %s193 = sadd.s32 %s192, 1
      %s194 = scalar_select %p191, %s192, %s193
      %p197 = pneg %p191
      %p198 = scmp.eq.s32.totalorder %s20, 1
      %p199 = por %p197, %p198
      %p200 = scmp.ne.s32.totalorder %s192, %s195
      %p201 = scmp.eq.s32.totalorder %s20, 0
      %p202 = por %p200, %p201
      %p203 = scmp.ne.s32.totalorder %s192, %s195
      %p204 = scmp.eq.s32.totalorder %s25, 1
      %p205 = por %p203, %p204
      %p206 = scmp.ne.s32.totalorder %s195, %s196
      %p207 = scmp.eq.s32.totalorder %s25, 0
      %p208 = por %p206, %p207
      %p209 = scmp.ne.s32.totalorder %s195, %s196
      %p210 = scmp.eq.s32.totalorder %s26, 1
      %p211 = por %p209, %p210
      %p213 = scmp.ne.s32.totalorder %s196, %s212
      %p214 = scmp.eq.s32.totalorder %s26, 0
      %p215 = por %p213, %p214
      %p216 = scmp.le.s32.totalorder 1, %s20
      %p217 = scmp.lt.s32.totalorder %s20, 3
      %p218 = pnand %p216, %p217
      %p219 = pneg %p218
      // Predicated region
      $region9: #{decoder_forward.5} parent=5 // pred_check
        _
      $region10: #{decoder_forward.5} parent=5 // pred_check_branch
        %221 = sbr.rel (%p218) target = $region12
      $region11: #{decoder_forward.5} parent=5 // pred_region
        %s222 = ssub.s32 %s20, 1
        // Predicated region
        $region13: #{decoder_forward.5} parent=11 // pred_check
          %p223 = pneg %p67
        $region14: #{decoder_forward.5} parent=11 // pred_check_branch
          %225 = sbr.rel (%p223) target = $region16
        $region15: #{decoder_forward.5} parent=11 // pred_region
          _
        $region16: #{decoder_forward.5} parent=11 // pred_fallthru
          _
        // Predicated region
        $region17: #{decoder_forward.5} parent=11 // pred_check
          %p226 = pneg %p88
        $region18: #{decoder_forward.5} parent=11 // pred_check_branch
          %228 = sbr.rel (%p226) target = $region20
        $region19: #{decoder_forward.5} parent=11 // pred_region
          _
        $region20: #{decoder_forward.5} parent=11 // pred_fallthru
          _
        // Predicated region
        $region21: #{decoder_forward.5} parent=11 // pred_check
          %p229 = pneg %p109
        $region22: #{decoder_forward.5} parent=11 // pred_check_branch
          %231 = sbr.rel (%p229) target = $region24
        $region23: #{decoder_forward.5} parent=11 // pred_region
          _
        $region24: #{decoder_forward.5} parent=11 // pred_fallthru
          _
        // Predicated region
        $region25: #{decoder_forward.5} parent=11 // pred_check
          %p232 = pneg %p130
        $region26: #{decoder_forward.5} parent=11 // pred_check_branch
          %234 = sbr.rel (%p232) target = $region28
        $region27: #{decoder_forward.5} parent=11 // pred_region
          _
        $region28: #{decoder_forward.5} parent=11 // pred_fallthru
          _
      $region12: #{decoder_forward.5} parent=5 // pred_fallthru
        _
      %p235 = scmp.lt.s32.totalorder %s20, 2
      // Predicated region
      $region29: #{decoder_forward.5} parent=5 // pred_check
        %p236 = pneg %p235
      $region30: #{decoder_forward.5} parent=5 // pred_check_branch
        %238 = sbr.rel (%p236) target = $region32
      $region31: #{decoder_forward.5} parent=5 // pred_region
        // Predicated region
        $region33: #{decoder_forward.5} parent=31 // pred_check
          %p239 = pneg %p40
        $region34: #{decoder_forward.5} parent=31 // pred_check_branch
          %241 = sbr.rel (%p239) target = $region36
        $region35: #{decoder_forward.5} parent=31 // pred_region
          %p242 = scmp.lt.s32.totalorder %s20, 1
          %s243 = scalar_select %p242, %s20, 1
          %s244 = smul.addr %s243, 8
          %s245 = smul.addr %s244, 4
          %s246 = scalar_lea.vmem %s0, %s245
        $region36: #{decoder_forward.5} parent=31 // pred_fallthru
          _
      $region32: #{decoder_forward.5} parent=5 // pred_fallthru
        _
      %p247 = scmp.le.s32.totalorder 1, %s20
      %p248 = scmp.lt.s32.totalorder %s20, 3
      %p249 = pnand %p247, %p248
      %p250 = pneg %p249
      // Predicated region
      $region37: #{decoder_forward.5} parent=5 // pred_check
        _
      $region38: #{decoder_forward.5} parent=5 // pred_check_branch
        %252 = sbr.rel (%p249) target = $region40
      $region39: #{decoder_forward.5} parent=5 // pred_region
        %s253 = ssub.s32 %s20, 1
        %p254 = scmp.lt.s32.totalorder %s25, 1
        %s255 = scalar_select %p254, %s25, 1
        %s256 = smul.addr %s255, 8
        %s257 = smul.addr %s256, 4
        %s258 = scalar_lea.vmem %s0, %s257
        %p259 = pneg %p46
        %p260 = pneg %p43
        %p261 = pneg %p67
        %p262 = pneg %p64
        %p263 = pneg %p88
        %p264 = pneg %p85
        %p265 = pneg %p109
        %p266 = pneg %p106
        %p267 = pneg %p130
        %p268 = pneg %p127
        %p269 = pneg %p156
        %p270 = pneg %p153
        %p271 = scmp.lt.s32.totalorder %s25, 1
        %s272 = scalar_select %p271, %s25, 1
        %s273 = smul.addr %s272, 8
        %s274 = smul.addr %s273, 4
        %s275 = scalar_lea.vmem %s5, %s274
        %p276 = pneg %p182
        %p277 = pneg %p179
        %s278 = sand.u32 %s169, 1
        %s279 = scalar_lea.sflag [#allocation3], %s278
        %s280 = sand.u32 %s169, 1
        %s281 = scalar_lea.vmem [#allocation2], %s280
        %p282 = pneg %p208
        %p283 = pneg %p205
        %s284 = sand.u32 %s195, 1
        %s285 = scalar_lea.sflag [#allocation5], %s284
        %s286 = sand.u32 %s195, 1
        %s287 = scalar_lea.vmem [#allocation4], %s286
        %p288 = scmp.lt.s32.totalorder %s25, 1
        %s289 = scalar_select %p288, %s25, 1
        %s290 = smul.addr %s289, 8
        %s291 = smul.addr %s290, 4
        %s292 = scalar_lea.vmem %s0, %s291
        %p293 = scmp.lt.s32.totalorder %s25, 1
        %s294 = scalar_select %p293, %s25, 1
        %s295 = smul.addr %s294, 8
        %s296 = smul.addr %s295, 4
        %s297 = scalar_lea.vmem %s5, %s296
        %v299 = vld [vmem:[%s292] sm:$0xf]
        %v300 = vld [vmem:[%s292 + $0x4] sm:$0xf]
        %v301 = vld [vmem:[%s292 + $0x8] sm:$0xf]
        %v302 = vld [vmem:[%s292 + $0xc] sm:$0xf]
        %v303 = vld [vmem:[%s292 + $0x10] sm:$0xf]
        %v304 = vld [vmem:[%s292 + $0x14] sm:$0xf]
        %v305 = vld [vmem:[%s292 + $0x18] sm:$0xf]
        %v306 = vld [vmem:[%s292 + $0x1c] sm:$0xf]
        %v307 = vunpack.c.l.bf16 %v299
        %v308 = vunpack.c.l.bf16 %v300
        %v309 = vunpack.c.l.bf16 %v301
        %v310 = vunpack.c.l.bf16 %v302
        %v311 = vunpack.c.l.bf16 %v303
        %v312 = vunpack.c.l.bf16 %v304
        %v313 = vunpack.c.l.bf16 %v305
        %v314 = vunpack.c.l.bf16 %v306
        %v315 = vld [vmem:[%s1] sm:$0x1]
        %v316 = vld [vmem:[%s2] sm:$0x1]
        %v318 = vperm.slane %v315, 0
        %v320 = vmul.f32 %v307, %v318
        %v321 = vmul.f32 %v308, %v318
        %v322 = vmul.f32 %v309, %v318
        %v323 = vmul.f32 %v310, %v318
        %v324 = vmul.f32 %v311, %v318
        %v325 = vmul.f32 %v312, %v318
        %v326 = vmul.f32 %v313, %v318
        %v327 = vmul.f32 %v314, %v318
        %v329 = vperm.slane %v316, 0
        %v331 = vadd.f32 %v320, %v329
        %v332 = vadd.f32 %v321, %v329
        %v333 = vadd.f32 %v322, %v329
        %v334 = vadd.f32 %v323, %v329
        %v335 = vadd.f32 %v324, %v329
        %v336 = vadd.f32 %v325, %v329
        %v337 = vadd.f32 %v326, %v329
        %v338 = vadd.f32 %v327, %v329
        %v347 = vrot.slane %v331, 7
        %v348 = vrot.slane %v332, 7
        %v349 = vrot.slane %v333, 7
        %v350 = vrot.slane %v334, 7
        %v351 = vrot.slane %v335, 7
        %v352 = vrot.slane %v336, 7
        %v353 = vrot.slane %v337, 7
        %v354 = vrot.slane %v338, 7
        %vm363 = vcmask 1040384
        %v364 = vsel %vm363, 0.0, %v347
        %v365 = vsel %vm363, 0.0, %v348
        %v366 = vsel %vm363, 0.0, %v349
        %v367 = vsel %vm363, 0.0, %v350
        %v368 = vsel %vm363, 0.0, %v351
        %v369 = vsel %vm363, 0.0, %v352
        %v370 = vsel %vm363, 0.0, %v353
        %v371 = vsel %vm363, 0.0, %v354
        %v372 = vsel %vm363, %v347, 0.0
        %v373 = vsel %vm363, %v348, 0.0
        %v374 = vsel %vm363, %v349, 0.0
        %v375 = vsel %vm363, %v350, 0.0
        %v376 = vsel %vm363, %v351, 0.0
        %v377 = vsel %vm363, %v352, 0.0
        %v378 = vsel %vm363, %v353, 0.0
        %v379 = vsel %vm363, %v354, 0.0
        %vm395 = vcmask 1046528
        %v396 = vrot.slane 0.0, 1
        %v397 = vsel %vm395, %v396, %v396
        %v398 = vrot.slane %v364, 1
        %v399 = vrot.slane %v372, 1
        %v400 = vsel %vm395, %v398, %v399
        %v401 = vrot.slane %v365, 1
        %v402 = vrot.slane %v373, 1
        %v403 = vsel %vm395, %v401, %v402
        %v404 = vrot.slane %v366, 1
        %v405 = vrot.slane %v374, 1
        %v406 = vsel %vm395, %v404, %v405
        %v407 = vrot.slane %v367, 1
        %v408 = vrot.slane %v375, 1
        %v409 = vsel %vm395, %v407, %v408
        %v410 = vrot.slane %v368, 1
        %v411 = vrot.slane %v376, 1
        %v412 = vsel %vm395, %v410, %v411
        %v413 = vrot.slane %v369, 1
        %v414 = vrot.slane %v377, 1
        %v415 = vsel %vm395, %v413, %v414
        %v416 = vrot.slane %v370, 1
        %v417 = vrot.slane %v378, 1
        %v418 = vsel %vm395, %v416, %v417
        %419 = vrot.lane.b32.xlu0 %v397, 8
        %v420 = vpop.permute.xlu0 %419
        %421 = vrot.lane.b32.xlu0 %v400, 8
        %v422 = vpop.permute.xlu0 %421
        %423 = vrot.lane.b32.xlu0 %v403, 8
        %v424 = vpop.permute.xlu0 %423
        %425 = vrot.lane.b32.xlu0 %v406, 8
        %v426 = vpop.permute.xlu0 %425
        %427 = vrot.lane.b32.xlu0 %v409, 8
        %v428 = vpop.permute.xlu0 %427
        %429 = vrot.lane.b32.xlu0 %v412, 8
        %v430 = vpop.permute.xlu0 %429
        %431 = vrot.lane.b32.xlu0 %v415, 8
        %v432 = vpop.permute.xlu0 %431
        %433 = vrot.lane.b32.xlu0 %v418, 8
        %v434 = vpop.permute.xlu0 %433
        %vm443 = vcmask 1045504
        %v444 = vrot.slane 0.0, 2
        %v445 = vsel %vm443, %v444, %v444
        %v446 = vrot.slane %v364, 2
        %v447 = vrot.slane %v372, 2
        %v448 = vsel %vm443, %v446, %v447
        %v449 = vrot.slane %v365, 2
        %v450 = vrot.slane %v373, 2
        %v451 = vsel %vm443, %v449, %v450
        %v452 = vrot.slane %v366, 2
        %v453 = vrot.slane %v374, 2
        %v454 = vsel %vm443, %v452, %v453
        %v455 = vrot.slane %v367, 2
        %v456 = vrot.slane %v375, 2
        %v457 = vsel %vm443, %v455, %v456
        %v458 = vrot.slane %v368, 2
        %v459 = vrot.slane %v376, 2
        %v460 = vsel %vm443, %v458, %v459
        %v461 = vrot.slane %v369, 2
        %v462 = vrot.slane %v377, 2
        %v463 = vsel %vm443, %v461, %v462
        %v464 = vrot.slane %v370, 2
        %v465 = vrot.slane %v378, 2
        %v466 = vsel %vm443, %v464, %v465
        %467 = vrot.lane.b32.xlu0 %v445, 16
        %v468 = vpop.permute.xlu0 %467
        %469 = vrot.lane.b32.xlu0 %v448, 16
        %v470 = vpop.permute.xlu0 %469
        %471 = vrot.lane.b32.xlu0 %v451, 16
        %v472 = vpop.permute.xlu0 %471
        %473 = vrot.lane.b32.xlu0 %v454, 16
        %v474 = vpop.permute.xlu0 %473
        %475 = vrot.lane.b32.xlu0 %v457, 16
        %v476 = vpop.permute.xlu0 %475
        %477 = vrot.lane.b32.xlu0 %v460, 16
        %v478 = vpop.permute.xlu0 %477
        %479 = vrot.lane.b32.xlu0 %v463, 16
        %v480 = vpop.permute.xlu0 %479
        %481 = vrot.lane.b32.xlu0 %v466, 16
        %v482 = vpop.permute.xlu0 %481
        %492 = vrot.lane.b32.xlu0 %v364, 24
        %v493 = vpop.permute.xlu0 %492
        %494 = vrot.lane.b32.xlu0 %v365, 24
        %v495 = vpop.permute.xlu0 %494
        %496 = vrot.lane.b32.xlu0 %v366, 24
        %v497 = vpop.permute.xlu0 %496
        %498 = vrot.lane.b32.xlu0 %v367, 24
        %v499 = vpop.permute.xlu0 %498
        %500 = vrot.lane.b32.xlu0 %v368, 24
        %v501 = vpop.permute.xlu0 %500
        %502 = vrot.lane.b32.xlu0 %v369, 24
        %v503 = vpop.permute.xlu0 %502
        %504 = vrot.lane.b32.xlu0 %v370, 24
        %v505 = vpop.permute.xlu0 %504
        %506 = vrot.lane.b32.xlu0 %v371, 24
        %v507 = vpop.permute.xlu0 %506
        %v517 = vrot.slane %v371, 1
        %v518 = vrot.slane %v379, 1
        %v519 = vsel %vm395, %v517, %v518
        %520 = vrot.lane.b32.xlu0 %v400, 32
        %v521 = vpop.permute.xlu0 %520
        %522 = vrot.lane.b32.xlu0 %v403, 32
        %v523 = vpop.permute.xlu0 %522
        %524 = vrot.lane.b32.xlu0 %v406, 32
        %v525 = vpop.permute.xlu0 %524
        %526 = vrot.lane.b32.xlu0 %v409, 32
        %v527 = vpop.permute.xlu0 %526
        %528 = vrot.lane.b32.xlu0 %v412, 32
        %v529 = vpop.permute.xlu0 %528
        %530 = vrot.lane.b32.xlu0 %v415, 32
        %v531 = vpop.permute.xlu0 %530
        %532 = vrot.lane.b32.xlu0 %v418, 32
        %v533 = vpop.permute.xlu0 %532
        %534 = vrot.lane.b32.xlu0 %v519, 32
        %v535 = vpop.permute.xlu0 %534
        %v544 = vrot.slane %v371, 2
        %v545 = vrot.slane %v379, 2
        %v546 = vsel %vm443, %v544, %v545
        %547 = vrot.lane.b32.xlu0 %v448, 40
        %v548 = vpop.permute.xlu0 %547
        %549 = vrot.lane.b32.xlu0 %v451, 40
        %v550 = vpop.permute.xlu0 %549
        %551 = vrot.lane.b32.xlu0 %v454, 40
        %v552 = vpop.permute.xlu0 %551
        %553 = vrot.lane.b32.xlu0 %v457, 40
        %v554 = vpop.permute.xlu0 %553
        %555 = vrot.lane.b32.xlu0 %v460, 40
        %v556 = vpop.permute.xlu0 %555
        %557 = vrot.lane.b32.xlu0 %v463, 40
        %v558 = vpop.permute.xlu0 %557
        %559 = vrot.lane.b32.xlu0 %v466, 40
        %v560 = vpop.permute.xlu0 %559
        %561 = vrot.lane.b32.xlu0 %v546, 40
        %v562 = vpop.permute.xlu0 %561
        %571 = vrot.lane.b32.xlu0 %v365, 48
        %v572 = vpop.permute.xlu0 %571
        %573 = vrot.lane.b32.xlu0 %v366, 48
        %v574 = vpop.permute.xlu0 %573
        %575 = vrot.lane.b32.xlu0 %v367, 48
        %v576 = vpop.permute.xlu0 %575
        %577 = vrot.lane.b32.xlu0 %v368, 48
        %v578 = vpop.permute.xlu0 %577
        %579 = vrot.lane.b32.xlu0 %v369, 48
        %v580 = vpop.permute.xlu0 %579
        %581 = vrot.lane.b32.xlu0 %v370, 48
        %v582 = vpop.permute.xlu0 %581
        %583 = vrot.lane.b32.xlu0 %v371, 48
        %v584 = vpop.permute.xlu0 %583
        %585 = vrot.lane.b32.xlu0 0.0, 48
        %v586 = vpop.permute.xlu0 %585
        %595 = vrot.lane.b32.xlu0 %v403, 56
        %v596 = vpop.permute.xlu0 %595
        %597 = vrot.lane.b32.xlu0 %v406, 56
        %v598 = vpop.permute.xlu0 %597
        %599 = vrot.lane.b32.xlu0 %v409, 56
        %v600 = vpop.permute.xlu0 %599
        %601 = vrot.lane.b32.xlu0 %v412, 56
        %v602 = vpop.permute.xlu0 %601
        %603 = vrot.lane.b32.xlu0 %v415, 56
        %v604 = vpop.permute.xlu0 %603
        %605 = vrot.lane.b32.xlu0 %v418, 56
        %v606 = vpop.permute.xlu0 %605
        %607 = vrot.lane.b32.xlu0 %v519, 56
        %v608 = vpop.permute.xlu0 %607
        %609 = vrot.lane.b32.xlu0 %v397, 56
        %v610 = vpop.permute.xlu0 %609
        %619 = vrot.lane.b32.xlu0 %v451, 64
        %v620 = vpop.permute.xlu0 %619
        %621 = vrot.lane.b32.xlu0 %v454, 64
        %v622 = vpop.permute.xlu0 %621
        %623 = vrot.lane.b32.xlu0 %v457, 64
        %v624 = vpop.permute.xlu0 %623
        %625 = vrot.lane.b32.xlu0 %v460, 64
        %v626 = vpop.permute.xlu0 %625
        %627 = vrot.lane.b32.xlu0 %v463, 64
        %v628 = vpop.permute.xlu0 %627
        %629 = vrot.lane.b32.xlu0 %v466, 64
        %v630 = vpop.permute.xlu0 %629
        %631 = vrot.lane.b32.xlu0 %v546, 64
        %v632 = vpop.permute.xlu0 %631
        %633 = vrot.lane.b32.xlu0 %v445, 64
        %v634 = vpop.permute.xlu0 %633
        %vm643 = vcmask 64512
        %v644 = vsel %vm643, 0.0, %v420
        %v645 = vsel %vm643, %v364, %v422
        %v646 = vsel %vm643, %v365, %v424
        %v647 = vsel %vm643, %v366, %v426
        %v648 = vsel %vm643, %v367, %v428
        %v649 = vsel %vm643, %v368, %v430
        %v650 = vsel %vm643, %v369, %v432
        %v651 = vsel %vm643, %v370, %v434
        %vm652 = vcmask 130048
        %v653 = vsel %vm652, %v644, %v468
        %v654 = vsel %vm652, %v645, %v470
        %v655 = vsel %vm652, %v646, %v472
        %v656 = vsel %vm652, %v647, %v474
        %v657 = vsel %vm652, %v648, %v476
        %v658 = vsel %vm652, %v649, %v478
        %v659 = vsel %vm652, %v650, %v480
        %v660 = vsel %vm652, %v651, %v482
        %vm661 = vcmask 195584
        %v662 = vsel %vm661, %v653, %v493
        %v663 = vsel %vm661, %v654, %v495
        %v664 = vsel %vm661, %v655, %v497
        %v665 = vsel %vm661, %v656, %v499
        %v666 = vsel %vm661, %v657, %v501
        %v667 = vsel %vm661, %v658, %v503
        %v668 = vsel %vm661, %v659, %v505
        %v669 = vsel %vm661, %v660, %v507
        %vm670 = vcmask 261120
        %v671 = vsel %vm670, %v662, %v521
        %v672 = vsel %vm670, %v663, %v523
        %v673 = vsel %vm670, %v664, %v525
        %v674 = vsel %vm670, %v665, %v527
        %v675 = vsel %vm670, %v666, %v529
        %v676 = vsel %vm670, %v667, %v531
        %v677 = vsel %vm670, %v668, %v533
        %v678 = vsel %vm670, %v669, %v535
        %vm679 = vcmask 326656
        %v680 = vsel %vm679, %v671, %v548
        %v681 = vsel %vm679, %v672, %v550
        %v682 = vsel %vm679, %v673, %v552
        %v683 = vsel %vm679, %v674, %v554
        %v684 = vsel %vm679, %v675, %v556
        %v685 = vsel %vm679, %v676, %v558
        %v686 = vsel %vm679, %v677, %v560
        %v687 = vsel %vm679, %v678, %v562
        %vm688 = vcmask 392192
        %v689 = vsel %vm688, %v680, %v572
        %v690 = vsel %vm688, %v681, %v574
        %v691 = vsel %vm688, %v682, %v576
        %v692 = vsel %vm688, %v683, %v578
        %v693 = vsel %vm688, %v684, %v580
        %v694 = vsel %vm688, %v685, %v582
        %v695 = vsel %vm688, %v686, %v584
        %v696 = vsel %vm688, %v687, %v586
        %vm697 = vcmask 457728
        %v698 = vsel %vm697, %v689, %v596
        %v699 = vsel %vm697, %v690, %v598
        %v700 = vsel %vm697, %v691, %v600
        %v701 = vsel %vm697, %v692, %v602
        %v702 = vsel %vm697, %v693, %v604
        %v703 = vsel %vm697, %v694, %v606
        %v704 = vsel %vm697, %v695, %v608
        %v705 = vsel %vm697, %v696, %v610
        %vm706 = vcmask 523264
        %v707 = vsel %vm706, %v698, %v620
        %v708 = vsel %vm706, %v699, %v622
        %v709 = vsel %vm706, %v700, %v624
        %v710 = vsel %vm706, %v701, %v626
        %v711 = vsel %vm706, %v702, %v628
        %v712 = vsel %vm706, %v703, %v630
        %v713 = vsel %vm706, %v704, %v632
        %v714 = vsel %vm706, %v705, %v634
        %v715 = vpack.c.bf16 %v708, %v707
        %v716 = vpack.c.bf16 %v710, %v709
        %v717 = vpack.c.bf16 %v712, %v711
        %v718 = vpack.c.bf16 %v714, %v713
        %v719 = vld [vmem:[%s3] sm:$0xf]
        %v720 = vld [vmem:[%s3 + $0x4] sm:$0xf]
        %v721 = vld [vmem:[%s3 + $0x8] sm:$0xf]
        %v722 = vld [vmem:[%s3 + $0xc] sm:$0xf]
        %v723 = vld [vmem:[%s3 + $0x10] sm:$0xf]
        %v724 = vld [vmem:[%s3 + $0x14] sm:$0xf]
        %v725 = vld [vmem:[%s3 + $0x18] sm:$0xf]
        %v726 = vld [vmem:[%s3 + $0x1c] sm:$0xf]
        %v727 = vld [vmem:[%s3 + $0x20] sm:$0xf]
        %v728 = vld [vmem:[%s4] sm:$0x1]
        %v730 = vperm.slane %v728, 0
        %v741 = vunpack.c.l.b16 %v719
        %v742 = vunpack.c.l.b16 %v720
        %v743 = vunpack.c.l.b16 %v721
        %v744 = vunpack.c.l.b16 %v722
        %v745 = vunpack.c.l.b16 %v723
        %v746 = vunpack.c.l.b16 %v724
        %v747 = vunpack.c.l.b16 %v725
        %v748 = vunpack.c.l.b16 %v726
        %v749 = vunpack.c.l.b16 %v727
        %v750 = vpack.c.b16 %v742, %v741
        %v751 = vpack.c.b16 %v744, %v743
        %v752 = vpack.c.b16 %v746, %v745
        %v753 = vpack.c.b16 %v748, %v747
        %v754 = vpack.c.b16 %v749, %v749
        %vm759 = vcmask 588800
        %v761 = vsel %vm759, %v715, 0
        %v764 = vsel %vm759, %v716, 0
        %v767 = vsel %vm759, %v717, 0
        %v770 = vsel %vm759, %v718, 0
        %vm772 = vcmask 1043456
        %v774 = vsel %vm772, %v754, 0
        %776 = vmatpush.bf16.msra.mxu0 0
        %777 = vmatpush.bf16.msra.mxu0 0
        %778 = vmatpush.bf16.msra.mxu0 0
        %779 = vmatpush.bf16.msra.mxu0 %v774
        %780 = vmatpush.bf16.msra.mxu0 %v753
        %781 = vmatpush.bf16.msra.mxu0 %v752
        %782 = vmatpush.bf16.msra.mxu0 %v751
        %783 = vmatpush.bf16.msra.mxu0 %v750
        %784 = vmatmul.bf16.gmra.mxu0 %v761
        %v785 = vpop.f32.mrf.mxu0
        %v786 = vadd.f32 %v730, %v785
        %v787 = vpop.f32.mrf.mxu0
        %v788 = vadd.f32 %v730, %v787
        %789 = vmatmul.bf16.gmra.mxu0 %v764
        %v790 = vpop.f32.mrf.mxu0
        %v791 = vadd.f32 %v730, %v790
        %v792 = vpop.f32.mrf.mxu0
        %v793 = vadd.f32 %v730, %v792
        %794 = vmatmul.bf16.gmra.mxu0 %v767
        %v795 = vpop.f32.mrf.mxu0
        %v796 = vadd.f32 %v730, %v795
        %v797 = vpop.f32.mrf.mxu0
        %v798 = vadd.f32 %v730, %v797
        %799 = vmatmul.bf16.gmra.mxu0 %v770
        %v800 = vpop.f32.mrf.mxu0
        %v801 = vadd.f32 %v730, %v800
        %v802 = vpop.f32.mrf.mxu0
        %v803 = vadd.f32 %v730, %v802
        %804 = vdwg.mxu0
        %v805 = vmax.f32 %v786, 0.0
        %v806 = vmax.f32 %v788, 0.0
        %v807 = vmax.f32 %v791, 0.0
        %v808 = vmax.f32 %v793, 0.0
        %v809 = vmax.f32 %v796, 0.0
        %v810 = vmax.f32 %v798, 0.0
        %v811 = vmax.f32 %v801, 0.0
        %v812 = vmax.f32 %v803, 0.0
        %v813 = vadd.f32 %v805, %v331
        %v814 = vadd.f32 %v806, %v332
        %v815 = vadd.f32 %v807, %v333
        %v816 = vadd.f32 %v808, %v334
        %v817 = vadd.f32 %v809, %v335
        %v818 = vadd.f32 %v810, %v336
        %v819 = vadd.f32 %v811, %v337
        %v820 = vadd.f32 %v812, %v338
        %v821 = vsel %vm643, %v813, 0.0
        %v822 = vsel %vm643, %v814, 0.0
        %v823 = vadd.f32 %v821, %v822
        %v824 = vsel %vm643, %v815, 0.0
        %v825 = vadd.f32 %v823, %v824
        %v826 = vsel %vm643, %v816, 0.0
        %v827 = vadd.f32 %v825, %v826
        %v828 = vsel %vm643, %v817, 0.0
        %v829 = vadd.f32 %v827, %v828
        %v830 = vsel %vm643, %v818, 0.0
        %v831 = vadd.f32 %v829, %v830
        %v832 = vsel %vm643, %v819, 0.0
        %v833 = vadd.f32 %v831, %v832
        %v834 = vsel %vm643, %v820, 0.0
        %v835 = vadd.f32 %v833, %v834
        %v836 = vrot.slane %v835, 4
        %v837 = vadd.f32 %v835, %v836
        %v838 = vrot.slane %v837, 2
        %v839 = vadd.f32 %v837, %v838
        %v840 = vrot.slane %v839, 1
        %v841 = vadd.f32 %v839, %v840
        %vm842 = vcmask 57344
        %843 = vst.msk [vmem:[%s281] sm:$0x1] %vm842, %v841
        %v844 = vmul.f32 %v813, %v813
        %v845 = vmul.f32 %v814, %v814
        %v846 = vmul.f32 %v815, %v815
        %v847 = vmul.f32 %v816, %v816
        %v848 = vmul.f32 %v817, %v817
        %v849 = vmul.f32 %v818, %v818
        %v850 = vmul.f32 %v819, %v819
        %v851 = vmul.f32 %v820, %v820
        %v852 = vsel %vm643, %v844, 0.0
        %v853 = vsel %vm643, %v845, 0.0
        %v854 = vadd.f32 %v852, %v853
        %v855 = vsel %vm643, %v846, 0.0
        %v856 = vadd.f32 %v854, %v855
        %v857 = vsel %vm643, %v847, 0.0
        %v858 = vadd.f32 %v856, %v857
        %v859 = vsel %vm643, %v848, 0.0
        %v860 = vadd.f32 %v858, %v859
        %v861 = vsel %vm643, %v849, 0.0
        %v862 = vadd.f32 %v860, %v861
        %v863 = vsel %vm643, %v850, 0.0
        %v864 = vadd.f32 %v862, %v863
        %v865 = vsel %vm643, %v851, 0.0
        %v866 = vadd.f32 %v864, %v865
        %v867 = vrot.slane %v866, 4
        %v868 = vadd.f32 %v866, %v867
        %v869 = vrot.slane %v868, 2
        %v870 = vadd.f32 %v868, %v869
        %v871 = vrot.slane %v870, 1
        %v872 = vadd.f32 %v870, %v871
        %873 = vst.msk [vmem:[%s287] sm:$0x1] %vm842, %v872
        %v874 = vpack.c.bf16 %v813, %v813
        %v875 = vpack.c.bf16 %v814, %v814
        %v876 = vpack.c.bf16 %v815, %v815
        %v877 = vpack.c.bf16 %v816, %v816
        %v878 = vpack.c.bf16 %v817, %v817
        %v879 = vpack.c.bf16 %v818, %v818
        %v880 = vpack.c.bf16 %v819, %v819
        %v881 = vpack.c.bf16 %v820, %v820
        %vm882 = vcmask 60416
        %883 = vst.msk [vmem:[%s297] sm:$0xf] %vm882, %v874
        %884 = vst.msk [vmem:[%s297 + $0x4] sm:$0xf] %vm882, %v875
        %885 = vst.msk [vmem:[%s297 + $0x8] sm:$0xf] %vm882, %v876
        %886 = vst.msk [vmem:[%s297 + $0xc] sm:$0xf] %vm882, %v877
        %887 = vst.msk [vmem:[%s297 + $0x10] sm:$0xf] %vm882, %v878
        %888 = vst.msk [vmem:[%s297 + $0x14] sm:$0xf] %vm882, %v879
        %889 = vst.msk [vmem:[%s297 + $0x18] sm:$0xf] %vm882, %v880
        %890 = vst.msk [vmem:[%s297 + $0x1c] sm:$0xf] %vm882, %v881
        %p891 = scmp.lt.s32.totalorder %s25, 1
        %s892 = scalar_select %p891, %s25, 1
        %s893 = smul.addr %s892, 8
        %s894 = smul.addr %s893, 4
        %s895 = scalar_lea.vmem %s5, %s894
        %s896 = sand.u32 %s169, 1
        %s897 = scalar_lea.sflag [#allocation3], %s896
        %s898 = sand.u32 %s169, 1
        %s899 = scalar_lea.vmem [#allocation2], %s898
        %s900 = sand.u32 %s195, 1
        %s901 = scalar_lea.sflag [#allocation5], %s900
        %s902 = sand.u32 %s195, 1
        %s903 = scalar_lea.vmem [#allocation4], %s902
        // Predicated region
        $region41: #{decoder_forward.5} parent=39 // pred_check
          %p904 = pneg %p153
        $region42: #{decoder_forward.5} parent=39 // pred_check_branch
          %906 = sbr.rel (%p904) target = $region44
        $region43: #{decoder_forward.5} parent=39 // pred_region
          _
        $region44: #{decoder_forward.5} parent=39 // pred_fallthru
          _
        // Predicated region
        $region45: #{decoder_forward.5} parent=39 // pred_check
          %p907 = pneg %p179
        $region46: #{decoder_forward.5} parent=39 // pred_check_branch
          %909 = sbr.rel (%p907) target = $region48
        $region47: #{decoder_forward.5} parent=39 // pred_region
          %911 = vsyncadd %s897, 0
          %s912 = scalar_lea.hbm %s6, %s25
          %s914 = sshll.u32 %s899, 4
          %s915 = int_to_ptr.vmem [resolvable:$true] %s914
          %s916 = sshll.u32 %s912, 4
          %s917 = int_to_ptr.hbm [resolvable:$true] %s916
          %919 = dma.vmem_to_hbm [thread:$0]  %s915, 16, %s917, %s897
        $region48: #{decoder_forward.5} parent=39 // pred_fallthru
          _
        // Predicated region
        $region49: #{decoder_forward.5} parent=39 // pred_check
          %p920 = pneg %p205
        $region50: #{decoder_forward.5} parent=39 // pred_check_branch
          %922 = sbr.rel (%p920) target = $region52
        $region51: #{decoder_forward.5} parent=39 // pred_region
          %924 = vsyncadd %s901, 0
          %s925 = scalar_lea.hbm %s7, %s25
          %s927 = sshll.u32 %s903, 4
          %s928 = int_to_ptr.vmem [resolvable:$true] %s927
          %s929 = sshll.u32 %s925, 4
          %s930 = int_to_ptr.hbm [resolvable:$true] %s929
          %932 = dma.vmem_to_hbm [thread:$0]  %s928, 16, %s930, %s901
        $region52: #{decoder_forward.5} parent=39 // pred_fallthru
          _
      $region40: #{decoder_forward.5} parent=5 // pred_fallthru
        _
      %p933 = scmp.le.s32.totalorder 2, %s20
      // Predicated region
      $region53: #{decoder_forward.5} parent=5 // pred_check
        %p934 = pneg %p933
      $region54: #{decoder_forward.5} parent=5 // pred_check_branch
        %936 = sbr.rel (%p934) target = $region56
      $region55: #{decoder_forward.5} parent=5 // pred_region
        %s937 = ssub.s32 %s20, 2
        // Predicated region
        $region57: #{decoder_forward.5} parent=55 // pred_check
          %p938 = pneg %p159
        $region58: #{decoder_forward.5} parent=55 // pred_check_branch
          %940 = sbr.rel (%p938) target = $region60
        $region59: #{decoder_forward.5} parent=55 // pred_region
          %p941 = scmp.lt.s32.totalorder %s26, 1
          %s942 = scalar_select %p941, %s26, 1
          %s943 = smul.addr %s942, 8
          %s944 = smul.addr %s943, 4
          %s945 = scalar_lea.vmem %s5, %s944
        $region60: #{decoder_forward.5} parent=55 // pred_fallthru
          _
        // Predicated region
        $region61: #{decoder_forward.5} parent=55 // pred_check
          %p946 = pneg %p185
        $region62: #{decoder_forward.5} parent=55 // pred_check_branch
          %948 = sbr.rel (%p946) target = $region64
        $region63: #{decoder_forward.5} parent=55 // pred_region
          %s949 = sand.u32 %s170, 1
          %s950 = scalar_lea.sflag [#allocation3], %s949
          %s951 = sand.u32 %s170, 1
          %s952 = scalar_lea.vmem [#allocation2], %s951
          %954 = dma.done %s950, 16
        $region64: #{decoder_forward.5} parent=55 // pred_fallthru
          _
        // Predicated region
        $region65: #{decoder_forward.5} parent=55 // pred_check
          %p955 = pneg %p211
        $region66: #{decoder_forward.5} parent=55 // pred_check_branch
          %957 = sbr.rel (%p955) target = $region68
        $region67: #{decoder_forward.5} parent=55 // pred_region
          %s958 = sand.u32 %s196, 1
          %s959 = scalar_lea.sflag [#allocation5], %s958
          %s960 = sand.u32 %s196, 1
          %s961 = scalar_lea.vmem [#allocation4], %s960
          %963 = dma.done %s959, 16
        $region68: #{decoder_forward.5} parent=55 // pred_fallthru
          _
      $region56: #{decoder_forward.5} parent=5 // pred_fallthru
        _
    $region6: #{decoder_forward.5} parent=1 // loop_footer
      %s24 = sadd.s32 1, %s20
    $region7: #{decoder_forward.5} parent=1 // loop_footer_branch
      %19 = sbr.rel target = $region3
    $region8: #{decoder_forward.5} parent=1 // loop_exit
      _
    %964 = vsyncpa [#allocation3], 1
    %s965 = scalar_lea.sflag [#allocation3], 1
    %966 = vsyncpa %s965, 1
    %967 = vsyncpa [#allocation5], 1
    %s968 = scalar_lea.sflag [#allocation5], 1
    %969 = vsyncpa %s968, 1

// kernel: decoder_forward.4
$region0: #{decoder_forward.4}
  #allocation0 [shape = 'u32[]', space=smem, size = 0x4, offset = 0x4, fixed_abs, tag = 'smem constant byte address 0x4 - core index']
  #allocation1 [shape = 'u32[72,128]{1,0:T(1,128)}', space=vmem, size = 0x9000, scoped, tag = 'internal scratch']
  %s0 = inlined_call_operand.vmem [shape: bf16[2,8,8,8], index: 0, kind: input, shape index: {}]
  %s1 = inlined_call_operand.vmem [shape: f32[1,8], index: 1, kind: input, shape index: {}]
  %s2 = inlined_call_operand.vmem [shape: f32[1,8], index: 2, kind: input, shape index: {}]
  %s3 = inlined_call_operand.vmem [shape: bf16[72,8], index: 3, kind: input, shape index: {}]
  %s4 = inlined_call_operand.vmem [shape: f32[1,8], index: 4, kind: input, shape index: {}]
  %s5 = inlined_call_operand.vmem [shape: bf16[2,8,8,8], index: 5, kind: output, shape index: {0}]
  %s6 = inlined_call_operand.vmem [shape: f32[2,1,8], index: 6, kind: output, shape index: {1}]
  %s7 = inlined_call_operand.vmem [shape: f32[2,1,8], index: 7, kind: output, shape index: {2}]
  %8 = xla_tuple %s5, %s6, %s7
  %s9 = sld [smem:[#allocation0]]
  $region69: #{decoder_forward.4} parent=0
    _
  %s11 = ssub.s32 1, %s9
  %s12 = scalar_select 0, %s11, %s9
  loop: start=0, step=1, limit=4
  $region2: #{decoder_forward.4} parent=0 // loop_pre_header
    _
  $region3: #{decoder_forward.4} parent=0 // loop_header
    %s14 = sphi 0, %s18
    %p15 = scmp.ge.s32.totalorder %s14, 4
    %s24 = sphi 0, %s26
    %s27 = sphi 0, %s24
    %s28 = sphi 0, %s27
    %s44 = sphi 0, %s28
    %s48 = sphi 0, %s48
    %s50 = sphi 0, %s48
    %s51 = sphi 0, %s50
    %s65 = sphi 0, %s51
    %s69 = sphi 0, %s69
    %s71 = sphi 0, %s69
    %s72 = sphi 0, %s71
    %s86 = sphi 0, %s72
    %s90 = sphi 0, %s90
    %s92 = sphi 0, %s90
    %s93 = sphi 0, %s92
    %s107 = sphi 0, %s93
    %s111 = sphi 0, %s111
    %s113 = sphi 0, %s111
    %s114 = sphi 0, %s113
    %s128 = sphi 0, %s114
    %s134 = sphi 0, %s136
    %s137 = sphi 0, %s134
    %s138 = sphi 0, %s137
    %s154 = sphi 0, %s138
    %s160 = sphi 0, %s162
    %s163 = sphi 0, %s160
    %s164 = sphi 0, %s163
    %s180 = sphi 0, %s164
    %s186 = sphi 0, %s188
    %s189 = sphi 0, %s186
    %s190 = sphi 0, %s189
    %s206 = sphi 0, %s190
  $region4: #{decoder_forward.4} parent=0 // loop_header_branch
    %17 = sbr.rel (%p15) target = $region8
  $region5: #{decoder_forward.4} parent=0 // loop_body
    %s19 = ssub.s32 %s14, 1
    %s20 = ssub.s32 %s14, 2
    %s21 = sadd.s32 %s14, 1
    %s22 = ssub.s32 %s14, %s21
    %p23 = scmp.eq.s32.totalorder %s22, 0
    %s25 = sadd.s32 %s24, 1
    %s26 = scalar_select %p23, %s24, %s25
    %p29 = pneg %p23
    %p30 = scmp.eq.s32.totalorder %s14, 1
    %p31 = por %p29, %p30
    %p32 = scmp.ne.s32.totalorder %s24, %s27
    %p33 = scmp.eq.s32.totalorder %s14, 0
    %p34 = por %p32, %p33
    %p35 = scmp.ne.s32.totalorder %s24, %s27
    %p36 = scmp.eq.s32.totalorder %s19, 1
    %p37 = por %p35, %p36
    %p38 = scmp.ne.s32.totalorder %s27, %s28
    %p39 = scmp.eq.s32.totalorder %s19, 0
    %p40 = por %p38, %p39
    %p41 = scmp.ne.s32.totalorder %s27, %s28
    %p42 = scmp.eq.s32.totalorder %s20, 1
    %p43 = por %p41, %p42
    %p45 = scmp.ne.s32.totalorder %s28, %s44
    %p46 = scmp.eq.s32.totalorder %s20, 0
    %p47 = por %p45, %p46
    %s49 = sadd.s32 %s48, 1
    %p52 = scmp.eq.s32.totalorder %s14, 1
    %p53 = scmp.ne.s32.totalorder %s48, %s50
    %p54 = scmp.eq.s32.totalorder %s14, 0
    %p55 = por %p53, %p54
    %p56 = scmp.ne.s32.totalorder %s48, %s50
    %p57 = scmp.eq.s32.totalorder %s19, 1
    %p58 = por %p56, %p57
    %p59 = scmp.ne.s32.totalorder %s50, %s51
    %p60 = scmp.eq.s32.totalorder %s19, 0
    %p61 = por %p59, %p60
    %p62 = scmp.ne.s32.totalorder %s50, %s51
    %p63 = scmp.eq.s32.totalorder %s20, 1
    %p64 = por %p62, %p63
    %p66 = scmp.ne.s32.totalorder %s51, %s65
    %p67 = scmp.eq.s32.totalorder %s20, 0
    %p68 = por %p66, %p67
    %s70 = sadd.s32 %s69, 1
    %p73 = scmp.eq.s32.totalorder %s14, 1
    %p74 = scmp.ne.s32.totalorder %s69, %s71
    %p75 = scmp.eq.s32.totalorder %s14, 0
    %p76 = por %p74, %p75
    %p77 = scmp.ne.s32.totalorder %s69, %s71
    %p78 = scmp.eq.s32.totalorder %s19, 1
    %p79 = por %p77, %p78
    %p80 = scmp.ne.s32.totalorder %s71, %s72
    %p81 = scmp.eq.s32.totalorder %s19, 0
    %p82 = por %p80, %p81
    %p83 = scmp.ne.s32.totalorder %s71, %s72
    %p84 = scmp.eq.s32.totalorder %s20, 1
    %p85 = por %p83, %p84
    %p87 = scmp.ne.s32.totalorder %s72, %s86
    %p88 = scmp.eq.s32.totalorder %s20, 0
    %p89 = por %p87, %p88
    %s91 = sadd.s32 %s90, 1
    %p94 = scmp.eq.s32.totalorder %s14, 1
    %p95 = scmp.ne.s32.totalorder %s90, %s92
    %p96 = scmp.eq.s32.totalorder %s14, 0
    %p97 = por %p95, %p96
    %p98 = scmp.ne.s32.totalorder %s90, %s92
    %p99 = scmp.eq.s32.totalorder %s19, 1
    %p100 = por %p98, %p99
    %p101 = scmp.ne.s32.totalorder %s92, %s93
    %p102 = scmp.eq.s32.totalorder %s19, 0
    %p103 = por %p101, %p102
    %p104 = scmp.ne.s32.totalorder %s92, %s93
    %p105 = scmp.eq.s32.totalorder %s20, 1
    %p106 = por %p104, %p105
    %p108 = scmp.ne.s32.totalorder %s93, %s107
    %p109 = scmp.eq.s32.totalorder %s20, 0
    %p110 = por %p108, %p109
    %s112 = sadd.s32 %s111, 1
    %p115 = scmp.eq.s32.totalorder %s14, 1
    %p116 = scmp.ne.s32.totalorder %s111, %s113
    %p117 = scmp.eq.s32.totalorder %s14, 0
    %p118 = por %p116, %p117
    %p119 = scmp.ne.s32.totalorder %s111, %s113
    %p120 = scmp.eq.s32.totalorder %s19, 1
    %p121 = por %p119, %p120
    %p122 = scmp.ne.s32.totalorder %s113, %s114
    %p123 = scmp.eq.s32.totalorder %s19, 0
    %p124 = por %p122, %p123
    %p125 = scmp.ne.s32.totalorder %s113, %s114
    %p126 = scmp.eq.s32.totalorder %s20, 1
    %p127 = por %p125, %p126
    %p129 = scmp.ne.s32.totalorder %s114, %s128
    %p130 = scmp.eq.s32.totalorder %s20, 0
    %p131 = por %p129, %p130
    %s132 = ssub.s32 %s14, %s21
    %p133 = scmp.eq.s32.totalorder %s132, 0
    %s135 = sadd.s32 %s134, 1
    %s136 = scalar_select %p133, %s134, %s135
    %p139 = pneg %p133
    %p140 = scmp.eq.s32.totalorder %s14, 1
    %p141 = por %p139, %p140
    %p142 = scmp.ne.s32.totalorder %s134, %s137
    %p143 = scmp.eq.s32.totalorder %s14, 0
    %p144 = por %p142, %p143
    %p145 = scmp.ne.s32.totalorder %s134, %s137
    %p146 = scmp.eq.s32.totalorder %s19, 1
    %p147 = por %p145, %p146
    %p148 = scmp.ne.s32.totalorder %s137, %s138
    %p149 = scmp.eq.s32.totalorder %s19, 0
    %p150 = por %p148, %p149
    %p151 = scmp.ne.s32.totalorder %s137, %s138
    %p152 = scmp.eq.s32.totalorder %s20, 1
    %p153 = por %p151, %p152
    %p155 = scmp.ne.s32.totalorder %s138, %s154
    %p156 = scmp.eq.s32.totalorder %s20, 0
    %p157 = por %p155, %p156
    %s158 = ssub.s32 %s14, %s21
    %p159 = scmp.eq.s32.totalorder %s158, 0
    %s161 = sadd.s32 %s160, 1
    %s162 = scalar_select %p159, %s160, %s161
    %p165 = pneg %p159
    %p166 = scmp.eq.s32.totalorder %s14, 1
    %p167 = por %p165, %p166
    %p168 = scmp.ne.s32.totalorder %s160, %s163
    %p169 = scmp.eq.s32.totalorder %s14, 0
    %p170 = por %p168, %p169
    %p171 = scmp.ne.s32.totalorder %s160, %s163
    %p172 = scmp.eq.s32.totalorder %s19, 1
    %p173 = por %p171, %p172
    %p174 = scmp.ne.s32.totalorder %s163, %s164
    %p175 = scmp.eq.s32.totalorder %s19, 0
    %p176 = por %p174, %p175
    %p177 = scmp.ne.s32.totalorder %s163, %s164
    %p178 = scmp.eq.s32.totalorder %s20, 1
    %p179 = por %p177, %p178
    %p181 = scmp.ne.s32.totalorder %s164, %s180
    %p182 = scmp.eq.s32.totalorder %s20, 0
    %p183 = por %p181, %p182
    %s184 = ssub.s32 %s14, %s21
    %p185 = scmp.eq.s32.totalorder %s184, 0
    %s187 = sadd.s32 %s186, 1
    %s188 = scalar_select %p185, %s186, %s187
    %p191 = pneg %p185
    %p192 = scmp.eq.s32.totalorder %s14, 1
    %p193 = por %p191, %p192
    %p194 = scmp.ne.s32.totalorder %s186, %s189
    %p195 = scmp.eq.s32.totalorder %s14, 0
    %p196 = por %p194, %p195
    %p197 = scmp.ne.s32.totalorder %s186, %s189
    %p198 = scmp.eq.s32.totalorder %s19, 1
    %p199 = por %p197, %p198
    %p200 = scmp.ne.s32.totalorder %s189, %s190
    %p201 = scmp.eq.s32.totalorder %s19, 0
    %p202 = por %p200, %p201
    %p203 = scmp.ne.s32.totalorder %s189, %s190
    %p204 = scmp.eq.s32.totalorder %s20, 1
    %p205 = por %p203, %p204
    %p207 = scmp.ne.s32.totalorder %s190, %s206
    %p208 = scmp.eq.s32.totalorder %s20, 0
    %p209 = por %p207, %p208
    %p210 = scmp.le.s32.totalorder 1, %s14
    %p211 = scmp.lt.s32.totalorder %s14, 3
    %p212 = pnand %p210, %p211
    %p213 = pneg %p212
    // Predicated region
    $region9: #{decoder_forward.4} parent=5 // pred_check
      _
    $region10: #{decoder_forward.4} parent=5 // pred_check_branch
      %215 = sbr.rel (%p212) target = $region12
    $region11: #{decoder_forward.4} parent=5 // pred_region
      %s216 = ssub.s32 %s14, 1
      // Predicated region
      $region13: #{decoder_forward.4} parent=11 // pred_check
        %p217 = pneg %p61
      $region14: #{decoder_forward.4} parent=11 // pred_check_branch
        %219 = sbr.rel (%p217) target = $region16
      $region15: #{decoder_forward.4} parent=11 // pred_region
        _
      $region16: #{decoder_forward.4} parent=11 // pred_fallthru
        _
      // Predicated region
      $region17: #{decoder_forward.4} parent=11 // pred_check
        %p220 = pneg %p82
      $region18: #{decoder_forward.4} parent=11 // pred_check_branch
        %222 = sbr.rel (%p220) target = $region20
      $region19: #{decoder_forward.4} parent=11 // pred_region
        _
      $region20: #{decoder_forward.4} parent=11 // pred_fallthru
        _
      // Predicated region
      $region21: #{decoder_forward.4} parent=11 // pred_check
        %p223 = pneg %p103
      $region22: #{decoder_forward.4} parent=11 // pred_check_branch
        %225 = sbr.rel (%p223) target = $region24
      $region23: #{decoder_forward.4} parent=11 // pred_region
        _
      $region24: #{decoder_forward.4} parent=11 // pred_fallthru
        _
      // Predicated region
      $region25: #{decoder_forward.4} parent=11 // pred_check
        %p226 = pneg %p124
      $region26: #{decoder_forward.4} parent=11 // pred_check_branch
        %228 = sbr.rel (%p226) target = $region28
      $region27: #{decoder_forward.4} parent=11 // pred_region
        _
      $region28: #{decoder_forward.4} parent=11 // pred_fallthru
        _
    $region12: #{decoder_forward.4} parent=5 // pred_fallthru
      _
    %p229 = scmp.lt.s32.totalorder %s14, 2
    // Predicated region
    $region29: #{decoder_forward.4} parent=5 // pred_check
      %p230 = pneg %p229
    $region30: #{decoder_forward.4} parent=5 // pred_check_branch
      %232 = sbr.rel (%p230) target = $region32
    $region31: #{decoder_forward.4} parent=5 // pred_region
      // Predicated region
      $region33: #{decoder_forward.4} parent=31 // pred_check
        %p233 = pneg %p34
      $region34: #{decoder_forward.4} parent=31 // pred_check_branch
        %235 = sbr.rel (%p233) target = $region36
      $region35: #{decoder_forward.4} parent=31 // pred_region
        %p236 = scmp.lt.s32.totalorder %s14, 1
        %s237 = scalar_select %p236, %s14, 1
        %s238 = smul.addr %s237, 8
        %s239 = smul.addr %s238, 4
        %s240 = scalar_lea.vmem %s0, %s239
      $region36: #{decoder_forward.4} parent=31 // pred_fallthru
        _
    $region32: #{decoder_forward.4} parent=5 // pred_fallthru
      _
    %p241 = scmp.le.s32.totalorder 1, %s14
    %p242 = scmp.lt.s32.totalorder %s14, 3
    %p243 = pnand %p241, %p242
    %p244 = pneg %p243
    // Predicated region
    $region37: #{decoder_forward.4} parent=5 // pred_check
      _
    $region38: #{decoder_forward.4} parent=5 // pred_check_branch
      %246 = sbr.rel (%p243) target = $region40
    $region39: #{decoder_forward.4} parent=5 // pred_region
      %s247 = ssub.s32 %s14, 1
      %p248 = scmp.lt.s32.totalorder %s19, 1
      %s249 = scalar_select %p248, %s19, 1
      %s250 = smul.addr %s249, 8
      %s251 = smul.addr %s250, 4
      %s252 = scalar_lea.vmem %s0, %s251
      %p253 = pneg %p40
      %p254 = pneg %p37
      %p255 = pneg %p61
      %p256 = pneg %p58
      %p257 = pneg %p82
      %p258 = pneg %p79
      %p259 = pneg %p103
      %p260 = pneg %p100
      %p261 = pneg %p124
      %p262 = pneg %p121
      %p263 = pneg %p150
      %p264 = pneg %p147
      %p265 = scmp.lt.s32.totalorder %s19, 1
      %s266 = scalar_select %p265, %s19, 1
      %s267 = smul.addr %s266, 8
      %s268 = smul.addr %s267, 4
      %s269 = scalar_lea.vmem %s5, %s268
      %p270 = pneg %p176
      %p271 = pneg %p173
      %p272 = scmp.lt.s32.totalorder %s19, 1
      %s273 = scalar_select %p272, %s19, 1
      %s274 = scalar_lea.vmem %s6, %s273
      %p275 = pneg %p202
      %p276 = pneg %p199
      %p277 = scmp.lt.s32.totalorder %s19, 1
      %s278 = scalar_select %p277, %s19, 1
      %s279 = scalar_lea.vmem %s7, %s278
      %p280 = scmp.lt.s32.totalorder %s19, 1
      %s281 = scalar_select %p280, %s19, 1
      %s282 = smul.addr %s281, 8
      %s283 = smul.addr %s282, 4
      %s284 = scalar_lea.vmem %s0, %s283
      %p285 = scmp.lt.s32.totalorder %s19, 1
      %s286 = scalar_select %p285, %s19, 1
      %s287 = smul.addr %s286, 8
      %s288 = smul.addr %s287, 4
      %s289 = scalar_lea.vmem %s5, %s288
      %p290 = scmp.lt.s32.totalorder %s19, 1
      %s291 = scalar_select %p290, %s19, 1
      %s292 = scalar_lea.vmem %s6, %s291
      %p293 = scmp.lt.s32.totalorder %s19, 1
      %s294 = scalar_select %p293, %s19, 1
      %s295 = scalar_lea.vmem %s7, %s294
      %v297 = vld [vmem:[%s284] sm:$0xf]
      %v298 = vld [vmem:[%s284 + $0x4] sm:$0xf]
      %v299 = vld [vmem:[%s284 + $0x8] sm:$0xf]
      %v300 = vld [vmem:[%s284 + $0xc] sm:$0xf]
      %v301 = vld [vmem:[%s284 + $0x10] sm:$0xf]
      %v302 = vld [vmem:[%s284 + $0x14] sm:$0xf]
      %v303 = vld [vmem:[%s284 + $0x18] sm:$0xf]
      %v304 = vld [vmem:[%s284 + $0x1c] sm:$0xf]
      %v305 = vunpack.c.l.bf16 %v297
      %v306 = vunpack.c.l.bf16 %v298
      %v307 = vunpack.c.l.bf16 %v299
      %v308 = vunpack.c.l.bf16 %v300
      %v309 = vunpack.c.l.bf16 %v301
      %v310 = vunpack.c.l.bf16 %v302
      %v311 = vunpack.c.l.bf16 %v303
      %v312 = vunpack.c.l.bf16 %v304
      %v313 = vld [vmem:[%s1] sm:$0x1]
      %v314 = vld [vmem:[%s2] sm:$0x1]
      %v316 = vperm.slane %v313, 0
      %v318 = vmul.f32 %v305, %v316
      %v319 = vmul.f32 %v306, %v316
      %v320 = vmul.f32 %v307, %v316
      %v321 = vmul.f32 %v308, %v316
      %v322 = vmul.f32 %v309, %v316
      %v323 = vmul.f32 %v310, %v316
      %v324 = vmul.f32 %v311, %v316
      %v325 = vmul.f32 %v312, %v316
      %v327 = vperm.slane %v314, 0
      %v329 = vadd.f32 %v318, %v327
      %v330 = vadd.f32 %v319, %v327
      %v331 = vadd.f32 %v320, %v327
      %v332 = vadd.f32 %v321, %v327
      %v333 = vadd.f32 %v322, %v327
      %v334 = vadd.f32 %v323, %v327
      %v335 = vadd.f32 %v324, %v327
      %v336 = vadd.f32 %v325, %v327
      %v345 = vrot.slane %v329, 7
      %v346 = vrot.slane %v330, 7
      %v347 = vrot.slane %v331, 7
      %v348 = vrot.slane %v332, 7
      %v349 = vrot.slane %v333, 7
      %v350 = vrot.slane %v334, 7
      %v351 = vrot.slane %v335, 7
      %v352 = vrot.slane %v336, 7
      %vm361 = vcmask 1040384
      %v362 = vsel %vm361, 0.0, %v345
      %v363 = vsel %vm361, 0.0, %v346
      %v364 = vsel %vm361, 0.0, %v347
      %v365 = vsel %vm361, 0.0, %v348
      %v366 = vsel %vm361, 0.0, %v349
      %v367 = vsel %vm361, 0.0, %v350
      %v368 = vsel %vm361, 0.0, %v351
      %v369 = vsel %vm361, 0.0, %v352
      %v370 = vsel %vm361, %v345, 0.0
      %v371 = vsel %vm361, %v346, 0.0
      %v372 = vsel %vm361, %v347, 0.0
      %v373 = vsel %vm361, %v348, 0.0
      %v374 = vsel %vm361, %v349, 0.0
      %v375 = vsel %vm361, %v350, 0.0
      %v376 = vsel %vm361, %v351, 0.0
      %v377 = vsel %vm361, %v352, 0.0
      %vm393 = vcmask 1046528
      %v394 = vrot.slane 0.0, 1
      %v395 = vsel %vm393, %v394, %v394
      %v396 = vrot.slane %v362, 1
      %v397 = vrot.slane %v370, 1
      %v398 = vsel %vm393, %v396, %v397
      %v399 = vrot.slane %v363, 1
      %v400 = vrot.slane %v371, 1
      %v401 = vsel %vm393, %v399, %v400
      %v402 = vrot.slane %v364, 1
      %v403 = vrot.slane %v372, 1
      %v404 = vsel %vm393, %v402, %v403
      %v405 = vrot.slane %v365, 1
      %v406 = vrot.slane %v373, 1
      %v407 = vsel %vm393, %v405, %v406
      %v408 = vrot.slane %v366, 1
      %v409 = vrot.slane %v374, 1
      %v410 = vsel %vm393, %v408, %v409
      %v411 = vrot.slane %v367, 1
      %v412 = vrot.slane %v375, 1
      %v413 = vsel %vm393, %v411, %v412
      %v414 = vrot.slane %v368, 1
      %v415 = vrot.slane %v376, 1
      %v416 = vsel %vm393, %v414, %v415
      %417 = vrot.lane.b32.xlu0 %v395, 8
      %v418 = vpop.permute.xlu0 %417
      %419 = vrot.lane.b32.xlu0 %v398, 8
      %v420 = vpop.permute.xlu0 %419
      %421 = vrot.lane.b32.xlu0 %v401, 8
      %v422 = vpop.permute.xlu0 %421
      %423 = vrot.lane.b32.xlu0 %v404, 8
      %v424 = vpop.permute.xlu0 %423
      %425 = vrot.lane.b32.xlu0 %v407, 8
      %v426 = vpop.permute.xlu0 %425
      %427 = vrot.lane.b32.xlu0 %v410, 8
      %v428 = vpop.permute.xlu0 %427
      %429 = vrot.lane.b32.xlu0 %v413, 8
      %v430 = vpop.permute.xlu0 %429
      %431 = vrot.lane.b32.xlu0 %v416, 8
      %v432 = vpop.permute.xlu0 %431
      %vm441 = vcmask 1045504
      %v442 = vrot.slane 0.0, 2
      %v443 = vsel %vm441, %v442, %v442
      %v444 = vrot.slane %v362, 2
      %v445 = vrot.slane %v370, 2
      %v446 = vsel %vm441, %v444, %v445
      %v447 = vrot.slane %v363, 2
      %v448 = vrot.slane %v371, 2
      %v449 = vsel %vm441, %v447, %v448
      %v450 = vrot.slane %v364, 2
      %v451 = vrot.slane %v372, 2
      %v452 = vsel %vm441, %v450, %v451
      %v453 = vrot.slane %v365, 2
      %v454 = vrot.slane %v373, 2
      %v455 = vsel %vm441, %v453, %v454
      %v456 = vrot.slane %v366, 2
      %v457 = vrot.slane %v374, 2
      %v458 = vsel %vm441, %v456, %v457
      %v459 = vrot.slane %v367, 2
      %v460 = vrot.slane %v375, 2
      %v461 = vsel %vm441, %v459, %v460
      %v462 = vrot.slane %v368, 2
      %v463 = vrot.slane %v376, 2
      %v464 = vsel %vm441, %v462, %v463
      %465 = vrot.lane.b32.xlu0 %v443, 16
      %v466 = vpop.permute.xlu0 %465
      %467 = vrot.lane.b32.xlu0 %v446, 16
      %v468 = vpop.permute.xlu0 %467
      %469 = vrot.lane.b32.xlu0 %v449, 16
      %v470 = vpop.permute.xlu0 %469
      %471 = vrot.lane.b32.xlu0 %v452, 16
      %v472 = vpop.permute.xlu0 %471
      %473 = vrot.lane.b32.xlu0 %v455, 16
      %v474 = vpop.permute.xlu0 %473
      %475 = vrot.lane.b32.xlu0 %v458, 16
      %v476 = vpop.permute.xlu0 %475
      %477 = vrot.lane.b32.xlu0 %v461, 16
      %v478 = vpop.permute.xlu0 %477
      %479 = vrot.lane.b32.xlu0 %v464, 16
      %v480 = vpop.permute.xlu0 %479
      %490 = vrot.lane.b32.xlu0 %v362, 24
      %v491 = vpop.permute.xlu0 %490
      %492 = vrot.lane.b32.xlu0 %v363, 24
      %v493 = vpop.permute.xlu0 %492
      %494 = vrot.lane.b32.xlu0 %v364, 24
      %v495 = vpop.permute.xlu0 %494
      %496 = vrot.lane.b32.xlu0 %v365, 24
      %v497 = vpop.permute.xlu0 %496
      %498 = vrot.lane.b32.xlu0 %v366, 24
      %v499 = vpop.permute.xlu0 %498
      %500 = vrot.lane.b32.xlu0 %v367, 24
      %v501 = vpop.permute.xlu0 %500
      %502 = vrot.lane.b32.xlu0 %v368, 24
      %v503 = vpop.permute.xlu0 %502
      %504 = vrot.lane.b32.xlu0 %v369, 24
      %v505 = vpop.permute.xlu0 %504
      %v515 = vrot.slane %v369, 1
      %v516 = vrot.slane %v377, 1
      %v517 = vsel %vm393, %v515, %v516
      %518 = vrot.lane.b32.xlu0 %v398, 32
      %v519 = vpop.permute.xlu0 %518
      %520 = vrot.lane.b32.xlu0 %v401, 32
      %v521 = vpop.permute.xlu0 %520
      %522 = vrot.lane.b32.xlu0 %v404, 32
      %v523 = vpop.permute.xlu0 %522
      %524 = vrot.lane.b32.xlu0 %v407, 32
      %v525 = vpop.permute.xlu0 %524
      %526 = vrot.lane.b32.xlu0 %v410, 32
      %v527 = vpop.permute.xlu0 %526
      %528 = vrot.lane.b32.xlu0 %v413, 32
      %v529 = vpop.permute.xlu0 %528
      %530 = vrot.lane.b32.xlu0 %v416, 32
      %v531 = vpop.permute.xlu0 %530
      %532 = vrot.lane.b32.xlu0 %v517, 32
      %v533 = vpop.permute.xlu0 %532
      %v542 = vrot.slane %v369, 2
      %v543 = vrot.slane %v377, 2
      %v544 = vsel %vm441, %v542, %v543
      %545 = vrot.lane.b32.xlu0 %v446, 40
      %v546 = vpop.permute.xlu0 %545
      %547 = vrot.lane.b32.xlu0 %v449, 40
      %v548 = vpop.permute.xlu0 %547
      %549 = vrot.lane.b32.xlu0 %v452, 40
      %v550 = vpop.permute.xlu0 %549
      %551 = vrot.lane.b32.xlu0 %v455, 40
      %v552 = vpop.permute.xlu0 %551
      %553 = vrot.lane.b32.xlu0 %v458, 40
      %v554 = vpop.permute.xlu0 %553
      %555 = vrot.lane.b32.xlu0 %v461, 40
      %v556 = vpop.permute.xlu0 %555
      %557 = vrot.lane.b32.xlu0 %v464, 40
      %v558 = vpop.permute.xlu0 %557
      %559 = vrot.lane.b32.xlu0 %v544, 40
      %v560 = vpop.permute.xlu0 %559
      %569 = vrot.lane.b32.xlu0 %v363, 48
      %v570 = vpop.permute.xlu0 %569
      %571 = vrot.lane.b32.xlu0 %v364, 48
      %v572 = vpop.permute.xlu0 %571
      %573 = vrot.lane.b32.xlu0 %v365, 48
      %v574 = vpop.permute.xlu0 %573
      %575 = vrot.lane.b32.xlu0 %v366, 48
      %v576 = vpop.permute.xlu0 %575
      %577 = vrot.lane.b32.xlu0 %v367, 48
      %v578 = vpop.permute.xlu0 %577
      %579 = vrot.lane.b32.xlu0 %v368, 48
      %v580 = vpop.permute.xlu0 %579
      %581 = vrot.lane.b32.xlu0 %v369, 48
      %v582 = vpop.permute.xlu0 %581
      %583 = vrot.lane.b32.xlu0 0.0, 48
      %v584 = vpop.permute.xlu0 %583
      %593 = vrot.lane.b32.xlu0 %v401, 56
      %v594 = vpop.permute.xlu0 %593
      %595 = vrot.lane.b32.xlu0 %v404, 56
      %v596 = vpop.permute.xlu0 %595
      %597 = vrot.lane.b32.xlu0 %v407, 56
      %v598 = vpop.permute.xlu0 %597
      %599 = vrot.lane.b32.xlu0 %v410, 56
      %v600 = vpop.permute.xlu0 %599
      %601 = vrot.lane.b32.xlu0 %v413, 56
      %v602 = vpop.permute.xlu0 %601
      %603 = vrot.lane.b32.xlu0 %v416, 56
      %v604 = vpop.permute.xlu0 %603
      %605 = vrot.lane.b32.xlu0 %v517, 56
      %v606 = vpop.permute.xlu0 %605
      %607 = vrot.lane.b32.xlu0 %v395, 56
      %v608 = vpop.permute.xlu0 %607
      %617 = vrot.lane.b32.xlu0 %v449, 64
      %v618 = vpop.permute.xlu0 %617
      %619 = vrot.lane.b32.xlu0 %v452, 64
      %v620 = vpop.permute.xlu0 %619
      %621 = vrot.lane.b32.xlu0 %v455, 64
      %v622 = vpop.permute.xlu0 %621
      %623 = vrot.lane.b32.xlu0 %v458, 64
      %v624 = vpop.permute.xlu0 %623
      %625 = vrot.lane.b32.xlu0 %v461, 64
      %v626 = vpop.permute.xlu0 %625
      %627 = vrot.lane.b32.xlu0 %v464, 64
      %v628 = vpop.permute.xlu0 %627
      %629 = vrot.lane.b32.xlu0 %v544, 64
      %v630 = vpop.permute.xlu0 %629
      %631 = vrot.lane.b32.xlu0 %v443, 64
      %v632 = vpop.permute.xlu0 %631
      %vm641 = vcmask 64512
      %v642 = vsel %vm641, 0.0, %v418
      %v643 = vsel %vm641, %v362, %v420
      %v644 = vsel %vm641, %v363, %v422
      %v645 = vsel %vm641, %v364, %v424
      %v646 = vsel %vm641, %v365, %v426
      %v647 = vsel %vm641, %v366, %v428
      %v648 = vsel %vm641, %v367, %v430
      %v649 = vsel %vm641, %v368, %v432
      %vm650 = vcmask 130048
      %v651 = vsel %vm650, %v642, %v466
      %v652 = vsel %vm650, %v643, %v468
      %v653 = vsel %vm650, %v644, %v470
      %v654 = vsel %vm650, %v645, %v472
      %v655 = vsel %vm650, %v646, %v474
      %v656 = vsel %vm650, %v647, %v476
      %v657 = vsel %vm650, %v648, %v478
      %v658 = vsel %vm650, %v649, %v480
      %vm659 = vcmask 195584
      %v660 = vsel %vm659, %v651, %v491
      %v661 = vsel %vm659, %v652, %v493
      %v662 = vsel %vm659, %v653, %v495
      %v663 = vsel %vm659, %v654, %v497
      %v664 = vsel %vm659, %v655, %v499
      %v665 = vsel %vm659, %v656, %v501
      %v666 = vsel %vm659, %v657, %v503
      %v667 = vsel %vm659, %v658, %v505
      %vm668 = vcmask 261120
      %v669 = vsel %vm668, %v660, %v519
      %v670 = vsel %vm668, %v661, %v521
      %v671 = vsel %vm668, %v662, %v523
      %v672 = vsel %vm668, %v663, %v525
      %v673 = vsel %vm668, %v664, %v527
      %v674 = vsel %vm668, %v665, %v529
      %v675 = vsel %vm668, %v666, %v531
      %v676 = vsel %vm668, %v667, %v533
      %vm677 = vcmask 326656
      %v678 = vsel %vm677, %v669, %v546
      %v679 = vsel %vm677, %v670, %v548
      %v680 = vsel %vm677, %v671, %v550
      %v681 = vsel %vm677, %v672, %v552
      %v682 = vsel %vm677, %v673, %v554
      %v683 = vsel %vm677, %v674, %v556
      %v684 = vsel %vm677, %v675, %v558
      %v685 = vsel %vm677, %v676, %v560
      %vm686 = vcmask 392192
      %v687 = vsel %vm686, %v678, %v570
      %v688 = vsel %vm686, %v679, %v572
      %v689 = vsel %vm686, %v680, %v574
      %v690 = vsel %vm686, %v681, %v576
      %v691 = vsel %vm686, %v682, %v578
      %v692 = vsel %vm686, %v683, %v580
      %v693 = vsel %vm686, %v684, %v582
      %v694 = vsel %vm686, %v685, %v584
      %vm695 = vcmask 457728
      %v696 = vsel %vm695, %v687, %v594
      %v697 = vsel %vm695, %v688, %v596
      %v698 = vsel %vm695, %v689, %v598
      %v699 = vsel %vm695, %v690, %v600
      %v700 = vsel %vm695, %v691, %v602
      %v701 = vsel %vm695, %v692, %v604
      %v702 = vsel %vm695, %v693, %v606
      %v703 = vsel %vm695, %v694, %v608
      %vm704 = vcmask 523264
      %v705 = vsel %vm704, %v696, %v618
      %v706 = vsel %vm704, %v697, %v620
      %v707 = vsel %vm704, %v698, %v622
      %v708 = vsel %vm704, %v699, %v624
      %v709 = vsel %vm704, %v700, %v626
      %v710 = vsel %vm704, %v701, %v628
      %v711 = vsel %vm704, %v702, %v630
      %v712 = vsel %vm704, %v703, %v632
      %v713 = vpack.c.bf16 %v706, %v705
      %v714 = vpack.c.bf16 %v708, %v707
      %v715 = vpack.c.bf16 %v710, %v709
      %v716 = vpack.c.bf16 %v712, %v711
      %v717 = vld [vmem:[%s3] sm:$0xf]
      %v718 = vld [vmem:[%s3 + $0x4] sm:$0xf]
      %v719 = vld [vmem:[%s3 + $0x8] sm:$0xf]
      %v720 = vld [vmem:[%s3 + $0xc] sm:$0xf]
      %v721 = vld [vmem:[%s3 + $0x10] sm:$0xf]
      %v722 = vld [vmem:[%s3 + $0x14] sm:$0xf]
      %v723 = vld [vmem:[%s3 + $0x18] sm:$0xf]
      %v724 = vld [vmem:[%s3 + $0x1c] sm:$0xf]
      %v725 = vld [vmem:[%s3 + $0x20] sm:$0xf]
      %v726 = vld [vmem:[%s4] sm:$0x1]
      %v728 = vperm.slane %v726, 0
      %v739 = vunpack.c.l.b16 %v717
      %v740 = vunpack.c.l.b16 %v718
      %v741 = vunpack.c.l.b16 %v719
      %v742 = vunpack.c.l.b16 %v720
      %v743 = vunpack.c.l.b16 %v721
      %v744 = vunpack.c.l.b16 %v722
      %v745 = vunpack.c.l.b16 %v723
      %v746 = vunpack.c.l.b16 %v724
      %v747 = vunpack.c.l.b16 %v725
      %v748 = vpack.c.b16 %v740, %v739
      %v749 = vpack.c.b16 %v742, %v741
      %v750 = vpack.c.b16 %v744, %v743
      %v751 = vpack.c.b16 %v746, %v745
      %v752 = vpack.c.b16 %v747, %v747
      %vm757 = vcmask 588800
      %v759 = vsel %vm757, %v713, 0
      %v762 = vsel %vm757, %v714, 0
      %v765 = vsel %vm757, %v715, 0
      %v768 = vsel %vm757, %v716, 0
      %vm770 = vcmask 1043456
      %v772 = vsel %vm770, %v752, 0
      %774 = vmatpush.bf16.msra.mxu0 0
      %775 = vmatpush.bf16.msra.mxu0 0
      %776 = vmatpush.bf16.msra.mxu0 0
      %777 = vmatpush.bf16.msra.mxu0 %v772
      %778 = vmatpush.bf16.msra.mxu0 %v751
      %779 = vmatpush.bf16.msra.mxu0 %v750
      %780 = vmatpush.bf16.msra.mxu0 %v749
      %781 = vmatpush.bf16.msra.mxu0 %v748
      %782 = vmatmul.bf16.gmra.mxu0 %v759
      %v783 = vpop.f32.mrf.mxu0
      %v784 = vadd.f32 %v728, %v783
      %v785 = vpop.f32.mrf.mxu0
      %v786 = vadd.f32 %v728, %v785
      %787 = vmatmul.bf16.gmra.mxu0 %v762
      %v788 = vpop.f32.mrf.mxu0
      %v789 = vadd.f32 %v728, %v788
      %v790 = vpop.f32.mrf.mxu0
      %v791 = vadd.f32 %v728, %v790
      %792 = vmatmul.bf16.gmra.mxu0 %v765
      %v793 = vpop.f32.mrf.mxu0
      %v794 = vadd.f32 %v728, %v793
      %v795 = vpop.f32.mrf.mxu0
      %v796 = vadd.f32 %v728, %v795
      %797 = vmatmul.bf16.gmra.mxu0 %v768
      %v798 = vpop.f32.mrf.mxu0
      %v799 = vadd.f32 %v728, %v798
      %v800 = vpop.f32.mrf.mxu0
      %v801 = vadd.f32 %v728, %v800
      %802 = vdwg.mxu0
      %v803 = vmax.f32 %v784, 0.0
      %v804 = vmax.f32 %v786, 0.0
      %v805 = vmax.f32 %v789, 0.0
      %v806 = vmax.f32 %v791, 0.0
      %v807 = vmax.f32 %v794, 0.0
      %v808 = vmax.f32 %v796, 0.0
      %v809 = vmax.f32 %v799, 0.0
      %v810 = vmax.f32 %v801, 0.0
      %v811 = vadd.f32 %v803, %v329
      %v812 = vadd.f32 %v804, %v330
      %v813 = vadd.f32 %v805, %v331
      %v814 = vadd.f32 %v806, %v332
      %v815 = vadd.f32 %v807, %v333
      %v816 = vadd.f32 %v808, %v334
      %v817 = vadd.f32 %v809, %v335
      %v818 = vadd.f32 %v810, %v336
      %v819 = vsel %vm641, %v811, 0.0
      %v820 = vsel %vm641, %v812, 0.0
      %v821 = vadd.f32 %v819, %v820
      %v822 = vsel %vm641, %v813, 0.0
      %v823 = vadd.f32 %v821, %v822
      %v824 = vsel %vm641, %v814, 0.0
      %v825 = vadd.f32 %v823, %v824
      %v826 = vsel %vm641, %v815, 0.0
      %v827 = vadd.f32 %v825, %v826
      %v828 = vsel %vm641, %v816, 0.0
      %v829 = vadd.f32 %v827, %v828
      %v830 = vsel %vm641, %v817, 0.0
      %v831 = vadd.f32 %v829, %v830
      %v832 = vsel %vm641, %v818, 0.0
      %v833 = vadd.f32 %v831, %v832
      %v834 = vrot.slane %v833, 4
      %v835 = vadd.f32 %v833, %v834
      %v836 = vrot.slane %v835, 2
      %v837 = vadd.f32 %v835, %v836
      %v838 = vrot.slane %v837, 1
      %v839 = vadd.f32 %v837, %v838
      %vm840 = vcmask 57344
      %841 = vst.msk [vmem:[%s292] sm:$0x1] %vm840, %v839
      %v842 = vmul.f32 %v811, %v811
      %v843 = vmul.f32 %v812, %v812
      %v844 = vmul.f32 %v813, %v813
      %v845 = vmul.f32 %v814, %v814
      %v846 = vmul.f32 %v815, %v815
      %v847 = vmul.f32 %v816, %v816
      %v848 = vmul.f32 %v817, %v817
      %v849 = vmul.f32 %v818, %v818
      %v850 = vsel %vm641, %v842, 0.0
      %v851 = vsel %vm641, %v843, 0.0
      %v852 = vadd.f32 %v850, %v851
      %v853 = vsel %vm641, %v844, 0.0
      %v854 = vadd.f32 %v852, %v853
      %v855 = vsel %vm641, %v845, 0.0
      %v856 = vadd.f32 %v854, %v855
      %v857 = vsel %vm641, %v846, 0.0
      %v858 = vadd.f32 %v856, %v857
      %v859 = vsel %vm641, %v847, 0.0
      %v860 = vadd.f32 %v858, %v859
      %v861 = vsel %vm641, %v848, 0.0
      %v862 = vadd.f32 %v860, %v861
      %v863 = vsel %vm641, %v849, 0.0
      %v864 = vadd.f32 %v862, %v863
      %v865 = vrot.slane %v864, 4
      %v866 = vadd.f32 %v864, %v865
      %v867 = vrot.slane %v866, 2
      %v868 = vadd.f32 %v866, %v867
      %v869 = vrot.slane %v868, 1
      %v870 = vadd.f32 %v868, %v869
      %871 = vst.msk [vmem:[%s295] sm:$0x1] %vm840, %v870
      %v872 = vpack.c.bf16 %v811, %v811
      %v873 = vpack.c.bf16 %v812, %v812
      %v874 = vpack.c.bf16 %v813, %v813
      %v875 = vpack.c.bf16 %v814, %v814
      %v876 = vpack.c.bf16 %v815, %v815
      %v877 = vpack.c.bf16 %v816, %v816
      %v878 = vpack.c.bf16 %v817, %v817
      %v879 = vpack.c.bf16 %v818, %v818
      %vm880 = vcmask 60416
      %881 = vst.msk [vmem:[%s289] sm:$0xf] %vm880, %v872
      %882 = vst.msk [vmem:[%s289 + $0x4] sm:$0xf] %vm880, %v873
      %883 = vst.msk [vmem:[%s289 + $0x8] sm:$0xf] %vm880, %v874
      %884 = vst.msk [vmem:[%s289 + $0xc] sm:$0xf] %vm880, %v875
      %885 = vst.msk [vmem:[%s289 + $0x10] sm:$0xf] %vm880, %v876
      %886 = vst.msk [vmem:[%s289 + $0x14] sm:$0xf] %vm880, %v877
      %887 = vst.msk [vmem:[%s289 + $0x18] sm:$0xf] %vm880, %v878
      %888 = vst.msk [vmem:[%s289 + $0x1c] sm:$0xf] %vm880, %v879
      %p889 = scmp.lt.s32.totalorder %s19, 1
      %s890 = scalar_select %p889, %s19, 1
      %s891 = smul.addr %s890, 8
      %s892 = smul.addr %s891, 4
      %s893 = scalar_lea.vmem %s5, %s892
      %p894 = scmp.lt.s32.totalorder %s19, 1
      %s895 = scalar_select %p894, %s19, 1
      %s896 = scalar_lea.vmem %s6, %s895
      %p897 = scmp.lt.s32.totalorder %s19, 1
      %s898 = scalar_select %p897, %s19, 1
      %s899 = scalar_lea.vmem %s7, %s898
      // Predicated region
      $region41: #{decoder_forward.4} parent=39 // pred_check
        %p900 = pneg %p147
      $region42: #{decoder_forward.4} parent=39 // pred_check_branch
        %902 = sbr.rel (%p900) target = $region44
      $region43: #{decoder_forward.4} parent=39 // pred_region
        _
      $region44: #{decoder_forward.4} parent=39 // pred_fallthru
        _
      // Predicated region
      $region45: #{decoder_forward.4} parent=39 // pred_check
        %p903 = pneg %p173
      $region46: #{decoder_forward.4} parent=39 // pred_check_branch
        %905 = sbr.rel (%p903) target = $region48
      $region47: #{decoder_forward.4} parent=39 // pred_region
        _
      $region48: #{decoder_forward.4} parent=39 // pred_fallthru
        _
      // Predicated region
      $region49: #{decoder_forward.4} parent=39 // pred_check
        %p906 = pneg %p199
      $region50: #{decoder_forward.4} parent=39 // pred_check_branch
        %908 = sbr.rel (%p906) target = $region52
      $region51: #{decoder_forward.4} parent=39 // pred_region
        _
      $region52: #{decoder_forward.4} parent=39 // pred_fallthru
        _
    $region40: #{decoder_forward.4} parent=5 // pred_fallthru
      _
    %p909 = scmp.le.s32.totalorder 2, %s14
    // Predicated region
    $region53: #{decoder_forward.4} parent=5 // pred_check
      %p910 = pneg %p909
    $region54: #{decoder_forward.4} parent=5 // pred_check_branch
      %912 = sbr.rel (%p910) target = $region56
    $region55: #{decoder_forward.4} parent=5 // pred_region
      %s913 = ssub.s32 %s14, 2
      // Predicated region
      $region57: #{decoder_forward.4} parent=55 // pred_check
        %p914 = pneg %p153
      $region58: #{decoder_forward.4} parent=55 // pred_check_branch
        %916 = sbr.rel (%p914) target = $region60
      $region59: #{decoder_forward.4} parent=55 // pred_region
        %p917 = scmp.lt.s32.totalorder %s20, 1
        %s918 = scalar_select %p917, %s20, 1
        %s919 = smul.addr %s918, 8
        %s920 = smul.addr %s919, 4
        %s921 = scalar_lea.vmem %s5, %s920
      $region60: #{decoder_forward.4} parent=55 // pred_fallthru
        _
      // Predicated region
      $region61: #{decoder_forward.4} parent=55 // pred_check
        %p922 = pneg %p179
      $region62: #{decoder_forward.4} parent=55 // pred_check_branch
        %924 = sbr.rel (%p922) target = $region64
      $region63: #{decoder_forward.4} parent=55 // pred_region
        %p925 = scmp.lt.s32.totalorder %s20, 1
        %s926 = scalar_select %p925, %s20, 1
        %s927 = scalar_lea.vmem %s6, %s926
      $region64: #{decoder_forward.4} parent=55 // pred_fallthru
        _
      // Predicated region
      $region65: #{decoder_forward.4} parent=55 // pred_check
        %p928 = pneg %p205
      $region66: #{decoder_forward.4} parent=55 // pred_check_branch
        %930 = sbr.rel (%p928) target = $region68
      $region67: #{decoder_forward.4} parent=55 // pred_region
        %p931 = scmp.lt.s32.totalorder %s20, 1
        %s932 = scalar_select %p931, %s20, 1
        %s933 = scalar_lea.vmem %s7, %s932
      $region68: #{decoder_forward.4} parent=55 // pred_fallthru
        _
    $region56: #{decoder_forward.4} parent=5 // pred_fallthru
      _
  $region6: #{decoder_forward.4} parent=0 // loop_footer
    %s18 = sadd.s32 1, %s14
  $region7: #{decoder_forward.4} parent=0 // loop_footer_branch
    %13 = sbr.rel target = $region3
  $region8: #{decoder_forward.4} parent=0 // loop_exit
    _

// kernel: decoder_forward.6
$region0: #{decoder_forward.6}
  #allocation0 [shape = 'u32[]', space=smem, size = 0x4, offset = 0x4, fixed_abs, tag = 'smem constant byte address 0x4 - core index']
  #allocation1 [shape = 'u32[72,128]{1,0:T(1,128)}', space=vmem, size = 0x9000, scoped, tag = 'internal scratch']
  %s0 = inlined_call_operand.vmem [shape: bf16[2,8,8,8], index: 0, kind: input, shape index: {}]
  %s1 = inlined_call_operand.vmem [shape: f32[1,8], index: 1, kind: input, shape index: {}]
  %s2 = inlined_call_operand.vmem [shape: f32[1,8], index: 2, kind: input, shape index: {}]
  %s3 = inlined_call_operand.vmem [shape: bf16[72,64], index: 3, kind: input, shape index: {}]
  %s4 = inlined_call_operand.vmem [shape: f32[1,64], index: 4, kind: input, shape index: {}]
  %s5 = inlined_call_operand.vmem [shape: bf16[2,8,8,64], index: 5, kind: output, shape index: {0}]
  %s6 = inlined_call_operand.vmem [shape: f32[2,1,64], index: 6, kind: output, shape index: {1}]
  %s7 = inlined_call_operand.vmem [shape: f32[2,1,64], index: 7, kind: output, shape index: {2}]
  %8 = xla_tuple %s5, %s6, %s7
  %s9 = sld [smem:[#allocation0]]
  $region69: #{decoder_forward.6} parent=0
    _
  %s11 = ssub.s32 1, %s9
  %s12 = scalar_select 0, %s11, %s9
  loop: start=0, step=1, limit=4
  $region2: #{decoder_forward.6} parent=0 // loop_pre_header
    _
  $region3: #{decoder_forward.6} parent=0 // loop_header
    %s14 = sphi 0, %s18
    %p15 = scmp.ge.s32.totalorder %s14, 4
    %s24 = sphi 0, %s26
    %s27 = sphi 0, %s24
    %s28 = sphi 0, %s27
    %s44 = sphi 0, %s28
    %s48 = sphi 0, %s48
    %s50 = sphi 0, %s48
    %s51 = sphi 0, %s50
    %s65 = sphi 0, %s51
    %s69 = sphi 0, %s69
    %s71 = sphi 0, %s69
    %s72 = sphi 0, %s71
    %s86 = sphi 0, %s72
    %s90 = sphi 0, %s90
    %s92 = sphi 0, %s90
    %s93 = sphi 0, %s92
    %s107 = sphi 0, %s93
    %s111 = sphi 0, %s111
    %s113 = sphi 0, %s111
    %s114 = sphi 0, %s113
    %s128 = sphi 0, %s114
    %s134 = sphi 0, %s136
    %s137 = sphi 0, %s134
    %s138 = sphi 0, %s137
    %s154 = sphi 0, %s138
    %s160 = sphi 0, %s162
    %s163 = sphi 0, %s160
    %s164 = sphi 0, %s163
    %s180 = sphi 0, %s164
    %s186 = sphi 0, %s188
    %s189 = sphi 0, %s186
    %s190 = sphi 0, %s189
    %s206 = sphi 0, %s190
  $region4: #{decoder_forward.6} parent=0 // loop_header_branch
    %17 = sbr.rel (%p15) target = $region8
  $region5: #{decoder_forward.6} parent=0 // loop_body
    %s19 = ssub.s32 %s14, 1
    %s20 = ssub.s32 %s14, 2
    %s21 = sadd.s32 %s14, 1
    %s22 = ssub.s32 %s14, %s21
    %p23 = scmp.eq.s32.totalorder %s22, 0
    %s25 = sadd.s32 %s24, 1
    %s26 = scalar_select %p23, %s24, %s25
    %p29 = pneg %p23
    %p30 = scmp.eq.s32.totalorder %s14, 1
    %p31 = por %p29, %p30
    %p32 = scmp.ne.s32.totalorder %s24, %s27
    %p33 = scmp.eq.s32.totalorder %s14, 0
    %p34 = por %p32, %p33
    %p35 = scmp.ne.s32.totalorder %s24, %s27
    %p36 = scmp.eq.s32.totalorder %s19, 1
    %p37 = por %p35, %p36
    %p38 = scmp.ne.s32.totalorder %s27, %s28
    %p39 = scmp.eq.s32.totalorder %s19, 0
    %p40 = por %p38, %p39
    %p41 = scmp.ne.s32.totalorder %s27, %s28
    %p42 = scmp.eq.s32.totalorder %s20, 1
    %p43 = por %p41, %p42
    %p45 = scmp.ne.s32.totalorder %s28, %s44
    %p46 = scmp.eq.s32.totalorder %s20, 0
    %p47 = por %p45, %p46
    %s49 = sadd.s32 %s48, 1
    %p52 = scmp.eq.s32.totalorder %s14, 1
    %p53 = scmp.ne.s32.totalorder %s48, %s50
    %p54 = scmp.eq.s32.totalorder %s14, 0
    %p55 = por %p53, %p54
    %p56 = scmp.ne.s32.totalorder %s48, %s50
    %p57 = scmp.eq.s32.totalorder %s19, 1
    %p58 = por %p56, %p57
    %p59 = scmp.ne.s32.totalorder %s50, %s51
    %p60 = scmp.eq.s32.totalorder %s19, 0
    %p61 = por %p59, %p60
    %p62 = scmp.ne.s32.totalorder %s50, %s51
    %p63 = scmp.eq.s32.totalorder %s20, 1
    %p64 = por %p62, %p63
    %p66 = scmp.ne.s32.totalorder %s51, %s65
    %p67 = scmp.eq.s32.totalorder %s20, 0
    %p68 = por %p66, %p67
    %s70 = sadd.s32 %s69, 1
    %p73 = scmp.eq.s32.totalorder %s14, 1
    %p74 = scmp.ne.s32.totalorder %s69, %s71
    %p75 = scmp.eq.s32.totalorder %s14, 0
    %p76 = por %p74, %p75
    %p77 = scmp.ne.s32.totalorder %s69, %s71
    %p78 = scmp.eq.s32.totalorder %s19, 1
    %p79 = por %p77, %p78
    %p80 = scmp.ne.s32.totalorder %s71, %s72
    %p81 = scmp.eq.s32.totalorder %s19, 0
    %p82 = por %p80, %p81
    %p83 = scmp.ne.s32.totalorder %s71, %s72
    %p84 = scmp.eq.s32.totalorder %s20, 1
    %p85 = por %p83, %p84
    %p87 = scmp.ne.s32.totalorder %s72, %s86
    %p88 = scmp.eq.s32.totalorder %s20, 0
    %p89 = por %p87, %p88
    %s91 = sadd.s32 %s90, 1
    %p94 = scmp.eq.s32.totalorder %s14, 1
    %p95 = scmp.ne.s32.totalorder %s90, %s92
    %p96 = scmp.eq.s32.totalorder %s14, 0
    %p97 = por %p95, %p96
    %p98 = scmp.ne.s32.totalorder %s90, %s92
    %p99 = scmp.eq.s32.totalorder %s19, 1
    %p100 = por %p98, %p99
    %p101 = scmp.ne.s32.totalorder %s92, %s93
    %p102 = scmp.eq.s32.totalorder %s19, 0
    %p103 = por %p101, %p102
    %p104 = scmp.ne.s32.totalorder %s92, %s93
    %p105 = scmp.eq.s32.totalorder %s20, 1
    %p106 = por %p104, %p105
    %p108 = scmp.ne.s32.totalorder %s93, %s107
    %p109 = scmp.eq.s32.totalorder %s20, 0
    %p110 = por %p108, %p109
    %s112 = sadd.s32 %s111, 1
    %p115 = scmp.eq.s32.totalorder %s14, 1
    %p116 = scmp.ne.s32.totalorder %s111, %s113
    %p117 = scmp.eq.s32.totalorder %s14, 0
    %p118 = por %p116, %p117
    %p119 = scmp.ne.s32.totalorder %s111, %s113
    %p120 = scmp.eq.s32.totalorder %s19, 1
    %p121 = por %p119, %p120
    %p122 = scmp.ne.s32.totalorder %s113, %s114
    %p123 = scmp.eq.s32.totalorder %s19, 0
    %p124 = por %p122, %p123
    %p125 = scmp.ne.s32.totalorder %s113, %s114
    %p126 = scmp.eq.s32.totalorder %s20, 1
    %p127 = por %p125, %p126
    %p129 = scmp.ne.s32.totalorder %s114, %s128
    %p130 = scmp.eq.s32.totalorder %s20, 0
    %p131 = por %p129, %p130
    %s132 = ssub.s32 %s14, %s21
    %p133 = scmp.eq.s32.totalorder %s132, 0
    %s135 = sadd.s32 %s134, 1
    %s136 = scalar_select %p133, %s134, %s135
    %p139 = pneg %p133
    %p140 = scmp.eq.s32.totalorder %s14, 1
    %p141 = por %p139, %p140
    %p142 = scmp.ne.s32.totalorder %s134, %s137
    %p143 = scmp.eq.s32.totalorder %s14, 0
    %p144 = por %p142, %p143
    %p145 = scmp.ne.s32.totalorder %s134, %s137
    %p146 = scmp.eq.s32.totalorder %s19, 1
    %p147 = por %p145, %p146
    %p148 = scmp.ne.s32.totalorder %s137, %s138
    %p149 = scmp.eq.s32.totalorder %s19, 0
    %p150 = por %p148, %p149
    %p151 = scmp.ne.s32.totalorder %s137, %s138
    %p152 = scmp.eq.s32.totalorder %s20, 1
    %p153 = por %p151, %p152
    %p155 = scmp.ne.s32.totalorder %s138, %s154
    %p156 = scmp.eq.s32.totalorder %s20, 0
    %p157 = por %p155, %p156
    %s158 = ssub.s32 %s14, %s21
    %p159 = scmp.eq.s32.totalorder %s158, 0
    %s161 = sadd.s32 %s160, 1
    %s162 = scalar_select %p159, %s160, %s161
    %p165 = pneg %p159
    %p166 = scmp.eq.s32.totalorder %s14, 1
    %p167 = por %p165, %p166
    %p168 = scmp.ne.s32.totalorder %s160, %s163
    %p169 = scmp.eq.s32.totalorder %s14, 0
    %p170 = por %p168, %p169
    %p171 = scmp.ne.s32.totalorder %s160, %s163
    %p172 = scmp.eq.s32.totalorder %s19, 1
    %p173 = por %p171, %p172
    %p174 = scmp.ne.s32.totalorder %s163, %s164
    %p175 = scmp.eq.s32.totalorder %s19, 0
    %p176 = por %p174, %p175
    %p177 = scmp.ne.s32.totalorder %s163, %s164
    %p178 = scmp.eq.s32.totalorder %s20, 1
    %p179 = por %p177, %p178
    %p181 = scmp.ne.s32.totalorder %s164, %s180
    %p182 = scmp.eq.s32.totalorder %s20, 0
    %p183 = por %p181, %p182
    %s184 = ssub.s32 %s14, %s21
    %p185 = scmp.eq.s32.totalorder %s184, 0
    %s187 = sadd.s32 %s186, 1
    %s188 = scalar_select %p185, %s186, %s187
    %p191 = pneg %p185
    %p192 = scmp.eq.s32.totalorder %s14, 1
    %p193 = por %p191, %p192
    %p194 = scmp.ne.s32.totalorder %s186, %s189
    %p195 = scmp.eq.s32.totalorder %s14, 0
    %p196 = por %p194, %p195
    %p197 = scmp.ne.s32.totalorder %s186, %s189
    %p198 = scmp.eq.s32.totalorder %s19, 1
    %p199 = por %p197, %p198
    %p200 = scmp.ne.s32.totalorder %s189, %s190
    %p201 = scmp.eq.s32.totalorder %s19, 0
    %p202 = por %p200, %p201
    %p203 = scmp.ne.s32.totalorder %s189, %s190
    %p204 = scmp.eq.s32.totalorder %s20, 1
    %p205 = por %p203, %p204
    %p207 = scmp.ne.s32.totalorder %s190, %s206
    %p208 = scmp.eq.s32.totalorder %s20, 0
    %p209 = por %p207, %p208
    %p210 = scmp.le.s32.totalorder 1, %s14
    %p211 = scmp.lt.s32.totalorder %s14, 3
    %p212 = pnand %p210, %p211
    %p213 = pneg %p212
    // Predicated region
    $region9: #{decoder_forward.6} parent=5 // pred_check
      _
    $region10: #{decoder_forward.6} parent=5 // pred_check_branch
      %215 = sbr.rel (%p212) target = $region12
    $region11: #{decoder_forward.6} parent=5 // pred_region
      %s216 = ssub.s32 %s14, 1
      // Predicated region
      $region13: #{decoder_forward.6} parent=11 // pred_check
        %p217 = pneg %p61
      $region14: #{decoder_forward.6} parent=11 // pred_check_branch
        %219 = sbr.rel (%p217) target = $region16
      $region15: #{decoder_forward.6} parent=11 // pred_region
        _
      $region16: #{decoder_forward.6} parent=11 // pred_fallthru
        _
      // Predicated region
      $region17: #{decoder_forward.6} parent=11 // pred_check
        %p220 = pneg %p82
      $region18: #{decoder_forward.6} parent=11 // pred_check_branch
        %222 = sbr.rel (%p220) target = $region20
      $region19: #{decoder_forward.6} parent=11 // pred_region
        _
      $region20: #{decoder_forward.6} parent=11 // pred_fallthru
        _
      // Predicated region
      $region21: #{decoder_forward.6} parent=11 // pred_check
        %p223 = pneg %p103
      $region22: #{decoder_forward.6} parent=11 // pred_check_branch
        %225 = sbr.rel (%p223) target = $region24
      $region23: #{decoder_forward.6} parent=11 // pred_region
        _
      $region24: #{decoder_forward.6} parent=11 // pred_fallthru
        _
      // Predicated region
      $region25: #{decoder_forward.6} parent=11 // pred_check
        %p226 = pneg %p124
      $region26: #{decoder_forward.6} parent=11 // pred_check_branch
        %228 = sbr.rel (%p226) target = $region28
      $region27: #{decoder_forward.6} parent=11 // pred_region
        _
      $region28: #{decoder_forward.6} parent=11 // pred_fallthru
        _
    $region12: #{decoder_forward.6} parent=5 // pred_fallthru
      _
    %p229 = scmp.lt.s32.totalorder %s14, 2
    // Predicated region
    $region29: #{decoder_forward.6} parent=5 // pred_check
      %p230 = pneg %p229
    $region30: #{decoder_forward.6} parent=5 // pred_check_branch
      %232 = sbr.rel (%p230) target = $region32
    $region31: #{decoder_forward.6} parent=5 // pred_region
      // Predicated region
      $region33: #{decoder_forward.6} parent=31 // pred_check
        %p233 = pneg %p34
      $region34: #{decoder_forward.6} parent=31 // pred_check_branch
        %235 = sbr.rel (%p233) target = $region36
      $region35: #{decoder_forward.6} parent=31 // pred_region
        %p236 = scmp.lt.s32.totalorder %s14, 1
        %s237 = scalar_select %p236, %s14, 1
        %s238 = smul.addr %s237, 8
        %s239 = smul.addr %s238, 4
        %s240 = scalar_lea.vmem %s0, %s239
      $region36: #{decoder_forward.6} parent=31 // pred_fallthru
        _
    $region32: #{decoder_forward.6} parent=5 // pred_fallthru
      _
    %p241 = scmp.le.s32.totalorder 1, %s14
    %p242 = scmp.lt.s32.totalorder %s14, 3
    %p243 = pnand %p241, %p242
    %p244 = pneg %p243
    // Predicated region
    $region37: #{decoder_forward.6} parent=5 // pred_check
      _
    $region38: #{decoder_forward.6} parent=5 // pred_check_branch
      %246 = sbr.rel (%p243) target = $region40
    $region39: #{decoder_forward.6} parent=5 // pred_region
      %s247 = ssub.s32 %s14, 1
      %p248 = scmp.lt.s32.totalorder %s19, 1
      %s249 = scalar_select %p248, %s19, 1
      %s250 = smul.addr %s249, 8
      %s251 = smul.addr %s250, 4
      %s252 = scalar_lea.vmem %s0, %s251
      %p253 = pneg %p40
      %p254 = pneg %p37
      %p255 = pneg %p61
      %p256 = pneg %p58
      %p257 = pneg %p82
      %p258 = pneg %p79
      %p259 = pneg %p103
      %p260 = pneg %p100
      %p261 = pneg %p124
      %p262 = pneg %p121
      %p263 = pneg %p150
      %p264 = pneg %p147
      %p265 = scmp.lt.s32.totalorder %s19, 1
      %s266 = scalar_select %p265, %s19, 1
      %s267 = smul.addr %s266, 8
      %s268 = smul.addr %s267, 4
      %s269 = scalar_lea.vmem %s5, %s268
      %p270 = pneg %p176
      %p271 = pneg %p173
      %p272 = scmp.lt.s32.totalorder %s19, 1
      %s273 = scalar_select %p272, %s19, 1
      %s274 = scalar_lea.vmem %s6, %s273
      %p275 = pneg %p202
      %p276 = pneg %p199
      %p277 = scmp.lt.s32.totalorder %s19, 1
      %s278 = scalar_select %p277, %s19, 1
      %s279 = scalar_lea.vmem %s7, %s278
      %p280 = scmp.lt.s32.totalorder %s19, 1
      %s281 = scalar_select %p280, %s19, 1
      %s282 = smul.addr %s281, 8
      %s283 = smul.addr %s282, 4
      %s284 = scalar_lea.vmem %s0, %s283
      %p285 = scmp.lt.s32.totalorder %s19, 1
      %s286 = scalar_select %p285, %s19, 1
      %s287 = smul.addr %s286, 8
      %s288 = smul.addr %s287, 4
      %s289 = scalar_lea.vmem %s5, %s288
      %p290 = scmp.lt.s32.totalorder %s19, 1
      %s291 = scalar_select %p290, %s19, 1
      %s292 = scalar_lea.vmem %s6, %s291
      %p293 = scmp.lt.s32.totalorder %s19, 1
      %s294 = scalar_select %p293, %s19, 1
      %s295 = scalar_lea.vmem %s7, %s294
      %v297 = vld [vmem:[%s284] sm:$0xf]
      %v298 = vld [vmem:[%s284 + $0x4] sm:$0xf]
      %v299 = vld [vmem:[%s284 + $0x8] sm:$0xf]
      %v300 = vld [vmem:[%s284 + $0xc] sm:$0xf]
      %v301 = vld [vmem:[%s284 + $0x10] sm:$0xf]
      %v302 = vld [vmem:[%s284 + $0x14] sm:$0xf]
      %v303 = vld [vmem:[%s284 + $0x18] sm:$0xf]
      %v304 = vld [vmem:[%s284 + $0x1c] sm:$0xf]
      %v305 = vunpack.c.l.bf16 %v297
      %v306 = vunpack.c.l.bf16 %v298
      %v307 = vunpack.c.l.bf16 %v299
      %v308 = vunpack.c.l.bf16 %v300
      %v309 = vunpack.c.l.bf16 %v301
      %v310 = vunpack.c.l.bf16 %v302
      %v311 = vunpack.c.l.bf16 %v303
      %v312 = vunpack.c.l.bf16 %v304
      %v313 = vld [vmem:[%s1] sm:$0x1]
      %v314 = vld [vmem:[%s2] sm:$0x1]
      %v316 = vperm.slane %v313, 0
      %v318 = vmul.f32 %v305, %v316
      %v319 = vmul.f32 %v306, %v316
      %v320 = vmul.f32 %v307, %v316
      %v321 = vmul.f32 %v308, %v316
      %v322 = vmul.f32 %v309, %v316
      %v323 = vmul.f32 %v310, %v316
      %v324 = vmul.f32 %v311, %v316
      %v325 = vmul.f32 %v312, %v316
      %v327 = vperm.slane %v314, 0
      %v329 = vadd.f32 %v318, %v327
      %v330 = vadd.f32 %v319, %v327
      %v331 = vadd.f32 %v320, %v327
      %v332 = vadd.f32 %v321, %v327
      %v333 = vadd.f32 %v322, %v327
      %v334 = vadd.f32 %v323, %v327
      %v335 = vadd.f32 %v324, %v327
      %v336 = vadd.f32 %v325, %v327
      %v345 = vrot.slane %v329, 7
      %v346 = vrot.slane %v330, 7
      %v347 = vrot.slane %v331, 7
      %v348 = vrot.slane %v332, 7
      %v349 = vrot.slane %v333, 7
      %v350 = vrot.slane %v334, 7
      %v351 = vrot.slane %v335, 7
      %v352 = vrot.slane %v336, 7
      %vm361 = vcmask 1040384
      %v362 = vsel %vm361, 0.0, %v345
      %v363 = vsel %vm361, 0.0, %v346
      %v364 = vsel %vm361, 0.0, %v347
      %v365 = vsel %vm361, 0.0, %v348
      %v366 = vsel %vm361, 0.0, %v349
      %v367 = vsel %vm361, 0.0, %v350
      %v368 = vsel %vm361, 0.0, %v351
      %v369 = vsel %vm361, 0.0, %v352
      %v370 = vsel %vm361, %v345, 0.0
      %v371 = vsel %vm361, %v346, 0.0
      %v372 = vsel %vm361, %v347, 0.0
      %v373 = vsel %vm361, %v348, 0.0
      %v374 = vsel %vm361, %v349, 0.0
      %v375 = vsel %vm361, %v350, 0.0
      %v376 = vsel %vm361, %v351, 0.0
      %v377 = vsel %vm361, %v352, 0.0
      %vm393 = vcmask 1046528
      %v394 = vrot.slane 0.0, 1
      %v395 = vsel %vm393, %v394, %v394
      %v396 = vrot.slane %v362, 1
      %v397 = vrot.slane %v370, 1
      %v398 = vsel %vm393, %v396, %v397
      %v399 = vrot.slane %v363, 1
      %v400 = vrot.slane %v371, 1
      %v401 = vsel %vm393, %v399, %v400
      %v402 = vrot.slane %v364, 1
      %v403 = vrot.slane %v372, 1
      %v404 = vsel %vm393, %v402, %v403
      %v405 = vrot.slane %v365, 1
      %v406 = vrot.slane %v373, 1
      %v407 = vsel %vm393, %v405, %v406
      %v408 = vrot.slane %v366, 1
      %v409 = vrot.slane %v374, 1
      %v410 = vsel %vm393, %v408, %v409
      %v411 = vrot.slane %v367, 1
      %v412 = vrot.slane %v375, 1
      %v413 = vsel %vm393, %v411, %v412
      %v414 = vrot.slane %v368, 1
      %v415 = vrot.slane %v376, 1
      %v416 = vsel %vm393, %v414, %v415
      %417 = vrot.lane.b32.xlu0 %v395, 8
      %v418 = vpop.permute.xlu0 %417
      %419 = vrot.lane.b32.xlu0 %v398, 8
      %v420 = vpop.permute.xlu0 %419
      %421 = vrot.lane.b32.xlu0 %v401, 8
      %v422 = vpop.permute.xlu0 %421
      %423 = vrot.lane.b32.xlu0 %v404, 8
      %v424 = vpop.permute.xlu0 %423
      %425 = vrot.lane.b32.xlu0 %v407, 8
      %v426 = vpop.permute.xlu0 %425
      %427 = vrot.lane.b32.xlu0 %v410, 8
      %v428 = vpop.permute.xlu0 %427
      %429 = vrot.lane.b32.xlu0 %v413, 8
      %v430 = vpop.permute.xlu0 %429
      %431 = vrot.lane.b32.xlu0 %v416, 8
      %v432 = vpop.permute.xlu0 %431
      %vm441 = vcmask 1045504
      %v442 = vrot.slane 0.0, 2
      %v443 = vsel %vm441, %v442, %v442
      %v444 = vrot.slane %v362, 2
      %v445 = vrot.slane %v370, 2
      %v446 = vsel %vm441, %v444, %v445
      %v447 = vrot.slane %v363, 2
      %v448 = vrot.slane %v371, 2
      %v449 = vsel %vm441, %v447, %v448
      %v450 = vrot.slane %v364, 2
      %v451 = vrot.slane %v372, 2
      %v452 = vsel %vm441, %v450, %v451
      %v453 = vrot.slane %v365, 2
      %v454 = vrot.slane %v373, 2
      %v455 = vsel %vm441, %v453, %v454
      %v456 = vrot.slane %v366, 2
      %v457 = vrot.slane %v374, 2
      %v458 = vsel %vm441, %v456, %v457
      %v459 = vrot.slane %v367, 2
      %v460 = vrot.slane %v375, 2
      %v461 = vsel %vm441, %v459, %v460
      %v462 = vrot.slane %v368, 2
      %v463 = vrot.slane %v376, 2
      %v464 = vsel %vm441, %v462, %v463
      %465 = vrot.lane.b32.xlu0 %v443, 16
      %v466 = vpop.permute.xlu0 %465
      %467 = vrot.lane.b32.xlu0 %v446, 16
      %v468 = vpop.permute.xlu0 %467
      %469 = vrot.lane.b32.xlu0 %v449, 16
      %v470 = vpop.permute.xlu0 %469
      %471 = vrot.lane.b32.xlu0 %v452, 16
      %v472 = vpop.permute.xlu0 %471
      %473 = vrot.lane.b32.xlu0 %v455, 16
      %v474 = vpop.permute.xlu0 %473
      %475 = vrot.lane.b32.xlu0 %v458, 16
      %v476 = vpop.permute.xlu0 %475
      %477 = vrot.lane.b32.xlu0 %v461, 16
      %v478 = vpop.permute.xlu0 %477
      %479 = vrot.lane.b32.xlu0 %v464, 16
      %v480 = vpop.permute.xlu0 %479
      %490 = vrot.lane.b32.xlu0 %v362, 24
      %v491 = vpop.permute.xlu0 %490
      %492 = vrot.lane.b32.xlu0 %v363, 24
      %v493 = vpop.permute.xlu0 %492
      %494 = vrot.lane.b32.xlu0 %v364, 24
      %v495 = vpop.permute.xlu0 %494
      %496 = vrot.lane.b32.xlu0 %v365, 24
      %v497 = vpop.permute.xlu0 %496
      %498 = vrot.lane.b32.xlu0 %v366, 24
      %v499 = vpop.permute.xlu0 %498
      %500 = vrot.lane.b32.xlu0 %v367, 24
      %v501 = vpop.permute.xlu0 %500
      %502 = vrot.lane.b32.xlu0 %v368, 24
      %v503 = vpop.permute.xlu0 %502
      %504 = vrot.lane.b32.xlu0 %v369, 24
      %v505 = vpop.permute.xlu0 %504
      %v515 = vrot.slane %v369, 1
      %v516 = vrot.slane %v377, 1
      %v517 = vsel %vm393, %v515, %v516
      %518 = vrot.lane.b32.xlu0 %v398, 32
      %v519 = vpop.permute.xlu0 %518
      %520 = vrot.lane.b32.xlu0 %v401, 32
      %v521 = vpop.permute.xlu0 %520
      %522 = vrot.lane.b32.xlu0 %v404, 32
      %v523 = vpop.permute.xlu0 %522
      %524 = vrot.lane.b32.xlu0 %v407, 32
      %v525 = vpop.permute.xlu0 %524
      %526 = vrot.lane.b32.xlu0 %v410, 32
      %v527 = vpop.permute.xlu0 %526
      %528 = vrot.lane.b32.xlu0 %v413, 32
      %v529 = vpop.permute.xlu0 %528
      %530 = vrot.lane.b32.xlu0 %v416, 32
      %v531 = vpop.permute.xlu0 %530
      %532 = vrot.lane.b32.xlu0 %v517, 32
      %v533 = vpop.permute.xlu0 %532
      %v542 = vrot.slane %v369, 2
      %v543 = vrot.slane %v377, 2
      %v544 = vsel %vm441, %v542, %v543
      %545 = vrot.lane.b32.xlu0 %v446, 40
      %v546 = vpop.permute.xlu0 %545
      %547 = vrot.lane.b32.xlu0 %v449, 40
      %v548 = vpop.permute.xlu0 %547
      %549 = vrot.lane.b32.xlu0 %v452, 40
      %v550 = vpop.permute.xlu0 %549
      %551 = vrot.lane.b32.xlu0 %v455, 40
      %v552 = vpop.permute.xlu0 %551
      %553 = vrot.lane.b32.xlu0 %v458, 40
      %v554 = vpop.permute.xlu0 %553
      %555 = vrot.lane.b32.xlu0 %v461, 40
      %v556 = vpop.permute.xlu0 %555
      %557 = vrot.lane.b32.xlu0 %v464, 40
      %v558 = vpop.permute.xlu0 %557
      %559 = vrot.lane.b32.xlu0 %v544, 40
      %v560 = vpop.permute.xlu0 %559
      %569 = vrot.lane.b32.xlu0 %v363, 48
      %v570 = vpop.permute.xlu0 %569
      %571 = vrot.lane.b32.xlu0 %v364, 48
      %v572 = vpop.permute.xlu0 %571
      %573 = vrot.lane.b32.xlu0 %v365, 48
      %v574 = vpop.permute.xlu0 %573
      %575 = vrot.lane.b32.xlu0 %v366, 48
      %v576 = vpop.permute.xlu0 %575
      %577 = vrot.lane.b32.xlu0 %v367, 48
      %v578 = vpop.permute.xlu0 %577
      %579 = vrot.lane.b32.xlu0 %v368, 48
      %v580 = vpop.permute.xlu0 %579
      %581 = vrot.lane.b32.xlu0 %v369, 48
      %v582 = vpop.permute.xlu0 %581
      %583 = vrot.lane.b32.xlu0 0.0, 48
      %v584 = vpop.permute.xlu0 %583
      %593 = vrot.lane.b32.xlu0 %v401, 56
      %v594 = vpop.permute.xlu0 %593
      %595 = vrot.lane.b32.xlu0 %v404, 56
      %v596 = vpop.permute.xlu0 %595
      %597 = vrot.lane.b32.xlu0 %v407, 56
      %v598 = vpop.permute.xlu0 %597
      %599 = vrot.lane.b32.xlu0 %v410, 56
      %v600 = vpop.permute.xlu0 %599
      %601 = vrot.lane.b32.xlu0 %v413, 56
      %v602 = vpop.permute.xlu0 %601
      %603 = vrot.lane.b32.xlu0 %v416, 56
      %v604 = vpop.permute.xlu0 %603
      %605 = vrot.lane.b32.xlu0 %v517, 56
      %v606 = vpop.permute.xlu0 %605
      %607 = vrot.lane.b32.xlu0 %v395, 56
      %v608 = vpop.permute.xlu0 %607
      %617 = vrot.lane.b32.xlu0 %v449, 64
      %v618 = vpop.permute.xlu0 %617
      %619 = vrot.lane.b32.xlu0 %v452, 64
      %v620 = vpop.permute.xlu0 %619
      %621 = vrot.lane.b32.xlu0 %v455, 64
      %v622 = vpop.permute.xlu0 %621
      %623 = vrot.lane.b32.xlu0 %v458, 64
      %v624 = vpop.permute.xlu0 %623
      %625 = vrot.lane.b32.xlu0 %v461, 64
      %v626 = vpop.permute.xlu0 %625
      %627 = vrot.lane.b32.xlu0 %v464, 64
      %v628 = vpop.permute.xlu0 %627
      %629 = vrot.lane.b32.xlu0 %v544, 64
      %v630 = vpop.permute.xlu0 %629
      %631 = vrot.lane.b32.xlu0 %v443, 64
      %v632 = vpop.permute.xlu0 %631
      %vm641 = vcmask 64512
      %v642 = vsel %vm641, 0.0, %v418
      %v643 = vsel %vm641, %v362, %v420
      %v644 = vsel %vm641, %v363, %v422
      %v645 = vsel %vm641, %v364, %v424
      %v646 = vsel %vm641, %v365, %v426
      %v647 = vsel %vm641, %v366, %v428
      %v648 = vsel %vm641, %v367, %v430
      %v649 = vsel %vm641, %v368, %v432
      %vm650 = vcmask 130048
      %v651 = vsel %vm650, %v642, %v466
      %v652 = vsel %vm650, %v643, %v468
      %v653 = vsel %vm650, %v644, %v470
      %v654 = vsel %vm650, %v645, %v472
      %v655 = vsel %vm650, %v646, %v474
      %v656 = vsel %vm650, %v647, %v476
      %v657 = vsel %vm650, %v648, %v478
      %v658 = vsel %vm650, %v649, %v480
      %vm659 = vcmask 195584
      %v660 = vsel %vm659, %v651, %v491
      %v661 = vsel %vm659, %v652, %v493
      %v662 = vsel %vm659, %v653, %v495
      %v663 = vsel %vm659, %v654, %v497
      %v664 = vsel %vm659, %v655, %v499
      %v665 = vsel %vm659, %v656, %v501
      %v666 = vsel %vm659, %v657, %v503
      %v667 = vsel %vm659, %v658, %v505
      %vm668 = vcmask 261120
      %v669 = vsel %vm668, %v660, %v519
      %v670 = vsel %vm668, %v661, %v521
      %v671 = vsel %vm668, %v662, %v523
      %v672 = vsel %vm668, %v663, %v525
      %v673 = vsel %vm668, %v664, %v527
      %v674 = vsel %vm668, %v665, %v529
      %v675 = vsel %vm668, %v666, %v531
      %v676 = vsel %vm668, %v667, %v533
      %vm677 = vcmask 326656
      %v678 = vsel %vm677, %v669, %v546
      %v679 = vsel %vm677, %v670, %v548
      %v680 = vsel %vm677, %v671, %v550
      %v681 = vsel %vm677, %v672, %v552
      %v682 = vsel %vm677, %v673, %v554
      %v683 = vsel %vm677, %v674, %v556
      %v684 = vsel %vm677, %v675, %v558
      %v685 = vsel %vm677, %v676, %v560
      %vm686 = vcmask 392192
      %v687 = vsel %vm686, %v678, %v570
      %v688 = vsel %vm686, %v679, %v572
      %v689 = vsel %vm686, %v680, %v574
      %v690 = vsel %vm686, %v681, %v576
      %v691 = vsel %vm686, %v682, %v578
      %v692 = vsel %vm686, %v683, %v580
      %v693 = vsel %vm686, %v684, %v582
      %v694 = vsel %vm686, %v685, %v584
      %vm695 = vcmask 457728
      %v696 = vsel %vm695, %v687, %v594
      %v697 = vsel %vm695, %v688, %v596
      %v698 = vsel %vm695, %v689, %v598
      %v699 = vsel %vm695, %v690, %v600
      %v700 = vsel %vm695, %v691, %v602
      %v701 = vsel %vm695, %v692, %v604
      %v702 = vsel %vm695, %v693, %v606
      %v703 = vsel %vm695, %v694, %v608
      %vm704 = vcmask 523264
      %v705 = vsel %vm704, %v696, %v618
      %v706 = vsel %vm704, %v697, %v620
      %v707 = vsel %vm704, %v698, %v622
      %v708 = vsel %vm704, %v699, %v624
      %v709 = vsel %vm704, %v700, %v626
      %v710 = vsel %vm704, %v701, %v628
      %v711 = vsel %vm704, %v702, %v630
      %v712 = vsel %vm704, %v703, %v632
      %v713 = vpack.c.bf16 %v706, %v705
      %v714 = vpack.c.bf16 %v708, %v707
      %v715 = vpack.c.bf16 %v710, %v709
      %v716 = vpack.c.bf16 %v712, %v711
      %v717 = vld [vmem:[%s3] sm:$0xf]
      %v718 = vld [vmem:[%s3 + $0x4] sm:$0xf]
      %v719 = vld [vmem:[%s3 + $0x8] sm:$0xf]
      %v720 = vld [vmem:[%s3 + $0xc] sm:$0xf]
      %v721 = vld [vmem:[%s3 + $0x10] sm:$0xf]
      %v722 = vld [vmem:[%s3 + $0x14] sm:$0xf]
      %v723 = vld [vmem:[%s3 + $0x18] sm:$0xf]
      %v724 = vld [vmem:[%s3 + $0x1c] sm:$0xf]
      %v725 = vld [vmem:[%s3 + $0x20] sm:$0xf]
      %v726 = vld [vmem:[%s4] sm:$0x1]
      %v728 = vperm.slane %v726, 0
      %v739 = vunpack.c.l.b16 %v717
      %v740 = vunpack.c.l.b16 %v718
      %v741 = vunpack.c.l.b16 %v719
      %v742 = vunpack.c.l.b16 %v720
      %v743 = vunpack.c.l.b16 %v721
      %v744 = vunpack.c.l.b16 %v722
      %v745 = vunpack.c.l.b16 %v723
      %v746 = vunpack.c.l.b16 %v724
      %v747 = vunpack.c.l.b16 %v725
      %v748 = vpack.c.b16 %v740, %v739
      %v749 = vpack.c.b16 %v742, %v741
      %v750 = vpack.c.b16 %v744, %v743
      %v751 = vpack.c.b16 %v746, %v745
      %v752 = vpack.c.b16 %v747, %v747
      %vm757 = vcmask 588800
      %v759 = vsel %vm757, %v713, 0
      %v762 = vsel %vm757, %v714, 0
      %v765 = vsel %vm757, %v715, 0
      %v768 = vsel %vm757, %v716, 0
      %vm770 = vcmask 1043456
      %v772 = vsel %vm770, %v752, 0
      %774 = vmatpush.bf16.msra.mxu0 0
      %775 = vmatpush.bf16.msra.mxu0 0
      %776 = vmatpush.bf16.msra.mxu0 0
      %777 = vmatpush.bf16.msra.mxu0 %v772
      %778 = vmatpush.bf16.msra.mxu0 %v751
      %779 = vmatpush.bf16.msra.mxu0 %v750
      %780 = vmatpush.bf16.msra.mxu0 %v749
      %781 = vmatpush.bf16.msra.mxu0 %v748
      %782 = vmatmul.bf16.gmra.mxu0 %v759
      %v783 = vpop.f32.mrf.mxu0
      %v784 = vadd.f32 %v728, %v783
      %v785 = vpop.f32.mrf.mxu0
      %v786 = vadd.f32 %v728, %v785
      %787 = vmatmul.bf16.gmra.mxu0 %v762
      %v788 = vpop.f32.mrf.mxu0
      %v789 = vadd.f32 %v728, %v788
      %v790 = vpop.f32.mrf.mxu0
      %v791 = vadd.f32 %v728, %v790
      %792 = vmatmul.bf16.gmra.mxu0 %v765
      %v793 = vpop.f32.mrf.mxu0
      %v794 = vadd.f32 %v728, %v793
      %v795 = vpop.f32.mrf.mxu0
      %v796 = vadd.f32 %v728, %v795
      %797 = vmatmul.bf16.gmra.mxu0 %v768
      %v798 = vpop.f32.mrf.mxu0
      %v799 = vadd.f32 %v728, %v798
      %v800 = vpop.f32.mrf.mxu0
      %v801 = vadd.f32 %v728, %v800
      %802 = vdwg.mxu0
      %v803 = vsel %vm704, %v784, 0.0
      %v804 = vsel %vm704, %v786, 0.0
      %v805 = vadd.f32 %v803, %v804
      %v806 = vsel %vm704, %v789, 0.0
      %v807 = vadd.f32 %v805, %v806
      %v808 = vsel %vm704, %v791, 0.0
      %v809 = vadd.f32 %v807, %v808
      %v810 = vsel %vm704, %v794, 0.0
      %v811 = vadd.f32 %v809, %v810
      %v812 = vsel %vm704, %v796, 0.0
      %v813 = vadd.f32 %v811, %v812
      %v814 = vsel %vm704, %v799, 0.0
      %v815 = vadd.f32 %v813, %v814
      %v816 = vsel %vm704, %v801, 0.0
      %v817 = vadd.f32 %v815, %v816
      %v818 = vrot.slane %v817, 4
      %v819 = vadd.f32 %v817, %v818
      %v820 = vrot.slane %v819, 2
      %v821 = vadd.f32 %v819, %v820
      %v822 = vrot.slane %v821, 1
      %v823 = vadd.f32 %v821, %v822
      %vm824 = vcmask 516096
      %825 = vst.msk [vmem:[%s292] sm:$0x1] %vm824, %v823
      %v826 = vmul.f32 %v784, %v784
      %v827 = vmul.f32 %v786, %v786
      %v828 = vmul.f32 %v789, %v789
      %v829 = vmul.f32 %v791, %v791
      %v830 = vmul.f32 %v794, %v794
      %v831 = vmul.f32 %v796, %v796
      %v832 = vmul.f32 %v799, %v799
      %v833 = vmul.f32 %v801, %v801
      %v834 = vsel %vm704, %v826, 0.0
      %v835 = vsel %vm704, %v827, 0.0
      %v836 = vadd.f32 %v834, %v835
      %v837 = vsel %vm704, %v828, 0.0
      %v838 = vadd.f32 %v836, %v837
      %v839 = vsel %vm704, %v829, 0.0
      %v840 = vadd.f32 %v838, %v839
      %v841 = vsel %vm704, %v830, 0.0
      %v842 = vadd.f32 %v840, %v841
      %v843 = vsel %vm704, %v831, 0.0
      %v844 = vadd.f32 %v842, %v843
      %v845 = vsel %vm704, %v832, 0.0
      %v846 = vadd.f32 %v844, %v845
      %v847 = vsel %vm704, %v833, 0.0
      %v848 = vadd.f32 %v846, %v847
      %v849 = vrot.slane %v848, 4
      %v850 = vadd.f32 %v848, %v849
      %v851 = vrot.slane %v850, 2
      %v852 = vadd.f32 %v850, %v851
      %v853 = vrot.slane %v852, 1
      %v854 = vadd.f32 %v852, %v853
      %855 = vst.msk [vmem:[%s295] sm:$0x1] %vm824, %v854
      %v856 = vpack.c.bf16 %v784, %v784
      %v857 = vpack.c.bf16 %v786, %v786
      %v858 = vpack.c.bf16 %v789, %v789
      %v859 = vpack.c.bf16 %v791, %v791
      %v860 = vpack.c.bf16 %v794, %v794
      %v861 = vpack.c.bf16 %v796, %v796
      %v862 = vpack.c.bf16 %v799, %v799
      %v863 = vpack.c.bf16 %v801, %v801
      %vm864 = vcmask 519168
      %865 = vst.msk [vmem:[%s289] sm:$0xf] %vm864, %v856
      %866 = vst.msk [vmem:[%s289 + $0x4] sm:$0xf] %vm864, %v857
      %867 = vst.msk [vmem:[%s289 + $0x8] sm:$0xf] %vm864, %v858
      %868 = vst.msk [vmem:[%s289 + $0xc] sm:$0xf] %vm864, %v859
      %869 = vst.msk [vmem:[%s289 + $0x10] sm:$0xf] %vm864, %v860
      %870 = vst.msk [vmem:[%s289 + $0x14] sm:$0xf] %vm864, %v861
      %871 = vst.msk [vmem:[%s289 + $0x18] sm:$0xf] %vm864, %v862
      %872 = vst.msk [vmem:[%s289 + $0x1c] sm:$0xf] %vm864, %v863
      %p873 = scmp.lt.s32.totalorder %s19, 1
      %s874 = scalar_select %p873, %s19, 1
      %s875 = smul.addr %s874, 8
      %s876 = smul.addr %s875, 4
      %s877 = scalar_lea.vmem %s5, %s876
      %p878 = scmp.lt.s32.totalorder %s19, 1
      %s879 = scalar_select %p878, %s19, 1
      %s880 = scalar_lea.vmem %s6, %s879
      %p881 = scmp.lt.s32.totalorder %s19, 1
      %s882 = scalar_select %p881, %s19, 1
      %s883 = scalar_lea.vmem %s7, %s882
      // Predicated region
      $region41: #{decoder_forward.6} parent=39 // pred_check
        %p884 = pneg %p147
      $region42: #{decoder_forward.6} parent=39 // pred_check_branch
        %886 = sbr.rel (%p884) target = $region44
      $region43: #{decoder_forward.6} parent=39 // pred_region
        _
      $region44: #{decoder_forward.6} parent=39 // pred_fallthru
        _
      // Predicated region
      $region45: #{decoder_forward.6} parent=39 // pred_check
        %p887 = pneg %p173
      $region46: #{decoder_forward.6} parent=39 // pred_check_branch
        %889 = sbr.rel (%p887) target = $region48
      $region47: #{decoder_forward.6} parent=39 // pred_region
        _
      $region48: #{decoder_forward.6} parent=39 // pred_fallthru
        _
      // Predicated region
      $region49: #{decoder_forward.6} parent=39 // pred_check
        %p890 = pneg %p199
      $region50: #{decoder_forward.6} parent=39 // pred_check_branch
        %892 = sbr.rel (%p890) target = $region52
      $region51: #{decoder_forward.6} parent=39 // pred_region
        _
      $region52: #{decoder_forward.6} parent=39 // pred_fallthru
        _
    $region40: #{decoder_forward.6} parent=5 // pred_fallthru
      _
    %p893 = scmp.le.s32.totalorder 2, %s14
    // Predicated region
    $region53: #{decoder_forward.6} parent=5 // pred_check
      %p894 = pneg %p893
    $region54: #{decoder_forward.6} parent=5 // pred_check_branch
      %896 = sbr.rel (%p894) target = $region56
    $region55: #{decoder_forward.6} parent=5 // pred_region
      %s897 = ssub.s32 %s14, 2
      // Predicated region
      $region57: #{decoder_forward.6} parent=55 // pred_check
        %p898 = pneg %p153
      $region58: #{decoder_forward.6} parent=55 // pred_check_branch
        %900 = sbr.rel (%p898) target = $region60
      $region59: #{decoder_forward.6} parent=55 // pred_region
        %p901 = scmp.lt.s32.totalorder %s20, 1
        %s902 = scalar_select %p901, %s20, 1
        %s903 = smul.addr %s902, 8
        %s904 = smul.addr %s903, 4
        %s905 = scalar_lea.vmem %s5, %s904
      $region60: #{decoder_forward.6} parent=55 // pred_fallthru
        _
      // Predicated region
      $region61: #{decoder_forward.6} parent=55 // pred_check
        %p906 = pneg %p179
      $region62: #{decoder_forward.6} parent=55 // pred_check_branch
        %908 = sbr.rel (%p906) target = $region64
      $region63: #{decoder_forward.6} parent=55 // pred_region
        %p909 = scmp.lt.s32.totalorder %s20, 1
        %s910 = scalar_select %p909, %s20, 1
        %s911 = scalar_lea.vmem %s6, %s910
      $region64: #{decoder_forward.6} parent=55 // pred_fallthru
        _
      // Predicated region
      $region65: #{decoder_forward.6} parent=55 // pred_check
        %p912 = pneg %p205
      $region66: #{decoder_forward.6} parent=55 // pred_check_branch
        %914 = sbr.rel (%p912) target = $region68
      $region67: #{decoder_forward.6} parent=55 // pred_region
        %p915 = scmp.lt.s32.totalorder %s20, 1
        %s916 = scalar_select %p915, %s20, 1
        %s917 = scalar_lea.vmem %s7, %s916
      $region68: #{decoder_forward.6} parent=55 // pred_fallthru
        _
    $region56: #{decoder_forward.6} parent=5 // pred_fallthru
      _
  $region6: #{decoder_forward.6} parent=0 // loop_footer
    %s18 = sadd.s32 1, %s14
  $region7: #{decoder_forward.6} parent=0 // loop_footer_branch
    %13 = sbr.rel target = $region3
  $region8: #{decoder_forward.6} parent=0 // loop_exit
    _

// kernel: decoder_forward.7
$region0: #{decoder_forward.7}
  #allocation0 [shape = 'u32[]', space=smem, size = 0x4, offset = 0x4, fixed_abs, tag = 'smem constant byte address 0x4 - core index']
  #allocation1 [shape = 'u32[72,128]{1,0:T(1,128)}', space=vmem, size = 0x9000, scoped, tag = 'internal scratch']
  %s0 = inlined_call_operand.vmem [shape: bf16[2,16,16,16], index: 0, kind: input, shape index: {}]
  %s1 = inlined_call_operand.vmem [shape: f32[1,16], index: 1, kind: input, shape index: {}]
  %s2 = inlined_call_operand.vmem [shape: f32[1,16], index: 2, kind: input, shape index: {}]
  %s3 = inlined_call_operand.vmem [shape: bf16[144,16], index: 3, kind: input, shape index: {}]
  %s4 = inlined_call_operand.vmem [shape: f32[1,16], index: 4, kind: input, shape index: {}]
  %s5 = inlined_call_operand.vmem [shape: bf16[2,16,16,16], index: 5, kind: output, shape index: {0}]
  %s6 = inlined_call_operand.hbm [shape: f32[2,1,16], index: 6, kind: output, shape index: {1}]
  %s7 = inlined_call_operand.hbm [shape: f32[2,1,16], index: 7, kind: output, shape index: {2}]
  %8 = xla_tuple %s5, %s6, %s7
  %s9 = sld [smem:[#allocation0]]
  $region69: #{decoder_forward.7} parent=0
    _
  %s11 = ssub.s32 1, %s9
  %s12 = scalar_select 0, %s11, %s9
  $region1: #{decoder_forward.7} parent=0
    #allocation2 [shape = 'u8[1024]{0}', space=vmem, size = 0x400, scoped, tag = 'output window, operand 1']
    #allocation3 [shape = 's32[2]{0}', space=sflag, size = 0x8, scoped, tag = 'scoped memory for decoder_forward.7']
    #allocation4 [shape = 'u8[1024]{0}', space=vmem, size = 0x400, scoped, tag = 'output window, operand 2']
    #allocation5 [shape = 's32[2]{0}', space=sflag, size = 0x8, scoped, tag = 'scoped memory for decoder_forward.7']
    %13 = vsyncpa [#allocation3], 0
    %s14 = scalar_lea.sflag [#allocation3], 1
    %15 = vsyncpa %s14, 0
    %16 = vsyncpa [#allocation5], 0
    %s17 = scalar_lea.sflag [#allocation5], 1
    %18 = vsyncpa %s17, 0
    loop: start=0, step=1, limit=4
    $region2: #{decoder_forward.7} parent=1 // loop_pre_header
      _
    $region3: #{decoder_forward.7} parent=1 // loop_header
      %s20 = sphi 0, %s24
      %p21 = scmp.ge.s32.totalorder %s20, 4
      %s30 = sphi 0, %s32
      %s33 = sphi 0, %s30
      %s34 = sphi 0, %s33
      %s50 = sphi 0, %s34
      %s54 = sphi 0, %s54
      %s56 = sphi 0, %s54
      %s57 = sphi 0, %s56
      %s71 = sphi 0, %s57
      %s75 = sphi 0, %s75
      %s77 = sphi 0, %s75
      %s78 = sphi 0, %s77
      %s92 = sphi 0, %s78
      %s96 = sphi 0, %s96
      %s98 = sphi 0, %s96
      %s99 = sphi 0, %s98
      %s113 = sphi 0, %s99
      %s117 = sphi 0, %s117
      %s119 = sphi 0, %s117
      %s120 = sphi 0, %s119
      %s134 = sphi 0, %s120
      %s140 = sphi 0, %s142
      %s143 = sphi 0, %s140
      %s144 = sphi 0, %s143
      %s160 = sphi 0, %s144
      %s166 = sphi 0, %s168
      %s169 = sphi 0, %s166
      %s170 = sphi 0, %s169
      %s186 = sphi 0, %s170
      %s192 = sphi 0, %s194
      %s195 = sphi 0, %s192
      %s196 = sphi 0, %s195
      %s212 = sphi 0, %s196
    $region4: #{decoder_forward.7} parent=1 // loop_header_branch
      %23 = sbr.rel (%p21) target = $region8
    $region5: #{decoder_forward.7} parent=1 // loop_body
      %s25 = ssub.s32 %s20, 1
      %s26 = ssub.s32 %s20, 2
      %s27 = sadd.s32 %s20, 1
      %s28 = ssub.s32 %s20, %s27
      %p29 = scmp.eq.s32.totalorder %s28, 0
      %s31 = sadd.s32 %s30, 1
      %s32 = scalar_select %p29, %s30, %s31
      %p35 = pneg %p29
      %p36 = scmp.eq.s32.totalorder %s20, 1
      %p37 = por %p35, %p36
      %p38 = scmp.ne.s32.totalorder %s30, %s33
      %p39 = scmp.eq.s32.totalorder %s20, 0
      %p40 = por %p38, %p39
      %p41 = scmp.ne.s32.totalorder %s30, %s33
      %p42 = scmp.eq.s32.totalorder %s25, 1
      %p43 = por %p41, %p42
      %p44 = scmp.ne.s32.totalorder %s33, %s34
      %p45 = scmp.eq.s32.totalorder %s25, 0
      %p46 = por %p44, %p45
      %p47 = scmp.ne.s32.totalorder %s33, %s34
      %p48 = scmp.eq.s32.totalorder %s26, 1
      %p49 = por %p47, %p48
      %p51 = scmp.ne.s32.totalorder %s34, %s50
      %p52 = scmp.eq.s32.totalorder %s26, 0
      %p53 = por %p51, %p52
      %s55 = sadd.s32 %s54, 1
      %p58 = scmp.eq.s32.totalorder %s20, 1
      %p59 = scmp.ne.s32.totalorder %s54, %s56
      %p60 = scmp.eq.s32.totalorder %s20, 0
      %p61 = por %p59, %p60
      %p62 = scmp.ne.s32.totalorder %s54, %s56
      %p63 = scmp.eq.s32.totalorder %s25, 1
      %p64 = por %p62, %p63
      %p65 = scmp.ne.s32.totalorder %s56, %s57
      %p66 = scmp.eq.s32.totalorder %s25, 0
      %p67 = por %p65, %p66
      %p68 = scmp.ne.s32.totalorder %s56, %s57
      %p69 = scmp.eq.s32.totalorder %s26, 1
      %p70 = por %p68, %p69
      %p72 = scmp.ne.s32.totalorder %s57, %s71
      %p73 = scmp.eq.s32.totalorder %s26, 0
      %p74 = por %p72, %p73
      %s76 = sadd.s32 %s75, 1
      %p79 = scmp.eq.s32.totalorder %s20, 1
      %p80 = scmp.ne.s32.totalorder %s75, %s77
      %p81 = scmp.eq.s32.totalorder %s20, 0
      %p82 = por %p80, %p81
      %p83 = scmp.ne.s32.totalorder %s75, %s77
      %p84 = scmp.eq.s32.totalorder %s25, 1
      %p85 = por %p83, %p84
      %p86 = scmp.ne.s32.totalorder %s77, %s78
      %p87 = scmp.eq.s32.totalorder %s25, 0
      %p88 = por %p86, %p87
      %p89 = scmp.ne.s32.totalorder %s77, %s78
      %p90 = scmp.eq.s32.totalorder %s26, 1
      %p91 = por %p89, %p90
      %p93 = scmp.ne.s32.totalorder %s78, %s92
      %p94 = scmp.eq.s32.totalorder %s26, 0
      %p95 = por %p93, %p94
      %s97 = sadd.s32 %s96, 1
      %p100 = scmp.eq.s32.totalorder %s20, 1
      %p101 = scmp.ne.s32.totalorder %s96, %s98
      %p102 = scmp.eq.s32.totalorder %s20, 0
      %p103 = por %p101, %p102
      %p104 = scmp.ne.s32.totalorder %s96, %s98
      %p105 = scmp.eq.s32.totalorder %s25, 1
      %p106 = por %p104, %p105
      %p107 = scmp.ne.s32.totalorder %s98, %s99
      %p108 = scmp.eq.s32.totalorder %s25, 0
      %p109 = por %p107, %p108
      %p110 = scmp.ne.s32.totalorder %s98, %s99
      %p111 = scmp.eq.s32.totalorder %s26, 1
      %p112 = por %p110, %p111
      %p114 = scmp.ne.s32.totalorder %s99, %s113
      %p115 = scmp.eq.s32.totalorder %s26, 0
      %p116 = por %p114, %p115
      %s118 = sadd.s32 %s117, 1
      %p121 = scmp.eq.s32.totalorder %s20, 1
      %p122 = scmp.ne.s32.totalorder %s117, %s119
      %p123 = scmp.eq.s32.totalorder %s20, 0
      %p124 = por %p122, %p123
      %p125 = scmp.ne.s32.totalorder %s117, %s119
      %p126 = scmp.eq.s32.totalorder %s25, 1
      %p127 = por %p125, %p126
      %p128 = scmp.ne.s32.totalorder %s119, %s120
      %p129 = scmp.eq.s32.totalorder %s25, 0
      %p130 = por %p128, %p129
      %p131 = scmp.ne.s32.totalorder %s119, %s120
      %p132 = scmp.eq.s32.totalorder %s26, 1
      %p133 = por %p131, %p132
      %p135 = scmp.ne.s32.totalorder %s120, %s134
      %p136 = scmp.eq.s32.totalorder %s26, 0
      %p137 = por %p135, %p136
      %s138 = ssub.s32 %s20, %s27
      %p139 = scmp.eq.s32.totalorder %s138, 0
      %s141 = sadd.s32 %s140, 1
      %s142 = scalar_select %p139, %s140, %s141
      %p145 = pneg %p139
      %p146 = scmp.eq.s32.totalorder %s20, 1
      %p147 = por %p145, %p146
      %p148 = scmp.ne.s32.totalorder %s140, %s143
      %p149 = scmp.eq.s32.totalorder %s20, 0
      %p150 = por %p148, %p149
      %p151 = scmp.ne.s32.totalorder %s140, %s143
      %p152 = scmp.eq.s32.totalorder %s25, 1
      %p153 = por %p151, %p152
      %p154 = scmp.ne.s32.totalorder %s143, %s144
      %p155 = scmp.eq.s32.totalorder %s25, 0
      %p156 = por %p154, %p155
      %p157 = scmp.ne.s32.totalorder %s143, %s144
      %p158 = scmp.eq.s32.totalorder %s26, 1
      %p159 = por %p157, %p158
      %p161 = scmp.ne.s32.totalorder %s144, %s160
      %p162 = scmp.eq.s32.totalorder %s26, 0
      %p163 = por %p161, %p162
      %s164 = ssub.s32 %s20, %s27
      %p165 = scmp.eq.s32.totalorder %s164, 0
      %s167 = sadd.s32 %s166, 1
      %s168 = scalar_select %p165, %s166, %s167
      %p171 = pneg %p165
      %p172 = scmp.eq.s32.totalorder %s20, 1
      %p173 = por %p171, %p172
      %p174 = scmp.ne.s32.totalorder %s166, %s169
      %p175 = scmp.eq.s32.totalorder %s20, 0
      %p176 = por %p174, %p175
      %p177 = scmp.ne.s32.totalorder %s166, %s169
      %p178 = scmp.eq.s32.totalorder %s25, 1
      %p179 = por %p177, %p178
      %p180 = scmp.ne.s32.totalorder %s169, %s170
      %p181 = scmp.eq.s32.totalorder %s25, 0
      %p182 = por %p180, %p181
      %p183 = scmp.ne.s32.totalorder %s169, %s170
      %p184 = scmp.eq.s32.totalorder %s26, 1
      %p185 = por %p183, %p184
      %p187 = scmp.ne.s32.totalorder %s170, %s186
      %p188 = scmp.eq.s32.totalorder %s26, 0
      %p189 = por %p187, %p188
      %s190 = ssub.s32 %s20, %s27
      %p191 = scmp.eq.s32.totalorder %s190, 0
      %s193 = sadd.s32 %s192, 1
      %s194 = scalar_select %p191, %s192, %s193
      %p197 = pneg %p191
      %p198 = scmp.eq.s32.totalorder %s20, 1
      %p199 = por %p197, %p198
      %p200 = scmp.ne.s32.totalorder %s192, %s195
      %p201 = scmp.eq.s32.totalorder %s20, 0
      %p202 = por %p200, %p201
      %p203 = scmp.ne.s32.totalorder %s192, %s195
      %p204 = scmp.eq.s32.totalorder %s25, 1
      %p205 = por %p203, %p204
      %p206 = scmp.ne.s32.totalorder %s195, %s196
      %p207 = scmp.eq.s32.totalorder %s25, 0
      %p208 = por %p206, %p207
      %p209 = scmp.ne.s32.totalorder %s195, %s196
      %p210 = scmp.eq.s32.totalorder %s26, 1
      %p211 = por %p209, %p210
      %p213 = scmp.ne.s32.totalorder %s196, %s212
      %p214 = scmp.eq.s32.totalorder %s26, 0
      %p215 = por %p213, %p214
      %p216 = scmp.le.s32.totalorder 1, %s20
      %p217 = scmp.lt.s32.totalorder %s20, 3
      %p218 = pnand %p216, %p217
      %p219 = pneg %p218
      // Predicated region
      $region9: #{decoder_forward.7} parent=5 // pred_check
        _
      $region10: #{decoder_forward.7} parent=5 // pred_check_branch
        %221 = sbr.rel (%p218) target = $region12
      $region11: #{decoder_forward.7} parent=5 // pred_region
        %s222 = ssub.s32 %s20, 1
        // Predicated region
        $region13: #{decoder_forward.7} parent=11 // pred_check
          %p223 = pneg %p67
        $region14: #{decoder_forward.7} parent=11 // pred_check_branch
          %225 = sbr.rel (%p223) target = $region16
        $region15: #{decoder_forward.7} parent=11 // pred_region
          _
        $region16: #{decoder_forward.7} parent=11 // pred_fallthru
          _
        // Predicated region
        $region17: #{decoder_forward.7} parent=11 // pred_check
          %p226 = pneg %p88
        $region18: #{decoder_forward.7} parent=11 // pred_check_branch
          %228 = sbr.rel (%p226) target = $region20
        $region19: #{decoder_forward.7} parent=11 // pred_region
          _
        $region20: #{decoder_forward.7} parent=11 // pred_fallthru
          _
        // Predicated region
        $region21: #{decoder_forward.7} parent=11 // pred_check
          %p229 = pneg %p109
        $region22: #{decoder_forward.7} parent=11 // pred_check_branch
          %231 = sbr.rel (%p229) target = $region24
        $region23: #{decoder_forward.7} parent=11 // pred_region
          _
        $region24: #{decoder_forward.7} parent=11 // pred_fallthru
          _
        // Predicated region
        $region25: #{decoder_forward.7} parent=11 // pred_check
          %p232 = pneg %p130
        $region26: #{decoder_forward.7} parent=11 // pred_check_branch
          %234 = sbr.rel (%p232) target = $region28
        $region27: #{decoder_forward.7} parent=11 // pred_region
          _
        $region28: #{decoder_forward.7} parent=11 // pred_fallthru
          _
      $region12: #{decoder_forward.7} parent=5 // pred_fallthru
        _
      %p235 = scmp.lt.s32.totalorder %s20, 2
      // Predicated region
      $region29: #{decoder_forward.7} parent=5 // pred_check
        %p236 = pneg %p235
      $region30: #{decoder_forward.7} parent=5 // pred_check_branch
        %238 = sbr.rel (%p236) target = $region32
      $region31: #{decoder_forward.7} parent=5 // pred_region
        // Predicated region
        $region33: #{decoder_forward.7} parent=31 // pred_check
          %p239 = pneg %p40
        $region34: #{decoder_forward.7} parent=31 // pred_check_branch
          %241 = sbr.rel (%p239) target = $region36
        $region35: #{decoder_forward.7} parent=31 // pred_region
          %p242 = scmp.lt.s32.totalorder %s20, 1
          %s243 = scalar_select %p242, %s20, 1
          %s244 = smul.addr %s243, 32
          %s245 = smul.addr %s244, 4
          %s246 = scalar_lea.vmem %s0, %s245
        $region36: #{decoder_forward.7} parent=31 // pred_fallthru
          _
      $region32: #{decoder_forward.7} parent=5 // pred_fallthru
        _
      %p247 = scmp.le.s32.totalorder 1, %s20
      %p248 = scmp.lt.s32.totalorder %s20, 3
      %p249 = pnand %p247, %p248
      %p250 = pneg %p249
      // Predicated region
      $region37: #{decoder_forward.7} parent=5 // pred_check
        _
      $region38: #{decoder_forward.7} parent=5 // pred_check_branch
        %252 = sbr.rel (%p249) target = $region40
      $region39: #{decoder_forward.7} parent=5 // pred_region
        %s253 = ssub.s32 %s20, 1
        %p254 = scmp.lt.s32.totalorder %s25, 1
        %s255 = scalar_select %p254, %s25, 1
        %s256 = smul.addr %s255, 32
        %s257 = smul.addr %s256, 4
        %s258 = scalar_lea.vmem %s0, %s257
        %p259 = pneg %p46
        %p260 = pneg %p43
        %p261 = pneg %p67
        %p262 = pneg %p64
        %p263 = pneg %p88
        %p264 = pneg %p85
        %p265 = pneg %p109
        %p266 = pneg %p106
        %p267 = pneg %p130
        %p268 = pneg %p127
        %p269 = pneg %p156
        %p270 = pneg %p153
        %p271 = scmp.lt.s32.totalorder %s25, 1
        %s272 = scalar_select %p271, %s25, 1
        %s273 = smul.addr %s272, 32
        %s274 = smul.addr %s273, 4
        %s275 = scalar_lea.vmem %s5, %s274
        %p276 = pneg %p182
        %p277 = pneg %p179
        %s278 = sand.u32 %s169, 1
        %s279 = scalar_lea.sflag [#allocation3], %s278
        %s280 = sand.u32 %s169, 1
        %s281 = scalar_lea.vmem [#allocation2], %s280
        %p282 = pneg %p208
        %p283 = pneg %p205
        %s284 = sand.u32 %s195, 1
        %s285 = scalar_lea.sflag [#allocation5], %s284
        %s286 = sand.u32 %s195, 1
        %s287 = scalar_lea.vmem [#allocation4], %s286
        %p288 = scmp.lt.s32.totalorder %s25, 1
        %s289 = scalar_select %p288, %s25, 1
        %s290 = smul.addr %s289, 32
        %s291 = smul.addr %s290, 4
        %s292 = scalar_lea.vmem %s0, %s291
        %p293 = scmp.lt.s32.totalorder %s25, 1
        %s294 = scalar_select %p293, %s25, 1
        %s295 = smul.addr %s294, 32
        %s296 = smul.addr %s295, 4
        %s297 = scalar_lea.vmem %s5, %s296
        %v299 = vld [vmem:[%s292] sm:$0xf]
        %v300 = vld [vmem:[%s292 + $0x4] sm:$0xf]
        %v301 = vld [vmem:[%s292 + $0x8] sm:$0xf]
        %v302 = vld [vmem:[%s292 + $0xc] sm:$0xf]
        %v303 = vld [vmem:[%s292 + $0x10] sm:$0xf]
        %v304 = vld [vmem:[%s292 + $0x14] sm:$0xf]
        %v305 = vld [vmem:[%s292 + $0x18] sm:$0xf]
        %v306 = vld [vmem:[%s292 + $0x1c] sm:$0xf]
        %v307 = vld [vmem:[%s292 + $0x20] sm:$0xf]
        %v308 = vld [vmem:[%s292 + $0x24] sm:$0xf]
        %v309 = vld [vmem:[%s292 + $0x28] sm:$0xf]
        %v310 = vld [vmem:[%s292 + $0x2c] sm:$0xf]
        %v311 = vld [vmem:[%s292 + $0x30] sm:$0xf]
        %v312 = vld [vmem:[%s292 + $0x34] sm:$0xf]
        %v313 = vld [vmem:[%s292 + $0x38] sm:$0xf]
        %v314 = vld [vmem:[%s292 + $0x3c] sm:$0xf]
        %v315 = vld [vmem:[%s292 + $0x40] sm:$0xf]
        %v316 = vld [vmem:[%s292 + $0x44] sm:$0xf]
        %v317 = vld [vmem:[%s292 + $0x48] sm:$0xf]
        %v318 = vld [vmem:[%s292 + $0x4c] sm:$0xf]
        %v319 = vld [vmem:[%s292 + $0x50] sm:$0xf]
        %v320 = vld [vmem:[%s292 + $0x54] sm:$0xf]
        %v321 = vld [vmem:[%s292 + $0x58] sm:$0xf]
        %v322 = vld [vmem:[%s292 + $0x5c] sm:$0xf]
        %v323 = vld [vmem:[%s292 + $0x60] sm:$0xf]
        %v324 = vld [vmem:[%s292 + $0x64] sm:$0xf]
        %v325 = vld [vmem:[%s292 + $0x68] sm:$0xf]
        %v326 = vld [vmem:[%s292 + $0x6c] sm:$0xf]
        %v327 = vld [vmem:[%s292 + $0x70] sm:$0xf]
        %v328 = vld [vmem:[%s292 + $0x74] sm:$0xf]
        %v329 = vld [vmem:[%s292 + $0x78] sm:$0xf]
        %v330 = vld [vmem:[%s292 + $0x7c] sm:$0xf]
        %v331 = vunpack.c.l.bf16 %v299
        %v332 = vunpack.c.l.bf16 %v300
        %v333 = vunpack.c.l.bf16 %v301
        %v334 = vunpack.c.l.bf16 %v302
        %v335 = vunpack.c.l.bf16 %v303
        %v336 = vunpack.c.l.bf16 %v304
        %v337 = vunpack.c.l.bf16 %v305
        %v338 = vunpack.c.l.bf16 %v306
        %v339 = vunpack.c.l.bf16 %v307
        %v340 = vunpack.c.l.bf16 %v308
        %v341 = vunpack.c.l.bf16 %v309
        %v342 = vunpack.c.l.bf16 %v310
        %v343 = vunpack.c.l.bf16 %v311
        %v344 = vunpack.c.l.bf16 %v312
        %v345 = vunpack.c.l.bf16 %v313
        %v346 = vunpack.c.l.bf16 %v314
        %v347 = vunpack.c.l.bf16 %v315
        %v348 = vunpack.c.l.bf16 %v316
        %v349 = vunpack.c.l.bf16 %v317
        %v350 = vunpack.c.l.bf16 %v318
        %v351 = vunpack.c.l.bf16 %v319
        %v352 = vunpack.c.l.bf16 %v320
        %v353 = vunpack.c.l.bf16 %v321
        %v354 = vunpack.c.l.bf16 %v322
        %v355 = vunpack.c.l.bf16 %v323
        %v356 = vunpack.c.l.bf16 %v324
        %v357 = vunpack.c.l.bf16 %v325
        %v358 = vunpack.c.l.bf16 %v326
        %v359 = vunpack.c.l.bf16 %v327
        %v360 = vunpack.c.l.bf16 %v328
        %v361 = vunpack.c.l.bf16 %v329
        %v362 = vunpack.c.l.bf16 %v330
        %v363 = vld [vmem:[%s1] sm:$0x1]
        %v364 = vld [vmem:[%s2] sm:$0x1]
        %v366 = vperm.slane %v363, 0
        %v368 = vmul.f32 %v331, %v366
        %v369 = vmul.f32 %v332, %v366
        %v370 = vmul.f32 %v333, %v366
        %v371 = vmul.f32 %v334, %v366
        %v372 = vmul.f32 %v335, %v366
        %v373 = vmul.f32 %v336, %v366
        %v374 = vmul.f32 %v337, %v366
        %v375 = vmul.f32 %v338, %v366
        %v376 = vmul.f32 %v339, %v366
        %v377 = vmul.f32 %v340, %v366
        %v378 = vmul.f32 %v341, %v366
        %v379 = vmul.f32 %v342, %v366
        %v380 = vmul.f32 %v343, %v366
        %v381 = vmul.f32 %v344, %v366
        %v382 = vmul.f32 %v345, %v366
        %v383 = vmul.f32 %v346, %v366
        %v384 = vmul.f32 %v347, %v366
        %v385 = vmul.f32 %v348, %v366
        %v386 = vmul.f32 %v349, %v366
        %v387 = vmul.f32 %v350, %v366
        %v388 = vmul.f32 %v351, %v366
        %v389 = vmul.f32 %v352, %v366
        %v390 = vmul.f32 %v353, %v366
        %v391 = vmul.f32 %v354, %v366
        %v392 = vmul.f32 %v355, %v366
        %v393 = vmul.f32 %v356, %v366
        %v394 = vmul.f32 %v357, %v366
        %v395 = vmul.f32 %v358, %v366
        %v396 = vmul.f32 %v359, %v366
        %v397 = vmul.f32 %v360, %v366
        %v398 = vmul.f32 %v361, %v366
        %v399 = vmul.f32 %v362, %v366
        %v401 = vperm.slane %v364, 0
        %v403 = vadd.f32 %v368, %v401
        %v404 = vadd.f32 %v369, %v401
        %v405 = vadd.f32 %v370, %v401
        %v406 = vadd.f32 %v371, %v401
        %v407 = vadd.f32 %v372, %v401
        %v408 = vadd.f32 %v373, %v401
        %v409 = vadd.f32 %v374, %v401
        %v410 = vadd.f32 %v375, %v401
        %v411 = vadd.f32 %v376, %v401
        %v412 = vadd.f32 %v377, %v401
        %v413 = vadd.f32 %v378, %v401
        %v414 = vadd.f32 %v379, %v401
        %v415 = vadd.f32 %v380, %v401
        %v416 = vadd.f32 %v381, %v401
        %v417 = vadd.f32 %v382, %v401
        %v418 = vadd.f32 %v383, %v401
        %v419 = vadd.f32 %v384, %v401
        %v420 = vadd.f32 %v385, %v401
        %v421 = vadd.f32 %v386, %v401
        %v422 = vadd.f32 %v387, %v401
        %v423 = vadd.f32 %v388, %v401
        %v424 = vadd.f32 %v389, %v401
        %v425 = vadd.f32 %v390, %v401
        %v426 = vadd.f32 %v391, %v401
        %v427 = vadd.f32 %v392, %v401
        %v428 = vadd.f32 %v393, %v401
        %v429 = vadd.f32 %v394, %v401
        %v430 = vadd.f32 %v395, %v401
        %v431 = vadd.f32 %v396, %v401
        %v432 = vadd.f32 %v397, %v401
        %v433 = vadd.f32 %v398, %v401
        %v434 = vadd.f32 %v399, %v401
        %v435 = vmax.f32 %v403, 0.0
        %v436 = vmax.f32 %v404, 0.0
        %v437 = vmax.f32 %v405, 0.0
        %v438 = vmax.f32 %v406, 0.0
        %v439 = vmax.f32 %v407, 0.0
        %v440 = vmax.f32 %v408, 0.0
        %v441 = vmax.f32 %v409, 0.0
        %v442 = vmax.f32 %v410, 0.0
        %v443 = vmax.f32 %v411, 0.0
        %v444 = vmax.f32 %v412, 0.0
        %v445 = vmax.f32 %v413, 0.0
        %v446 = vmax.f32 %v414, 0.0
        %v447 = vmax.f32 %v415, 0.0
        %v448 = vmax.f32 %v416, 0.0
        %v449 = vmax.f32 %v417, 0.0
        %v450 = vmax.f32 %v418, 0.0
        %v451 = vmax.f32 %v419, 0.0
        %v452 = vmax.f32 %v420, 0.0
        %v453 = vmax.f32 %v421, 0.0
        %v454 = vmax.f32 %v422, 0.0
        %v455 = vmax.f32 %v423, 0.0
        %v456 = vmax.f32 %v424, 0.0
        %v457 = vmax.f32 %v425, 0.0
        %v458 = vmax.f32 %v426, 0.0
        %v459 = vmax.f32 %v427, 0.0
        %v460 = vmax.f32 %v428, 0.0
        %v461 = vmax.f32 %v429, 0.0
        %v462 = vmax.f32 %v430, 0.0
        %v463 = vmax.f32 %v431, 0.0
        %v464 = vmax.f32 %v432, 0.0
        %v465 = vmax.f32 %v433, 0.0
        %v466 = vmax.f32 %v434, 0.0
        %vm499 = vcmask 1040384
        %v500 = vrot.slane %v435, 7
        %v501 = vrot.slane %v436, 7
        %v502 = vsel %vm499, %v500, %v501
        %v503 = vrot.slane %v437, 7
        %v504 = vrot.slane %v438, 7
        %v505 = vsel %vm499, %v503, %v504
        %v506 = vrot.slane %v439, 7
        %v507 = vrot.slane %v440, 7
        %v508 = vsel %vm499, %v506, %v507
        %v509 = vrot.slane %v441, 7
        %v510 = vrot.slane %v442, 7
        %v511 = vsel %vm499, %v509, %v510
        %v512 = vrot.slane %v443, 7
        %v513 = vrot.slane %v444, 7
        %v514 = vsel %vm499, %v512, %v513
        %v515 = vrot.slane %v445, 7
        %v516 = vrot.slane %v446, 7
        %v517 = vsel %vm499, %v515, %v516
        %v518 = vrot.slane %v447, 7
        %v519 = vrot.slane %v448, 7
        %v520 = vsel %vm499, %v518, %v519
        %v521 = vrot.slane %v449, 7
        %v522 = vrot.slane %v450, 7
        %v523 = vsel %vm499, %v521, %v522
        %v524 = vrot.slane %v451, 7
        %v525 = vrot.slane %v452, 7
        %v526 = vsel %vm499, %v524, %v525
        %v527 = vrot.slane %v453, 7
        %v528 = vrot.slane %v454, 7
        %v529 = vsel %vm499, %v527, %v528
        %v530 = vrot.slane %v455, 7
        %v531 = vrot.slane %v456, 7
        %v532 = vsel %vm499, %v530, %v531
        %v533 = vrot.slane %v457, 7
        %v534 = vrot.slane %v458, 7
        %v535 = vsel %vm499, %v533, %v534
        %v536 = vrot.slane %v459, 7
        %v537 = vrot.slane %v460, 7
        %v538 = vsel %vm499, %v536, %v537
        %v539 = vrot.slane %v461, 7
        %v540 = vrot.slane %v462, 7
        %v541 = vsel %vm499, %v539, %v540
        %v542 = vrot.slane %v463, 7
        %v543 = vrot.slane %v464, 7
        %v544 = vsel %vm499, %v542, %v543
        %v545 = vrot.slane %v465, 7
        %v546 = vrot.slane %v466, 7
        %v547 = vsel %vm499, %v545, %v546
        %v595 = vsel %vm499, 0.0, %v500
        %v596 = vsel %vm499, 0.0, %v503
        %v597 = vsel %vm499, 0.0, %v506
        %v598 = vsel %vm499, 0.0, %v509
        %v599 = vsel %vm499, 0.0, %v512
        %v600 = vsel %vm499, 0.0, %v515
        %v601 = vsel %vm499, 0.0, %v518
        %v602 = vsel %vm499, 0.0, %v521
        %v603 = vsel %vm499, 0.0, %v524
        %v604 = vsel %vm499, 0.0, %v527
        %v605 = vsel %vm499, 0.0, %v530
        %v606 = vsel %vm499, 0.0, %v533
        %v607 = vsel %vm499, 0.0, %v536
        %v608 = vsel %vm499, 0.0, %v539
        %v609 = vsel %vm499, 0.0, %v542
        %v610 = vsel %vm499, 0.0, %v545
        %v611 = vsel %vm499, %v501, 0.0
        %v612 = vsel %vm499, %v504, 0.0
        %v613 = vsel %vm499, %v507, 0.0
        %v614 = vsel %vm499, %v510, 0.0
        %v615 = vsel %vm499, %v513, 0.0
        %v616 = vsel %vm499, %v516, 0.0
        %v617 = vsel %vm499, %v519, 0.0
        %v618 = vsel %vm499, %v522, 0.0
        %v619 = vsel %vm499, %v525, 0.0
        %v620 = vsel %vm499, %v528, 0.0
        %v621 = vsel %vm499, %v531, 0.0
        %v622 = vsel %vm499, %v534, 0.0
        %v623 = vsel %vm499, %v537, 0.0
        %v624 = vsel %vm499, %v540, 0.0
        %v625 = vsel %vm499, %v543, 0.0
        %v626 = vsel %vm499, %v546, 0.0
        %vm658 = vcmask 1046528
        %v659 = vrot.slane 0.0, 1
        %v660 = vsel %vm658, %v659, %v659
        %v661 = vrot.slane %v595, 1
        %v662 = vrot.slane %v502, 1
        %v663 = vsel %vm658, %v661, %v662
        %v664 = vrot.slane %v611, 1
        %v665 = vsel %vm658, %v662, %v664
        %v666 = vrot.slane %v596, 1
        %v667 = vrot.slane %v505, 1
        %v668 = vsel %vm658, %v666, %v667
        %v669 = vrot.slane %v612, 1
        %v670 = vsel %vm658, %v667, %v669
        %v671 = vrot.slane %v597, 1
        %v672 = vrot.slane %v508, 1
        %v673 = vsel %vm658, %v671, %v672
        %v674 = vrot.slane %v613, 1
        %v675 = vsel %vm658, %v672, %v674
        %v676 = vrot.slane %v598, 1
        %v677 = vrot.slane %v511, 1
        %v678 = vsel %vm658, %v676, %v677
        %v679 = vrot.slane %v614, 1
        %v680 = vsel %vm658, %v677, %v679
        %v681 = vrot.slane %v599, 1
        %v682 = vrot.slane %v514, 1
        %v683 = vsel %vm658, %v681, %v682
        %v684 = vrot.slane %v615, 1
        %v685 = vsel %vm658, %v682, %v684
        %v686 = vrot.slane %v600, 1
        %v687 = vrot.slane %v517, 1
        %v688 = vsel %vm658, %v686, %v687
        %v689 = vrot.slane %v616, 1
        %v690 = vsel %vm658, %v687, %v689
        %v691 = vrot.slane %v601, 1
        %v692 = vrot.slane %v520, 1
        %v693 = vsel %vm658, %v691, %v692
        %v694 = vrot.slane %v617, 1
        %v695 = vsel %vm658, %v692, %v694
        %v696 = vrot.slane %v602, 1
        %v697 = vrot.slane %v523, 1
        %v698 = vsel %vm658, %v696, %v697
        %v699 = vrot.slane %v618, 1
        %v700 = vsel %vm658, %v697, %v699
        %v701 = vrot.slane %v603, 1
        %v702 = vrot.slane %v526, 1
        %v703 = vsel %vm658, %v701, %v702
        %v704 = vrot.slane %v619, 1
        %v705 = vsel %vm658, %v702, %v704
        %v706 = vrot.slane %v604, 1
        %v707 = vrot.slane %v529, 1
        %v708 = vsel %vm658, %v706, %v707
        %v709 = vrot.slane %v620, 1
        %v710 = vsel %vm658, %v707, %v709
        %v711 = vrot.slane %v605, 1
        %v712 = vrot.slane %v532, 1
        %v713 = vsel %vm658, %v711, %v712
        %v714 = vrot.slane %v621, 1
        %v715 = vsel %vm658, %v712, %v714
        %v716 = vrot.slane %v606, 1
        %v717 = vrot.slane %v535, 1
        %v718 = vsel %vm658, %v716, %v717
        %v719 = vrot.slane %v622, 1
        %v720 = vsel %vm658, %v717, %v719
        %v721 = vrot.slane %v607, 1
        %v722 = vrot.slane %v538, 1
        %v723 = vsel %vm658, %v721, %v722
        %v724 = vrot.slane %v623, 1
        %v725 = vsel %vm658, %v722, %v724
        %v726 = vrot.slane %v608, 1
        %v727 = vrot.slane %v541, 1
        %v728 = vsel %vm658, %v726, %v727
        %v729 = vrot.slane %v624, 1
        %v730 = vsel %vm658, %v727, %v729
        %v731 = vrot.slane %v609, 1
        %v732 = vrot.slane %v544, 1
        %v733 = vsel %vm658, %v731, %v732
        %v734 = vrot.slane %v625, 1
        %v735 = vsel %vm658, %v732, %v734
        %736 = vrot.lane.b32.xlu0 %v660, 16
        %v737 = vpop.permute.xlu0 %736
        %738 = vrot.lane.b32.xlu0 %v663, 16
        %v739 = vpop.permute.xlu0 %738
        %740 = vrot.lane.b32.xlu0 %v665, 16
        %v741 = vpop.permute.xlu0 %740
        %742 = vrot.lane.b32.xlu0 %v668, 16
        %v743 = vpop.permute.xlu0 %742
        %744 = vrot.lane.b32.xlu0 %v670, 16
        %v745 = vpop.permute.xlu0 %744
        %746 = vrot.lane.b32.xlu0 %v673, 16
        %v747 = vpop.permute.xlu0 %746
        %748 = vrot.lane.b32.xlu0 %v675, 16
        %v749 = vpop.permute.xlu0 %748
        %750 = vrot.lane.b32.xlu0 %v678, 16
        %v751 = vpop.permute.xlu0 %750
        %752 = vrot.lane.b32.xlu0 %v680, 16
        %v753 = vpop.permute.xlu0 %752
        %754 = vrot.lane.b32.xlu0 %v683, 16
        %v755 = vpop.permute.xlu0 %754
        %756 = vrot.lane.b32.xlu0 %v685, 16
        %v757 = vpop.permute.xlu0 %756
        %758 = vrot.lane.b32.xlu0 %v688, 16
        %v759 = vpop.permute.xlu0 %758
        %760 = vrot.lane.b32.xlu0 %v690, 16
        %v761 = vpop.permute.xlu0 %760
        %762 = vrot.lane.b32.xlu0 %v693, 16
        %v763 = vpop.permute.xlu0 %762
        %764 = vrot.lane.b32.xlu0 %v695, 16
        %v765 = vpop.permute.xlu0 %764
        %766 = vrot.lane.b32.xlu0 %v698, 16
        %v767 = vpop.permute.xlu0 %766
        %768 = vrot.lane.b32.xlu0 %v700, 16
        %v769 = vpop.permute.xlu0 %768
        %770 = vrot.lane.b32.xlu0 %v703, 16
        %v771 = vpop.permute.xlu0 %770
        %772 = vrot.lane.b32.xlu0 %v705, 16
        %v773 = vpop.permute.xlu0 %772
        %774 = vrot.lane.b32.xlu0 %v708, 16
        %v775 = vpop.permute.xlu0 %774
        %776 = vrot.lane.b32.xlu0 %v710, 16
        %v777 = vpop.permute.xlu0 %776
        %778 = vrot.lane.b32.xlu0 %v713, 16
        %v779 = vpop.permute.xlu0 %778
        %780 = vrot.lane.b32.xlu0 %v715, 16
        %v781 = vpop.permute.xlu0 %780
        %782 = vrot.lane.b32.xlu0 %v718, 16
        %v783 = vpop.permute.xlu0 %782
        %784 = vrot.lane.b32.xlu0 %v720, 16
        %v785 = vpop.permute.xlu0 %784
        %786 = vrot.lane.b32.xlu0 %v723, 16
        %v787 = vpop.permute.xlu0 %786
        %788 = vrot.lane.b32.xlu0 %v725, 16
        %v789 = vpop.permute.xlu0 %788
        %790 = vrot.lane.b32.xlu0 %v728, 16
        %v791 = vpop.permute.xlu0 %790
        %792 = vrot.lane.b32.xlu0 %v730, 16
        %v793 = vpop.permute.xlu0 %792
        %794 = vrot.lane.b32.xlu0 %v733, 16
        %v795 = vpop.permute.xlu0 %794
        %796 = vrot.lane.b32.xlu0 %v735, 16
        %v797 = vpop.permute.xlu0 %796
        %vm829 = vcmask 1045504
        %v830 = vrot.slane 0.0, 2
        %v831 = vsel %vm829, %v830, %v830
        %v832 = vrot.slane %v595, 2
        %v833 = vrot.slane %v502, 2
        %v834 = vsel %vm829, %v832, %v833
        %v835 = vrot.slane %v611, 2
        %v836 = vsel %vm829, %v833, %v835
        %v837 = vrot.slane %v596, 2
        %v838 = vrot.slane %v505, 2
        %v839 = vsel %vm829, %v837, %v838
        %v840 = vrot.slane %v612, 2
        %v841 = vsel %vm829, %v838, %v840
        %v842 = vrot.slane %v597, 2
        %v843 = vrot.slane %v508, 2
        %v844 = vsel %vm829, %v842, %v843
        %v845 = vrot.slane %v613, 2
        %v846 = vsel %vm829, %v843, %v845
        %v847 = vrot.slane %v598, 2
        %v848 = vrot.slane %v511, 2
        %v849 = vsel %vm829, %v847, %v848
        %v850 = vrot.slane %v614, 2
        %v851 = vsel %vm829, %v848, %v850
        %v852 = vrot.slane %v599, 2
        %v853 = vrot.slane %v514, 2
        %v854 = vsel %vm829, %v852, %v853
        %v855 = vrot.slane %v615, 2
        %v856 = vsel %vm829, %v853, %v855
        %v857 = vrot.slane %v600, 2
        %v858 = vrot.slane %v517, 2
        %v859 = vsel %vm829, %v857, %v858
        %v860 = vrot.slane %v616, 2
        %v861 = vsel %vm829, %v858, %v860
        %v862 = vrot.slane %v601, 2
        %v863 = vrot.slane %v520, 2
        %v864 = vsel %vm829, %v862, %v863
        %v865 = vrot.slane %v617, 2
        %v866 = vsel %vm829, %v863, %v865
        %v867 = vrot.slane %v602, 2
        %v868 = vrot.slane %v523, 2
        %v869 = vsel %vm829, %v867, %v868
        %v870 = vrot.slane %v618, 2
        %v871 = vsel %vm829, %v868, %v870
        %v872 = vrot.slane %v603, 2
        %v873 = vrot.slane %v526, 2
        %v874 = vsel %vm829, %v872, %v873
        %v875 = vrot.slane %v619, 2
        %v876 = vsel %vm829, %v873, %v875
        %v877 = vrot.slane %v604, 2
        %v878 = vrot.slane %v529, 2
        %v879 = vsel %vm829, %v877, %v878
        %v880 = vrot.slane %v620, 2
        %v881 = vsel %vm829, %v878, %v880
        %v882 = vrot.slane %v605, 2
        %v883 = vrot.slane %v532, 2
        %v884 = vsel %vm829, %v882, %v883
        %v885 = vrot.slane %v621, 2
        %v886 = vsel %vm829, %v883, %v885
        %v887 = vrot.slane %v606, 2
        %v888 = vrot.slane %v535, 2
        %v889 = vsel %vm829, %v887, %v888
        %v890 = vrot.slane %v622, 2
        %v891 = vsel %vm829, %v888, %v890
        %v892 = vrot.slane %v607, 2
        %v893 = vrot.slane %v538, 2
        %v894 = vsel %vm829, %v892, %v893
        %v895 = vrot.slane %v623, 2
        %v896 = vsel %vm829, %v893, %v895
        %v897 = vrot.slane %v608, 2
        %v898 = vrot.slane %v541, 2
        %v899 = vsel %vm829, %v897, %v898
        %v900 = vrot.slane %v624, 2
        %v901 = vsel %vm829, %v898, %v900
        %v902 = vrot.slane %v609, 2
        %v903 = vrot.slane %v544, 2
        %v904 = vsel %vm829, %v902, %v903
        %v905 = vrot.slane %v625, 2
        %v906 = vsel %vm829, %v903, %v905
        %907 = vrot.lane.b32.xlu0 %v831, 32
        %v908 = vpop.permute.xlu0 %907
        %909 = vrot.lane.b32.xlu0 %v834, 32
        %v910 = vpop.permute.xlu0 %909
        %911 = vrot.lane.b32.xlu0 %v836, 32
        %v912 = vpop.permute.xlu0 %911
        %913 = vrot.lane.b32.xlu0 %v839, 32
        %v914 = vpop.permute.xlu0 %913
        %915 = vrot.lane.b32.xlu0 %v841, 32
        %v916 = vpop.permute.xlu0 %915
        %917 = vrot.lane.b32.xlu0 %v844, 32
        %v918 = vpop.permute.xlu0 %917
        %919 = vrot.lane.b32.xlu0 %v846, 32
        %v920 = vpop.permute.xlu0 %919
        %921 = vrot.lane.b32.xlu0 %v849, 32
        %v922 = vpop.permute.xlu0 %921
        %923 = vrot.lane.b32.xlu0 %v851, 32
        %v924 = vpop.permute.xlu0 %923
        %925 = vrot.lane.b32.xlu0 %v854, 32
        %v926 = vpop.permute.xlu0 %925
        %927 = vrot.lane.b32.xlu0 %v856, 32
        %v928 = vpop.permute.xlu0 %927
        %929 = vrot.lane.b32.xlu0 %v859, 32
        %v930 = vpop.permute.xlu0 %929
        %931 = vrot.lane.b32.xlu0 %v861, 32
        %v932 = vpop.permute.xlu0 %931
        %933 = vrot.lane.b32.xlu0 %v864, 32
        %v934 = vpop.permute.xlu0 %933
        %935 = vrot.lane.b32.xlu0 %v866, 32
        %v936 = vpop.permute.xlu0 %935
        %937 = vrot.lane.b32.xlu0 %v869, 32
        %v938 = vpop.permute.xlu0 %937
        %939 = vrot.lane.b32.xlu0 %v871, 32
        %v940 = vpop.permute.xlu0 %939
        %941 = vrot.lane.b32.xlu0 %v874, 32
        %v942 = vpop.permute.xlu0 %941
        %943 = vrot.lane.b32.xlu0 %v876, 32
        %v944 = vpop.permute.xlu0 %943
        %945 = vrot.lane.b32.xlu0 %v879, 32
        %v946 = vpop.permute.xlu0 %945
        %947 = vrot.lane.b32.xlu0 %v881, 32
        %v948 = vpop.permute.xlu0 %947
        %949 = vrot.lane.b32.xlu0 %v884, 32
        %v950 = vpop.permute.xlu0 %949
        %951 = vrot.lane.b32.xlu0 %v886, 32
        %v952 = vpop.permute.xlu0 %951
        %953 = vrot.lane.b32.xlu0 %v889, 32
        %v954 = vpop.permute.xlu0 %953
        %955 = vrot.lane.b32.xlu0 %v891, 32
        %v956 = vpop.permute.xlu0 %955
        %957 = vrot.lane.b32.xlu0 %v894, 32
        %v958 = vpop.permute.xlu0 %957
        %959 = vrot.lane.b32.xlu0 %v896, 32
        %v960 = vpop.permute.xlu0 %959
        %961 = vrot.lane.b32.xlu0 %v899, 32
        %v962 = vpop.permute.xlu0 %961
        %963 = vrot.lane.b32.xlu0 %v901, 32
        %v964 = vpop.permute.xlu0 %963
        %965 = vrot.lane.b32.xlu0 %v904, 32
        %v966 = vpop.permute.xlu0 %965
        %967 = vrot.lane.b32.xlu0 %v906, 32
        %v968 = vpop.permute.xlu0 %967
        %1001 = vrot.lane.b32.xlu0 %v595, 48
        %v1002 = vpop.permute.xlu0 %1001
        %1003 = vrot.lane.b32.xlu0 %v502, 48
        %v1004 = vpop.permute.xlu0 %1003
        %1005 = vrot.lane.b32.xlu0 %v596, 48
        %v1006 = vpop.permute.xlu0 %1005
        %1007 = vrot.lane.b32.xlu0 %v505, 48
        %v1008 = vpop.permute.xlu0 %1007
        %1009 = vrot.lane.b32.xlu0 %v597, 48
        %v1010 = vpop.permute.xlu0 %1009
        %1011 = vrot.lane.b32.xlu0 %v508, 48
        %v1012 = vpop.permute.xlu0 %1011
        %1013 = vrot.lane.b32.xlu0 %v598, 48
        %v1014 = vpop.permute.xlu0 %1013
        %1015 = vrot.lane.b32.xlu0 %v511, 48
        %v1016 = vpop.permute.xlu0 %1015
        %1017 = vrot.lane.b32.xlu0 %v599, 48
        %v1018 = vpop.permute.xlu0 %1017
        %1019 = vrot.lane.b32.xlu0 %v514, 48
        %v1020 = vpop.permute.xlu0 %1019
        %1021 = vrot.lane.b32.xlu0 %v600, 48
        %v1022 = vpop.permute.xlu0 %1021
        %1023 = vrot.lane.b32.xlu0 %v517, 48
        %v1024 = vpop.permute.xlu0 %1023
        %1025 = vrot.lane.b32.xlu0 %v601, 48
        %v1026 = vpop.permute.xlu0 %1025
        %1027 = vrot.lane.b32.xlu0 %v520, 48
        %v1028 = vpop.permute.xlu0 %1027
        %1029 = vrot.lane.b32.xlu0 %v602, 48
        %v1030 = vpop.permute.xlu0 %1029
        %1031 = vrot.lane.b32.xlu0 %v523, 48
        %v1032 = vpop.permute.xlu0 %1031
        %1033 = vrot.lane.b32.xlu0 %v603, 48
        %v1034 = vpop.permute.xlu0 %1033
        %1035 = vrot.lane.b32.xlu0 %v526, 48
        %v1036 = vpop.permute.xlu0 %1035
        %1037 = vrot.lane.b32.xlu0 %v604, 48
        %v1038 = vpop.permute.xlu0 %1037
        %1039 = vrot.lane.b32.xlu0 %v529, 48
        %v1040 = vpop.permute.xlu0 %1039
        %1041 = vrot.lane.b32.xlu0 %v605, 48
        %v1042 = vpop.permute.xlu0 %1041
        %1043 = vrot.lane.b32.xlu0 %v532, 48
        %v1044 = vpop.permute.xlu0 %1043
        %1045 = vrot.lane.b32.xlu0 %v606, 48
        %v1046 = vpop.permute.xlu0 %1045
        %1047 = vrot.lane.b32.xlu0 %v535, 48
        %v1048 = vpop.permute.xlu0 %1047
        %1049 = vrot.lane.b32.xlu0 %v607, 48
        %v1050 = vpop.permute.xlu0 %1049
        %1051 = vrot.lane.b32.xlu0 %v538, 48
        %v1052 = vpop.permute.xlu0 %1051
        %1053 = vrot.lane.b32.xlu0 %v608, 48
        %v1054 = vpop.permute.xlu0 %1053
        %1055 = vrot.lane.b32.xlu0 %v541, 48
        %v1056 = vpop.permute.xlu0 %1055
        %1057 = vrot.lane.b32.xlu0 %v609, 48
        %v1058 = vpop.permute.xlu0 %1057
        %1059 = vrot.lane.b32.xlu0 %v544, 48
        %v1060 = vpop.permute.xlu0 %1059
        %1061 = vrot.lane.b32.xlu0 %v610, 48
        %v1062 = vpop.permute.xlu0 %1061
        %1063 = vrot.lane.b32.xlu0 %v547, 48
        %v1064 = vpop.permute.xlu0 %1063
        %v1098 = vrot.slane %v610, 1
        %v1099 = vrot.slane %v547, 1
        %v1100 = vsel %vm658, %v1098, %v1099
        %v1101 = vrot.slane %v626, 1
        %v1102 = vsel %vm658, %v1099, %v1101
        %1103 = vrot.lane.b32.xlu0 %v663, 64
        %v1104 = vpop.permute.xlu0 %1103
        %1105 = vrot.lane.b32.xlu0 %v665, 64
        %v1106 = vpop.permute.xlu0 %1105
        %1107 = vrot.lane.b32.xlu0 %v668, 64
        %v1108 = vpop.permute.xlu0 %1107
        %1109 = vrot.lane.b32.xlu0 %v670, 64
        %v1110 = vpop.permute.xlu0 %1109
        %1111 = vrot.lane.b32.xlu0 %v673, 64
        %v1112 = vpop.permute.xlu0 %1111
        %1113 = vrot.lane.b32.xlu0 %v675, 64
        %v1114 = vpop.permute.xlu0 %1113
        %1115 = vrot.lane.b32.xlu0 %v678, 64
        %v1116 = vpop.permute.xlu0 %1115
        %1117 = vrot.lane.b32.xlu0 %v680, 64
        %v1118 = vpop.permute.xlu0 %1117
        %1119 = vrot.lane.b32.xlu0 %v683, 64
        %v1120 = vpop.permute.xlu0 %1119
        %1121 = vrot.lane.b32.xlu0 %v685, 64
        %v1122 = vpop.permute.xlu0 %1121
        %1123 = vrot.lane.b32.xlu0 %v688, 64
        %v1124 = vpop.permute.xlu0 %1123
        %1125 = vrot.lane.b32.xlu0 %v690, 64
        %v1126 = vpop.permute.xlu0 %1125
        %1127 = vrot.lane.b32.xlu0 %v693, 64
        %v1128 = vpop.permute.xlu0 %1127
        %1129 = vrot.lane.b32.xlu0 %v695, 64
        %v1130 = vpop.permute.xlu0 %1129
        %1131 = vrot.lane.b32.xlu0 %v698, 64
        %v1132 = vpop.permute.xlu0 %1131
        %1133 = vrot.lane.b32.xlu0 %v700, 64
        %v1134 = vpop.permute.xlu0 %1133
        %1135 = vrot.lane.b32.xlu0 %v703, 64
        %v1136 = vpop.permute.xlu0 %1135
        %1137 = vrot.lane.b32.xlu0 %v705, 64
        %v1138 = vpop.permute.xlu0 %1137
        %1139 = vrot.lane.b32.xlu0 %v708, 64
        %v1140 = vpop.permute.xlu0 %1139
        %1141 = vrot.lane.b32.xlu0 %v710, 64
        %v1142 = vpop.permute.xlu0 %1141
        %1143 = vrot.lane.b32.xlu0 %v713, 64
        %v1144 = vpop.permute.xlu0 %1143
        %1145 = vrot.lane.b32.xlu0 %v715, 64
        %v1146 = vpop.permute.xlu0 %1145
        %1147 = vrot.lane.b32.xlu0 %v718, 64
        %v1148 = vpop.permute.xlu0 %1147
        %1149 = vrot.lane.b32.xlu0 %v720, 64
        %v1150 = vpop.permute.xlu0 %1149
        %1151 = vrot.lane.b32.xlu0 %v723, 64
        %v1152 = vpop.permute.xlu0 %1151
        %1153 = vrot.lane.b32.xlu0 %v725, 64
        %v1154 = vpop.permute.xlu0 %1153
        %1155 = vrot.lane.b32.xlu0 %v728, 64
        %v1156 = vpop.permute.xlu0 %1155
        %1157 = vrot.lane.b32.xlu0 %v730, 64
        %v1158 = vpop.permute.xlu0 %1157
        %1159 = vrot.lane.b32.xlu0 %v733, 64
        %v1160 = vpop.permute.xlu0 %1159
        %1161 = vrot.lane.b32.xlu0 %v735, 64
        %v1162 = vpop.permute.xlu0 %1161
        %1163 = vrot.lane.b32.xlu0 %v1100, 64
        %v1164 = vpop.permute.xlu0 %1163
        %1165 = vrot.lane.b32.xlu0 %v1102, 64
        %v1166 = vpop.permute.xlu0 %1165
        %v1199 = vrot.slane %v610, 2
        %v1200 = vrot.slane %v547, 2
        %v1201 = vsel %vm829, %v1199, %v1200
        %v1202 = vrot.slane %v626, 2
        %v1203 = vsel %vm829, %v1200, %v1202
        %1204 = vrot.lane.b32.xlu0 %v834, 80
        %v1205 = vpop.permute.xlu0 %1204
        %1206 = vrot.lane.b32.xlu0 %v836, 80
        %v1207 = vpop.permute.xlu0 %1206
        %1208 = vrot.lane.b32.xlu0 %v839, 80
        %v1209 = vpop.permute.xlu0 %1208
        %1210 = vrot.lane.b32.xlu0 %v841, 80
        %v1211 = vpop.permute.xlu0 %1210
        %1212 = vrot.lane.b32.xlu0 %v844, 80
        %v1213 = vpop.permute.xlu0 %1212
        %1214 = vrot.lane.b32.xlu0 %v846, 80
        %v1215 = vpop.permute.xlu0 %1214
        %1216 = vrot.lane.b32.xlu0 %v849, 80
        %v1217 = vpop.permute.xlu0 %1216
        %1218 = vrot.lane.b32.xlu0 %v851, 80
        %v1219 = vpop.permute.xlu0 %1218
        %1220 = vrot.lane.b32.xlu0 %v854, 80
        %v1221 = vpop.permute.xlu0 %1220
        %1222 = vrot.lane.b32.xlu0 %v856, 80
        %v1223 = vpop.permute.xlu0 %1222
        %1224 = vrot.lane.b32.xlu0 %v859, 80
        %v1225 = vpop.permute.xlu0 %1224
        %1226 = vrot.lane.b32.xlu0 %v861, 80
        %v1227 = vpop.permute.xlu0 %1226
        %1228 = vrot.lane.b32.xlu0 %v864, 80
        %v1229 = vpop.permute.xlu0 %1228
        %1230 = vrot.lane.b32.xlu0 %v866, 80
        %v1231 = vpop.permute.xlu0 %1230
        %1232 = vrot.lane.b32.xlu0 %v869, 80
        %v1233 = vpop.permute.xlu0 %1232
        %1234 = vrot.lane.b32.xlu0 %v871, 80
        %v1235 = vpop.permute.xlu0 %1234
        %1236 = vrot.lane.b32.xlu0 %v874, 80
        %v1237 = vpop.permute.xlu0 %1236
        %1238 = vrot.lane.b32.xlu0 %v876, 80
        %v1239 = vpop.permute.xlu0 %1238
        %1240 = vrot.lane.b32.xlu0 %v879, 80
        %v1241 = vpop.permute.xlu0 %1240
        %1242 = vrot.lane.b32.xlu0 %v881, 80
        %v1243 = vpop.permute.xlu0 %1242
        %1244 = vrot.lane.b32.xlu0 %v884, 80
        %v1245 = vpop.permute.xlu0 %1244
        %1246 = vrot.lane.b32.xlu0 %v886, 80
        %v1247 = vpop.permute.xlu0 %1246
        %1248 = vrot.lane.b32.xlu0 %v889, 80
        %v1249 = vpop.permute.xlu0 %1248
        %1250 = vrot.lane.b32.xlu0 %v891, 80
        %v1251 = vpop.permute.xlu0 %1250
        %1252 = vrot.lane.b32.xlu0 %v894, 80
        %v1253 = vpop.permute.xlu0 %1252
        %1254 = vrot.lane.b32.xlu0 %v896, 80
        %v1255 = vpop.permute.xlu0 %1254
        %1256 = vrot.lane.b32.xlu0 %v899, 80
        %v1257 = vpop.permute.xlu0 %1256
        %1258 = vrot.lane.b32.xlu0 %v901, 80
        %v1259 = vpop.permute.xlu0 %1258
        %1260 = vrot.lane.b32.xlu0 %v904, 80
        %v1261 = vpop.permute.xlu0 %1260
        %1262 = vrot.lane.b32.xlu0 %v906, 80
        %v1263 = vpop.permute.xlu0 %1262
        %1264 = vrot.lane.b32.xlu0 %v1201, 80
        %v1265 = vpop.permute.xlu0 %1264
        %1266 = vrot.lane.b32.xlu0 %v1203, 80
        %v1267 = vpop.permute.xlu0 %1266
        %1300 = vrot.lane.b32.xlu0 %v596, 96
        %v1301 = vpop.permute.xlu0 %1300
        %1302 = vrot.lane.b32.xlu0 %v505, 96
        %v1303 = vpop.permute.xlu0 %1302
        %1304 = vrot.lane.b32.xlu0 %v597, 96
        %v1305 = vpop.permute.xlu0 %1304
        %1306 = vrot.lane.b32.xlu0 %v508, 96
        %v1307 = vpop.permute.xlu0 %1306
        %1308 = vrot.lane.b32.xlu0 %v598, 96
        %v1309 = vpop.permute.xlu0 %1308
        %1310 = vrot.lane.b32.xlu0 %v511, 96
        %v1311 = vpop.permute.xlu0 %1310
        %1312 = vrot.lane.b32.xlu0 %v599, 96
        %v1313 = vpop.permute.xlu0 %1312
        %1314 = vrot.lane.b32.xlu0 %v514, 96
        %v1315 = vpop.permute.xlu0 %1314
        %1316 = vrot.lane.b32.xlu0 %v600, 96
        %v1317 = vpop.permute.xlu0 %1316
        %1318 = vrot.lane.b32.xlu0 %v517, 96
        %v1319 = vpop.permute.xlu0 %1318
        %1320 = vrot.lane.b32.xlu0 %v601, 96
        %v1321 = vpop.permute.xlu0 %1320
        %1322 = vrot.lane.b32.xlu0 %v520, 96
        %v1323 = vpop.permute.xlu0 %1322
        %1324 = vrot.lane.b32.xlu0 %v602, 96
        %v1325 = vpop.permute.xlu0 %1324
        %1326 = vrot.lane.b32.xlu0 %v523, 96
        %v1327 = vpop.permute.xlu0 %1326
        %1328 = vrot.lane.b32.xlu0 %v603, 96
        %v1329 = vpop.permute.xlu0 %1328
        %1330 = vrot.lane.b32.xlu0 %v526, 96
        %v1331 = vpop.permute.xlu0 %1330
        %1332 = vrot.lane.b32.xlu0 %v604, 96
        %v1333 = vpop.permute.xlu0 %1332
        %1334 = vrot.lane.b32.xlu0 %v529, 96
        %v1335 = vpop.permute.xlu0 %1334
        %1336 = vrot.lane.b32.xlu0 %v605, 96
        %v1337 = vpop.permute.xlu0 %1336
        %1338 = vrot.lane.b32.xlu0 %v532, 96
        %v1339 = vpop.permute.xlu0 %1338
        %1340 = vrot.lane.b32.xlu0 %v606, 96
        %v1341 = vpop.permute.xlu0 %1340
        %1342 = vrot.lane.b32.xlu0 %v535, 96
        %v1343 = vpop.permute.xlu0 %1342
        %1344 = vrot.lane.b32.xlu0 %v607, 96
        %v1345 = vpop.permute.xlu0 %1344
        %1346 = vrot.lane.b32.xlu0 %v538, 96
        %v1347 = vpop.permute.xlu0 %1346
        %1348 = vrot.lane.b32.xlu0 %v608, 96
        %v1349 = vpop.permute.xlu0 %1348
        %1350 = vrot.lane.b32.xlu0 %v541, 96
        %v1351 = vpop.permute.xlu0 %1350
        %1352 = vrot.lane.b32.xlu0 %v609, 96
        %v1353 = vpop.permute.xlu0 %1352
        %1354 = vrot.lane.b32.xlu0 %v544, 96
        %v1355 = vpop.permute.xlu0 %1354
        %1356 = vrot.lane.b32.xlu0 %v610, 96
        %v1357 = vpop.permute.xlu0 %1356
        %1358 = vrot.lane.b32.xlu0 %v547, 96
        %v1359 = vpop.permute.xlu0 %1358
        %1360 = vrot.lane.b32.xlu0 0.0, 96
        %v1361 = vpop.permute.xlu0 %1360
        %1393 = vrot.lane.b32.xlu0 %v668, 112
        %v1394 = vpop.permute.xlu0 %1393
        %1395 = vrot.lane.b32.xlu0 %v670, 112
        %v1396 = vpop.permute.xlu0 %1395
        %1397 = vrot.lane.b32.xlu0 %v673, 112
        %v1398 = vpop.permute.xlu0 %1397
        %1399 = vrot.lane.b32.xlu0 %v675, 112
        %v1400 = vpop.permute.xlu0 %1399
        %1401 = vrot.lane.b32.xlu0 %v678, 112
        %v1402 = vpop.permute.xlu0 %1401
        %1403 = vrot.lane.b32.xlu0 %v680, 112
        %v1404 = vpop.permute.xlu0 %1403
        %1405 = vrot.lane.b32.xlu0 %v683, 112
        %v1406 = vpop.permute.xlu0 %1405
        %1407 = vrot.lane.b32.xlu0 %v685, 112
        %v1408 = vpop.permute.xlu0 %1407
        %1409 = vrot.lane.b32.xlu0 %v688, 112
        %v1410 = vpop.permute.xlu0 %1409
        %1411 = vrot.lane.b32.xlu0 %v690, 112
        %v1412 = vpop.permute.xlu0 %1411
        %1413 = vrot.lane.b32.xlu0 %v693, 112
        %v1414 = vpop.permute.xlu0 %1413
        %1415 = vrot.lane.b32.xlu0 %v695, 112
        %v1416 = vpop.permute.xlu0 %1415
        %1417 = vrot.lane.b32.xlu0 %v698, 112
        %v1418 = vpop.permute.xlu0 %1417
        %1419 = vrot.lane.b32.xlu0 %v700, 112
        %v1420 = vpop.permute.xlu0 %1419
        %1421 = vrot.lane.b32.xlu0 %v703, 112
        %v1422 = vpop.permute.xlu0 %1421
        %1423 = vrot.lane.b32.xlu0 %v705, 112
        %v1424 = vpop.permute.xlu0 %1423
        %1425 = vrot.lane.b32.xlu0 %v708, 112
        %v1426 = vpop.permute.xlu0 %1425
        %1427 = vrot.lane.b32.xlu0 %v710, 112
        %v1428 = vpop.permute.xlu0 %1427
        %1429 = vrot.lane.b32.xlu0 %v713, 112
        %v1430 = vpop.permute.xlu0 %1429
        %1431 = vrot.lane.b32.xlu0 %v715, 112
        %v1432 = vpop.permute.xlu0 %1431
        %1433 = vrot.lane.b32.xlu0 %v718, 112
        %v1434 = vpop.permute.xlu0 %1433
        %1435 = vrot.lane.b32.xlu0 %v720, 112
        %v1436 = vpop.permute.xlu0 %1435
        %1437 = vrot.lane.b32.xlu0 %v723, 112
        %v1438 = vpop.permute.xlu0 %1437
        %1439 = vrot.lane.b32.xlu0 %v725, 112
        %v1440 = vpop.permute.xlu0 %1439
        %1441 = vrot.lane.b32.xlu0 %v728, 112
        %v1442 = vpop.permute.xlu0 %1441
        %1443 = vrot.lane.b32.xlu0 %v730, 112
        %v1444 = vpop.permute.xlu0 %1443
        %1445 = vrot.lane.b32.xlu0 %v733, 112
        %v1446 = vpop.permute.xlu0 %1445
        %1447 = vrot.lane.b32.xlu0 %v735, 112
        %v1448 = vpop.permute.xlu0 %1447
        %1449 = vrot.lane.b32.xlu0 %v1100, 112
        %v1450 = vpop.permute.xlu0 %1449
        %1451 = vrot.lane.b32.xlu0 %v1102, 112
        %v1452 = vpop.permute.xlu0 %1451
        %1453 = vrot.lane.b32.xlu0 %v660, 112
        %v1454 = vpop.permute.xlu0 %1453
        %vm1517 = vcmask 130048
        %v1518 = vsel %vm1517, 0.0, %v737
        %v1519 = vsel %vm1517, %v595, %v739
        %v1520 = vsel %vm1517, %v502, %v741
        %v1521 = vsel %vm1517, %v596, %v743
        %v1522 = vsel %vm1517, %v505, %v745
        %v1523 = vsel %vm1517, %v597, %v747
        %v1524 = vsel %vm1517, %v508, %v749
        %v1525 = vsel %vm1517, %v598, %v751
        %v1526 = vsel %vm1517, %v511, %v753
        %v1527 = vsel %vm1517, %v599, %v755
        %v1528 = vsel %vm1517, %v514, %v757
        %v1529 = vsel %vm1517, %v600, %v759
        %v1530 = vsel %vm1517, %v517, %v761
        %v1531 = vsel %vm1517, %v601, %v763
        %v1532 = vsel %vm1517, %v520, %v765
        %v1533 = vsel %vm1517, %v602, %v767
        %v1534 = vsel %vm1517, %v523, %v769
        %v1535 = vsel %vm1517, %v603, %v771
        %v1536 = vsel %vm1517, %v526, %v773
        %v1537 = vsel %vm1517, %v604, %v775
        %v1538 = vsel %vm1517, %v529, %v777
        %v1539 = vsel %vm1517, %v605, %v779
        %v1540 = vsel %vm1517, %v532, %v781
        %v1541 = vsel %vm1517, %v606, %v783
        %v1542 = vsel %vm1517, %v535, %v785
        %v1543 = vsel %vm1517, %v607, %v787
        %v1544 = vsel %vm1517, %v538, %v789
        %v1545 = vsel %vm1517, %v608, %v791
        %v1546 = vsel %vm1517, %v541, %v793
        %v1547 = vsel %vm1517, %v609, %v795
        %v1548 = vsel %vm1517, %v544, %v797
        %vm1549 = vcmask 261120
        %v1550 = vsel %vm1549, %v1518, %v908
        %v1551 = vsel %vm1549, %v1519, %v910
        %v1552 = vsel %vm1549, %v1520, %v912
        %v1553 = vsel %vm1549, %v1521, %v914
        %v1554 = vsel %vm1549, %v1522, %v916
        %v1555 = vsel %vm1549, %v1523, %v918
        %v1556 = vsel %vm1549, %v1524, %v920
        %v1557 = vsel %vm1549, %v1525, %v922
        %v1558 = vsel %vm1549, %v1526, %v924
        %v1559 = vsel %vm1549, %v1527, %v926
        %v1560 = vsel %vm1549, %v1528, %v928
        %v1561 = vsel %vm1549, %v1529, %v930
        %v1562 = vsel %vm1549, %v1530, %v932
        %v1563 = vsel %vm1549, %v1531, %v934
        %v1564 = vsel %vm1549, %v1532, %v936
        %v1565 = vsel %vm1549, %v1533, %v938
        %v1566 = vsel %vm1549, %v1534, %v940
        %v1567 = vsel %vm1549, %v1535, %v942
        %v1568 = vsel %vm1549, %v1536, %v944
        %v1569 = vsel %vm1549, %v1537, %v946
        %v1570 = vsel %vm1549, %v1538, %v948
        %v1571 = vsel %vm1549, %v1539, %v950
        %v1572 = vsel %vm1549, %v1540, %v952
        %v1573 = vsel %vm1549, %v1541, %v954
        %v1574 = vsel %vm1549, %v1542, %v956
        %v1575 = vsel %vm1549, %v1543, %v958
        %v1576 = vsel %vm1549, %v1544, %v960
        %v1577 = vsel %vm1549, %v1545, %v962
        %v1578 = vsel %vm1549, %v1546, %v964
        %v1579 = vsel %vm1549, %v1547, %v966
        %v1580 = vsel %vm1549, %v1548, %v968
        %vm1581 = vcmask 392192
        %v1582 = vsel %vm1581, %v1550, %v1002
        %v1583 = vsel %vm1581, %v1550, %v1004
        %v1584 = vsel %vm1581, %v1551, %v1006
        %v1585 = vsel %vm1581, %v1552, %v1008
        %v1586 = vsel %vm1581, %v1553, %v1010
        %v1587 = vsel %vm1581, %v1554, %v1012
        %v1588 = vsel %vm1581, %v1555, %v1014
        %v1589 = vsel %vm1581, %v1556, %v1016
        %v1590 = vsel %vm1581, %v1557, %v1018
        %v1591 = vsel %vm1581, %v1558, %v1020
        %v1592 = vsel %vm1581, %v1559, %v1022
        %v1593 = vsel %vm1581, %v1560, %v1024
        %v1594 = vsel %vm1581, %v1561, %v1026
        %v1595 = vsel %vm1581, %v1562, %v1028
        %v1596 = vsel %vm1581, %v1563, %v1030
        %v1597 = vsel %vm1581, %v1564, %v1032
        %v1598 = vsel %vm1581, %v1565, %v1034
        %v1599 = vsel %vm1581, %v1566, %v1036
        %v1600 = vsel %vm1581, %v1567, %v1038
        %v1601 = vsel %vm1581, %v1568, %v1040
        %v1602 = vsel %vm1581, %v1569, %v1042
        %v1603 = vsel %vm1581, %v1570, %v1044
        %v1604 = vsel %vm1581, %v1571, %v1046
        %v1605 = vsel %vm1581, %v1572, %v1048
        %v1606 = vsel %vm1581, %v1573, %v1050
        %v1607 = vsel %vm1581, %v1574, %v1052
        %v1608 = vsel %vm1581, %v1575, %v1054
        %v1609 = vsel %vm1581, %v1576, %v1056
        %v1610 = vsel %vm1581, %v1577, %v1058
        %v1611 = vsel %vm1581, %v1578, %v1060
        %v1612 = vsel %vm1581, %v1579, %v1062
        %v1613 = vsel %vm1581, %v1580, %v1064
        %vm1614 = vcmask 523264
        %v1615 = vsel %vm1614, %v1582, %v1104
        %v1616 = vsel %vm1614, %v1583, %v1106
        %v1617 = vsel %vm1614, %v1584, %v1108
        %v1618 = vsel %vm1614, %v1585, %v1110
        %v1619 = vsel %vm1614, %v1586, %v1112
        %v1620 = vsel %vm1614, %v1587, %v1114
        %v1621 = vsel %vm1614, %v1588, %v1116
        %v1622 = vsel %vm1614, %v1589, %v1118
        %v1623 = vsel %vm1614, %v1590, %v1120
        %v1624 = vsel %vm1614, %v1591, %v1122
        %v1625 = vsel %vm1614, %v1592, %v1124
        %v1626 = vsel %vm1614, %v1593, %v1126
        %v1627 = vsel %vm1614, %v1594, %v1128
        %v1628 = vsel %vm1614, %v1595, %v1130
        %v1629 = vsel %vm1614, %v1596, %v1132
        %v1630 = vsel %vm1614, %v1597, %v1134
        %v1631 = vsel %vm1614, %v1598, %v1136
        %v1632 = vsel %vm1614, %v1599, %v1138
        %v1633 = vsel %vm1614, %v1600, %v1140
        %v1634 = vsel %vm1614, %v1601, %v1142
        %v1635 = vsel %vm1614, %v1602, %v1144
        %v1636 = vsel %vm1614, %v1603, %v1146
        %v1637 = vsel %vm1614, %v1604, %v1148
        %v1638 = vsel %vm1614, %v1605, %v1150
        %v1639 = vsel %vm1614, %v1606, %v1152
        %v1640 = vsel %vm1614, %v1607, %v1154
        %v1641 = vsel %vm1614, %v1608, %v1156
        %v1642 = vsel %vm1614, %v1609, %v1158
        %v1643 = vsel %vm1614, %v1610, %v1160
        %v1644 = vsel %vm1614, %v1611, %v1162
        %v1645 = vsel %vm1614, %v1612, %v1164
        %v1646 = vsel %vm1614, %v1613, %v1166
        %vm1647 = vcmask 654336
        %v1648 = vsel %vm1647, %v1615, %v1205
        %v1649 = vsel %vm1647, %v1616, %v1207
        %v1650 = vsel %vm1647, %v1617, %v1209
        %v1651 = vsel %vm1647, %v1618, %v1211
        %v1652 = vsel %vm1647, %v1619, %v1213
        %v1653 = vsel %vm1647, %v1620, %v1215
        %v1654 = vsel %vm1647, %v1621, %v1217
        %v1655 = vsel %vm1647, %v1622, %v1219
        %v1656 = vsel %vm1647, %v1623, %v1221
        %v1657 = vsel %vm1647, %v1624, %v1223
        %v1658 = vsel %vm1647, %v1625, %v1225
        %v1659 = vsel %vm1647, %v1626, %v1227
        %v1660 = vsel %vm1647, %v1627, %v1229
        %v1661 = vsel %vm1647, %v1628, %v1231
        %v1662 = vsel %vm1647, %v1629, %v1233
        %v1663 = vsel %vm1647, %v1630, %v1235
        %v1664 = vsel %vm1647, %v1631, %v1237
        %v1665 = vsel %vm1647, %v1632, %v1239
        %v1666 = vsel %vm1647, %v1633, %v1241
        %v1667 = vsel %vm1647, %v1634, %v1243
        %v1668 = vsel %vm1647, %v1635, %v1245
        %v1669 = vsel %vm1647, %v1636, %v1247
        %v1670 = vsel %vm1647, %v1637, %v1249
        %v1671 = vsel %vm1647, %v1638, %v1251
        %v1672 = vsel %vm1647, %v1639, %v1253
        %v1673 = vsel %vm1647, %v1640, %v1255
        %v1674 = vsel %vm1647, %v1641, %v1257
        %v1675 = vsel %vm1647, %v1642, %v1259
        %v1676 = vsel %vm1647, %v1643, %v1261
        %v1677 = vsel %vm1647, %v1644, %v1263
        %v1678 = vsel %vm1647, %v1645, %v1265
        %v1679 = vsel %vm1647, %v1646, %v1267
        %vm1680 = vcmask 785408
        %v1681 = vsel %vm1680, %v1648, %v1301
        %v1682 = vsel %vm1680, %v1649, %v1303
        %v1683 = vsel %vm1680, %v1650, %v1305
        %v1684 = vsel %vm1680, %v1651, %v1307
        %v1685 = vsel %vm1680, %v1652, %v1309
        %v1686 = vsel %vm1680, %v1653, %v1311
        %v1687 = vsel %vm1680, %v1654, %v1313
        %v1688 = vsel %vm1680, %v1655, %v1315
        %v1689 = vsel %vm1680, %v1656, %v1317
        %v1690 = vsel %vm1680, %v1657, %v1319
        %v1691 = vsel %vm1680, %v1658, %v1321
        %v1692 = vsel %vm1680, %v1659, %v1323
        %v1693 = vsel %vm1680, %v1660, %v1325
        %v1694 = vsel %vm1680, %v1661, %v1327
        %v1695 = vsel %vm1680, %v1662, %v1329
        %v1696 = vsel %vm1680, %v1663, %v1331
        %v1697 = vsel %vm1680, %v1664, %v1333
        %v1698 = vsel %vm1680, %v1665, %v1335
        %v1699 = vsel %vm1680, %v1666, %v1337
        %v1700 = vsel %vm1680, %v1667, %v1339
        %v1701 = vsel %vm1680, %v1668, %v1341
        %v1702 = vsel %vm1680, %v1669, %v1343
        %v1703 = vsel %vm1680, %v1670, %v1345
        %v1704 = vsel %vm1680, %v1671, %v1347
        %v1705 = vsel %vm1680, %v1672, %v1349
        %v1706 = vsel %vm1680, %v1673, %v1351
        %v1707 = vsel %vm1680, %v1674, %v1353
        %v1708 = vsel %vm1680, %v1675, %v1355
        %v1709 = vsel %vm1680, %v1676, %v1357
        %v1710 = vsel %vm1680, %v1677, %v1359
        %v1711 = vsel %vm1680, %v1678, %v1361
        %v1712 = vsel %vm1680, %v1679, %v1361
        %vm1713 = vcmask 916480
        %v1714 = vsel %vm1713, %v1681, %v1394
        %v1715 = vsel %vm1713, %v1682, %v1396
        %v1716 = vsel %vm1713, %v1683, %v1398
        %v1717 = vsel %vm1713, %v1684, %v1400
        %v1718 = vsel %vm1713, %v1685, %v1402
        %v1719 = vsel %vm1713, %v1686, %v1404
        %v1720 = vsel %vm1713, %v1687, %v1406
        %v1721 = vsel %vm1713, %v1688, %v1408
        %v1722 = vsel %vm1713, %v1689, %v1410
        %v1723 = vsel %vm1713, %v1690, %v1412
        %v1724 = vsel %vm1713, %v1691, %v1414
        %v1725 = vsel %vm1713, %v1692, %v1416
        %v1726 = vsel %vm1713, %v1693, %v1418
        %v1727 = vsel %vm1713, %v1694, %v1420
        %v1728 = vsel %vm1713, %v1695, %v1422
        %v1729 = vsel %vm1713, %v1696, %v1424
        %v1730 = vsel %vm1713, %v1697, %v1426
        %v1731 = vsel %vm1713, %v1698, %v1428
        %v1732 = vsel %vm1713, %v1699, %v1430
        %v1733 = vsel %vm1713, %v1700, %v1432
        %v1734 = vsel %vm1713, %v1701, %v1434
        %v1735 = vsel %vm1713, %v1702, %v1436
        %v1736 = vsel %vm1713, %v1703, %v1438
        %v1737 = vsel %vm1713, %v1704, %v1440
        %v1738 = vsel %vm1713, %v1705, %v1442
        %v1739 = vsel %vm1713, %v1706, %v1444
        %v1740 = vsel %vm1713, %v1707, %v1446
        %v1741 = vsel %vm1713, %v1708, %v1448
        %v1742 = vsel %vm1713, %v1709, %v1450
        %v1743 = vsel %vm1713, %v1710, %v1452
        %v1744 = vsel %vm1713, %v1711, %v1454
        %v1745 = vsel %vm1713, %v1712, %v1454
        %v1746 = vpack.c.bf16 %v1715, %v1714
        %v1747 = vpack.c.bf16 %v841, %v839
        %v1748 = vpack.c.bf16 %v1717, %v1716
        %v1749 = vpack.c.bf16 %v846, %v844
        %v1750 = vpack.c.bf16 %v1719, %v1718
        %v1751 = vpack.c.bf16 %v851, %v849
        %v1752 = vpack.c.bf16 %v1721, %v1720
        %v1753 = vpack.c.bf16 %v856, %v854
        %v1754 = vpack.c.bf16 %v1723, %v1722
        %v1755 = vpack.c.bf16 %v861, %v859
        %v1756 = vpack.c.bf16 %v1725, %v1724
        %v1757 = vpack.c.bf16 %v866, %v864
        %v1758 = vpack.c.bf16 %v1727, %v1726
        %v1759 = vpack.c.bf16 %v871, %v869
        %v1760 = vpack.c.bf16 %v1729, %v1728
        %v1761 = vpack.c.bf16 %v876, %v874
        %v1762 = vpack.c.bf16 %v1731, %v1730
        %v1763 = vpack.c.bf16 %v881, %v879
        %v1764 = vpack.c.bf16 %v1733, %v1732
        %v1765 = vpack.c.bf16 %v886, %v884
        %v1766 = vpack.c.bf16 %v1735, %v1734
        %v1767 = vpack.c.bf16 %v891, %v889
        %v1768 = vpack.c.bf16 %v1737, %v1736
        %v1769 = vpack.c.bf16 %v896, %v894
        %v1770 = vpack.c.bf16 %v1739, %v1738
        %v1771 = vpack.c.bf16 %v901, %v899
        %v1772 = vpack.c.bf16 %v1741, %v1740
        %v1773 = vpack.c.bf16 %v906, %v904
        %v1774 = vpack.c.bf16 %v1743, %v1742
        %v1775 = vpack.c.bf16 %v1203, %v1201
        %v1776 = vpack.c.bf16 %v1745, %v1744
        %v1777 = vpack.c.bf16 %v831, %v831
        %v1778 = vld [vmem:[%s3] sm:$0xf]
        %v1779 = vld [vmem:[%s3 + $0x4] sm:$0xf]
        %v1780 = vld [vmem:[%s3 + $0x8] sm:$0xf]
        %v1781 = vld [vmem:[%s3 + $0xc] sm:$0xf]
        %v1782 = vld [vmem:[%s3 + $0x10] sm:$0xf]
        %v1783 = vld [vmem:[%s3 + $0x14] sm:$0xf]
        %v1784 = vld [vmem:[%s3 + $0x18] sm:$0xf]
        %v1785 = vld [vmem:[%s3 + $0x1c] sm:$0xf]
        %v1786 = vld [vmem:[%s3 + $0x20] sm:$0xf]
        %v1787 = vld [vmem:[%s3 + $0x24] sm:$0xf]
        %v1788 = vld [vmem:[%s3 + $0x28] sm:$0xf]
        %v1789 = vld [vmem:[%s3 + $0x2c] sm:$0xf]
        %v1790 = vld [vmem:[%s3 + $0x30] sm:$0xf]
        %v1791 = vld [vmem:[%s3 + $0x34] sm:$0xf]
        %v1792 = vld [vmem:[%s3 + $0x38] sm:$0xf]
        %v1793 = vld [vmem:[%s3 + $0x3c] sm:$0xf]
        %v1794 = vld [vmem:[%s3 + $0x40] sm:$0xf]
        %v1795 = vld [vmem:[%s3 + $0x44] sm:$0xf]
        %v1796 = vld [vmem:[%s4] sm:$0x1]
        %v1798 = vperm.slane %v1796, 0
        %v1818 = vunpack.c.l.b16 %v1778
        %v1819 = vunpack.c.l.b16 %v1779
        %v1820 = vunpack.c.l.b16 %v1780
        %v1821 = vunpack.c.l.b16 %v1781
        %v1822 = vunpack.c.l.b16 %v1782
        %v1823 = vunpack.c.l.b16 %v1783
        %v1824 = vunpack.c.l.b16 %v1784
        %v1825 = vunpack.c.l.b16 %v1785
        %v1826 = vunpack.c.l.b16 %v1786
        %v1827 = vunpack.c.l.b16 %v1787
        %v1828 = vunpack.c.l.b16 %v1788
        %v1829 = vunpack.c.l.b16 %v1789
        %v1830 = vunpack.c.l.b16 %v1790
        %v1831 = vunpack.c.l.b16 %v1791
        %v1832 = vunpack.c.l.b16 %v1792
        %v1833 = vunpack.c.l.b16 %v1793
        %v1834 = vunpack.c.l.b16 %v1794
        %v1835 = vunpack.c.l.b16 %v1795
        %v1836 = vpack.c.b16 %v1819, %v1818
        %v1837 = vpack.c.b16 %v1821, %v1820
        %v1838 = vpack.c.b16 %v1823, %v1822
        %v1839 = vpack.c.b16 %v1825, %v1824
        %v1840 = vpack.c.b16 %v1827, %v1826
        %v1841 = vpack.c.b16 %v1829, %v1828
        %v1842 = vpack.c.b16 %v1831, %v1830
        %v1843 = vpack.c.b16 %v1833, %v1832
        %v1844 = vpack.c.b16 %v1835, %v1834
        %v1855 = vsel %vm1517, %v1747, 0
        %v1858 = vsel %vm1517, %v1749, 0
        %v1861 = vsel %vm1517, %v1751, 0
        %v1864 = vsel %vm1517, %v1753, 0
        %v1867 = vsel %vm1517, %v1755, 0
        %v1870 = vsel %vm1517, %v1757, 0
        %v1873 = vsel %vm1517, %v1759, 0
        %v1876 = vsel %vm1517, %v1761, 0
        %v1879 = vsel %vm1517, %v1763, 0
        %v1882 = vsel %vm1517, %v1765, 0
        %v1885 = vsel %vm1517, %v1767, 0
        %v1888 = vsel %vm1517, %v1769, 0
        %v1891 = vsel %vm1517, %v1771, 0
        %v1894 = vsel %vm1517, %v1773, 0
        %v1897 = vsel %vm1517, %v1775, 0
        %v1900 = vsel %vm1517, %v1777, 0
        %1902 = vmatpush.bf16.msra.mxu0 %v1843
        %1903 = vmatpush.bf16.msra.mxu0 %v1842
        %1904 = vmatpush.bf16.msra.mxu0 %v1841
        %1905 = vmatpush.bf16.msra.mxu0 %v1840
        %1906 = vmatpush.bf16.msra.mxu0 %v1839
        %1907 = vmatpush.bf16.msra.mxu0 %v1838
        %1908 = vmatpush.bf16.msra.mxu0 %v1837
        %1909 = vmatpush.bf16.msra.mxu0 %v1836
        %1910 = vmatmul.bf16.gmra.mxu0 %v1746
        %v1911 = vpop.f32.mrf.mxu0
        %v1912 = vadd.f32 %v1798, %v1911
        %v1913 = vpop.f32.mrf.mxu0
        %v1914 = vadd.f32 %v1798, %v1913
        %1915 = vmatmul.bf16.gmra.mxu0 %v1748
        %v1916 = vpop.f32.mrf.mxu0
        %v1917 = vadd.f32 %v1798, %v1916
        %v1918 = vpop.f32.mrf.mxu0
        %v1919 = vadd.f32 %v1798, %v1918
        %1920 = vmatmul.bf16.gmra.mxu0 %v1750
        %v1921 = vpop.f32.mrf.mxu0
        %v1922 = vadd.f32 %v1798, %v1921
        %v1923 = vpop.f32.mrf.mxu0
        %v1924 = vadd.f32 %v1798, %v1923
        %1925 = vmatmul.bf16.gmra.mxu0 %v1752
        %v1926 = vpop.f32.mrf.mxu0
        %v1927 = vadd.f32 %v1798, %v1926
        %v1928 = vpop.f32.mrf.mxu0
        %v1929 = vadd.f32 %v1798, %v1928
        %1930 = vmatmul.bf16.gmra.mxu0 %v1754
        %v1931 = vpop.f32.mrf.mxu0
        %v1932 = vadd.f32 %v1798, %v1931
        %v1933 = vpop.f32.mrf.mxu0
        %v1934 = vadd.f32 %v1798, %v1933
        %1935 = vmatmul.bf16.gmra.mxu0 %v1756
        %v1936 = vpop.f32.mrf.mxu0
        %v1937 = vadd.f32 %v1798, %v1936
        %v1938 = vpop.f32.mrf.mxu0
        %v1939 = vadd.f32 %v1798, %v1938
        %1940 = vmatmul.bf16.gmra.mxu0 %v1758
        %v1941 = vpop.f32.mrf.mxu0
        %v1942 = vadd.f32 %v1798, %v1941
        %v1943 = vpop.f32.mrf.mxu0
        %v1944 = vadd.f32 %v1798, %v1943
        %1945 = vmatmul.bf16.gmra.mxu0 %v1760
        %v1946 = vpop.f32.mrf.mxu0
        %v1947 = vadd.f32 %v1798, %v1946
        %v1948 = vpop.f32.mrf.mxu0
        %v1949 = vadd.f32 %v1798, %v1948
        %1950 = vmatmul.bf16.gmra.mxu0 %v1762
        %v1951 = vpop.f32.mrf.mxu0
        %v1952 = vadd.f32 %v1798, %v1951
        %v1953 = vpop.f32.mrf.mxu0
        %v1954 = vadd.f32 %v1798, %v1953
        %1955 = vmatmul.bf16.gmra.mxu0 %v1764
        %v1956 = vpop.f32.mrf.mxu0
        %v1957 = vadd.f32 %v1798, %v1956
        %v1958 = vpop.f32.mrf.mxu0
        %v1959 = vadd.f32 %v1798, %v1958
        %1960 = vmatmul.bf16.gmra.mxu0 %v1766
        %v1961 = vpop.f32.mrf.mxu0
        %v1962 = vadd.f32 %v1798, %v1961
        %v1963 = vpop.f32.mrf.mxu0
        %v1964 = vadd.f32 %v1798, %v1963
        %1965 = vmatmul.bf16.gmra.mxu0 %v1768
        %v1966 = vpop.f32.mrf.mxu0
        %v1967 = vadd.f32 %v1798, %v1966
        %v1968 = vpop.f32.mrf.mxu0
        %v1969 = vadd.f32 %v1798, %v1968
        %1970 = vmatmul.bf16.gmra.mxu0 %v1770
        %v1971 = vpop.f32.mrf.mxu0
        %v1972 = vadd.f32 %v1798, %v1971
        %v1973 = vpop.f32.mrf.mxu0
        %v1974 = vadd.f32 %v1798, %v1973
        %1975 = vmatmul.bf16.gmra.mxu0 %v1772
        %v1976 = vpop.f32.mrf.mxu0
        %v1977 = vadd.f32 %v1798, %v1976
        %v1978 = vpop.f32.mrf.mxu0
        %v1979 = vadd.f32 %v1798, %v1978
        %1980 = vmatmul.bf16.gmra.mxu0 %v1774
        %v1981 = vpop.f32.mrf.mxu0
        %v1982 = vadd.f32 %v1798, %v1981
        %v1983 = vpop.f32.mrf.mxu0
        %v1984 = vadd.f32 %v1798, %v1983
        %1985 = vmatmul.bf16.gmra.mxu0 %v1776
        %v1986 = vpop.f32.mrf.mxu0
        %v1987 = vadd.f32 %v1798, %v1986
        %v1988 = vpop.f32.mrf.mxu0
        %v1989 = vadd.f32 %v1798, %v1988
        %1990 = vdwg.mxu0
        %1991 = vmatpush.bf16.msra.mxu0 0
        %1992 = vmatpush.bf16.msra.mxu0 0
        %1993 = vmatpush.bf16.msra.mxu0 0
        %1994 = vmatpush.bf16.msra.mxu0 0
        %1995 = vmatpush.bf16.msra.mxu0 0
        %1996 = vmatpush.bf16.msra.mxu0 0
        %1997 = vmatpush.bf16.msra.mxu0 0
        %1998 = vmatpush.bf16.msra.mxu0 %v1844
        %1999 = vmatmul.bf16.gmra.mxu0 %v1855
        %v2000 = vpop.f32.mrf.mxu0
        %v2001 = vadd.f32 %v1912, %v2000
        %v2002 = vpop.f32.mrf.mxu0
        %v2003 = vadd.f32 %v1914, %v2002
        %2004 = vmatmul.bf16.gmra.mxu0 %v1858
        %v2005 = vpop.f32.mrf.mxu0
        %v2006 = vadd.f32 %v1917, %v2005
        %v2007 = vpop.f32.mrf.mxu0
        %v2008 = vadd.f32 %v1919, %v2007
        %2009 = vmatmul.bf16.gmra.mxu0 %v1861
        %v2010 = vpop.f32.mrf.mxu0
        %v2011 = vadd.f32 %v1922, %v2010
        %v2012 = vpop.f32.mrf.mxu0
        %v2013 = vadd.f32 %v1924, %v2012
        %2014 = vmatmul.bf16.gmra.mxu0 %v1864
        %v2015 = vpop.f32.mrf.mxu0
        %v2016 = vadd.f32 %v1927, %v2015
        %v2017 = vpop.f32.mrf.mxu0
        %v2018 = vadd.f32 %v1929, %v2017
        %2019 = vmatmul.bf16.gmra.mxu0 %v1867
        %v2020 = vpop.f32.mrf.mxu0
        %v2021 = vadd.f32 %v1932, %v2020
        %v2022 = vpop.f32.mrf.mxu0
        %v2023 = vadd.f32 %v1934, %v2022
        %2024 = vmatmul.bf16.gmra.mxu0 %v1870
        %v2025 = vpop.f32.mrf.mxu0
        %v2026 = vadd.f32 %v1937, %v2025
        %v2027 = vpop.f32.mrf.mxu0
        %v2028 = vadd.f32 %v1939, %v2027
        %2029 = vmatmul.bf16.gmra.mxu0 %v1873
        %v2030 = vpop.f32.mrf.mxu0
        %v2031 = vadd.f32 %v1942, %v2030
        %v2032 = vpop.f32.mrf.mxu0
        %v2033 = vadd.f32 %v1944, %v2032
        %2034 = vmatmul.bf16.gmra.mxu0 %v1876
        %v2035 = vpop.f32.mrf.mxu0
        %v2036 = vadd.f32 %v1947, %v2035
        %v2037 = vpop.f32.mrf.mxu0
        %v2038 = vadd.f32 %v1949, %v2037
        %2039 = vmatmul.bf16.gmra.mxu0 %v1879
        %v2040 = vpop.f32.mrf.mxu0
        %v2041 = vadd.f32 %v1952, %v2040
        %v2042 = vpop.f32.mrf.mxu0
        %v2043 = vadd.f32 %v1954, %v2042
        %2044 = vmatmul.bf16.gmra.mxu0 %v1882
        %v2045 = vpop.f32.mrf.mxu0
        %v2046 = vadd.f32 %v1957, %v2045
        %v2047 = vpop.f32.mrf.mxu0
        %v2048 = vadd.f32 %v1959, %v2047
        %2049 = vmatmul.bf16.gmra.mxu0 %v1885
        %v2050 = vpop.f32.mrf.mxu0
        %v2051 = vadd.f32 %v1962, %v2050
        %v2052 = vpop.f32.mrf.mxu0
        %v2053 = vadd.f32 %v1964, %v2052
        %2054 = vmatmul.bf16.gmra.mxu0 %v1888
        %v2055 = vpop.f32.mrf.mxu0
        %v2056 = vadd.f32 %v1967, %v2055
        %v2057 = vpop.f32.mrf.mxu0
        %v2058 = vadd.f32 %v1969, %v2057
        %2059 = vmatmul.bf16.gmra.mxu0 %v1891
        %v2060 = vpop.f32.mrf.mxu0
        %v2061 = vadd.f32 %v1972, %v2060
        %v2062 = vpop.f32.mrf.mxu0
        %v2063 = vadd.f32 %v1974, %v2062
        %2064 = vmatmul.bf16.gmra.mxu0 %v1894
        %v2065 = vpop.f32.mrf.mxu0
        %v2066 = vadd.f32 %v1977, %v2065
        %v2067 = vpop.f32.mrf.mxu0
        %v2068 = vadd.f32 %v1979, %v2067
        %2069 = vmatmul.bf16.gmra.mxu0 %v1897
        %v2070 = vpop.f32.mrf.mxu0
        %v2071 = vadd.f32 %v1982, %v2070
        %v2072 = vpop.f32.mrf.mxu0
        %v2073 = vadd.f32 %v1984, %v2072
        %2074 = vmatmul.bf16.gmra.mxu0 %v1900
        %v2075 = vpop.f32.mrf.mxu0
        %v2076 = vadd.f32 %v1987, %v2075
        %v2077 = vpop.f32.mrf.mxu0
        %v2078 = vadd.f32 %v1989, %v2077
        %2079 = vdwg.mxu0
        %v2080 = vtanh.pop %v2001
        %v2081 = vtanh.pop %v2003
        %v2082 = vtanh.pop %v2006
        %v2083 = vtanh.pop %v2008
        %v2084 = vtanh.pop %v2011
        %v2085 = vtanh.pop %v2013
        %v2086 = vtanh.pop %v2016
        %v2087 = vtanh.pop %v2018
        %v2088 = vtanh.pop %v2021
        %v2089 = vtanh.pop %v2023
        %v2090 = vtanh.pop %v2026
        %v2091 = vtanh.pop %v2028
        %v2092 = vtanh.pop %v2031
        %v2093 = vtanh.pop %v2033
        %v2094 = vtanh.pop %v2036
        %v2095 = vtanh.pop %v2038
        %v2096 = vtanh.pop %v2041
        %v2097 = vtanh.pop %v2043
        %v2098 = vtanh.pop %v2046
        %v2099 = vtanh.pop %v2048
        %v2100 = vtanh.pop %v2051
        %v2101 = vtanh.pop %v2053
        %v2102 = vtanh.pop %v2056
        %v2103 = vtanh.pop %v2058
        %v2104 = vtanh.pop %v2061
        %v2105 = vtanh.pop %v2063
        %v2106 = vtanh.pop %v2066
        %v2107 = vtanh.pop %v2068
        %v2108 = vtanh.pop %v2071
        %v2109 = vtanh.pop %v2073
        %v2110 = vtanh.pop %v2076
        %v2111 = vtanh.pop %v2078
        %v2112 = vsel %vm1517, %v2080, 0.0
        %v2113 = vsel %vm1517, %v2081, 0.0
        %v2114 = vadd.f32 %v2112, %v2113
        %v2115 = vsel %vm1517, %v2082, 0.0
        %v2116 = vadd.f32 %v2114, %v2115
        %v2117 = vsel %vm1517, %v2083, 0.0
        %v2118 = vadd.f32 %v2116, %v2117
        %v2119 = vsel %vm1517, %v2084, 0.0
        %v2120 = vadd.f32 %v2118, %v2119
        %v2121 = vsel %vm1517, %v2085, 0.0
        %v2122 = vadd.f32 %v2120, %v2121
        %v2123 = vsel %vm1517, %v2086, 0.0
        %v2124 = vadd.f32 %v2122, %v2123
        %v2125 = vsel %vm1517, %v2087, 0.0
        %v2126 = vadd.f32 %v2124, %v2125
        %v2127 = vsel %vm1517, %v2088, 0.0
        %v2128 = vadd.f32 %v2126, %v2127
        %v2129 = vsel %vm1517, %v2089, 0.0
        %v2130 = vadd.f32 %v2128, %v2129
        %v2131 = vsel %vm1517, %v2090, 0.0
        %v2132 = vadd.f32 %v2130, %v2131
        %v2133 = vsel %vm1517, %v2091, 0.0
        %v2134 = vadd.f32 %v2132, %v2133
        %v2135 = vsel %vm1517, %v2092, 0.0
        %v2136 = vadd.f32 %v2134, %v2135
        %v2137 = vsel %vm1517, %v2093, 0.0
        %v2138 = vadd.f32 %v2136, %v2137
        %v2139 = vsel %vm1517, %v2094, 0.0
        %v2140 = vadd.f32 %v2138, %v2139
        %v2141 = vsel %vm1517, %v2095, 0.0
        %v2142 = vadd.f32 %v2140, %v2141
        %v2143 = vsel %vm1517, %v2096, 0.0
        %v2144 = vadd.f32 %v2142, %v2143
        %v2145 = vsel %vm1517, %v2097, 0.0
        %v2146 = vadd.f32 %v2144, %v2145
        %v2147 = vsel %vm1517, %v2098, 0.0
        %v2148 = vadd.f32 %v2146, %v2147
        %v2149 = vsel %vm1517, %v2099, 0.0
        %v2150 = vadd.f32 %v2148, %v2149
        %v2151 = vsel %vm1517, %v2100, 0.0
        %v2152 = vadd.f32 %v2150, %v2151
        %v2153 = vsel %vm1517, %v2101, 0.0
        %v2154 = vadd.f32 %v2152, %v2153
        %v2155 = vsel %vm1517, %v2102, 0.0
        %v2156 = vadd.f32 %v2154, %v2155
        %v2157 = vsel %vm1517, %v2103, 0.0
        %v2158 = vadd.f32 %v2156, %v2157
        %v2159 = vsel %vm1517, %v2104, 0.0
        %v2160 = vadd.f32 %v2158, %v2159
        %v2161 = vsel %vm1517, %v2105, 0.0
        %v2162 = vadd.f32 %v2160, %v2161
        %v2163 = vsel %vm1517, %v2106, 0.0
        %v2164 = vadd.f32 %v2162, %v2163
        %v2165 = vsel %vm1517, %v2107, 0.0
        %v2166 = vadd.f32 %v2164, %v2165
        %v2167 = vsel %vm1517, %v2108, 0.0
        %v2168 = vadd.f32 %v2166, %v2167
        %v2169 = vsel %vm1517, %v2109, 0.0
        %v2170 = vadd.f32 %v2168, %v2169
        %v2171 = vsel %vm1517, %v2110, 0.0
        %v2172 = vadd.f32 %v2170, %v2171
        %v2173 = vsel %vm1517, %v2111, 0.0
        %v2174 = vadd.f32 %v2172, %v2173
        %v2175 = vrot.slane %v2174, 4
        %v2176 = vadd.f32 %v2174, %v2175
        %v2177 = vrot.slane %v2176, 2
        %v2178 = vadd.f32 %v2176, %v2177
        %v2179 = vrot.slane %v2178, 1
        %v2180 = vadd.f32 %v2178, %v2179
        %vm2181 = vcmask 122880
        %2182 = vst.msk [vmem:[%s281] sm:$0x1] %vm2181, %v2180
        %v2183 = vmul.f32 %v2080, %v2080
        %v2184 = vmul.f32 %v2081, %v2081
        %v2185 = vmul.f32 %v2082, %v2082
        %v2186 = vmul.f32 %v2083, %v2083
        %v2187 = vmul.f32 %v2084, %v2084
        %v2188 = vmul.f32 %v2085, %v2085
        %v2189 = vmul.f32 %v2086, %v2086
        %v2190 = vmul.f32 %v2087, %v2087
        %v2191 = vmul.f32 %v2088, %v2088
        %v2192 = vmul.f32 %v2089, %v2089
        %v2193 = vmul.f32 %v2090, %v2090
        %v2194 = vmul.f32 %v2091, %v2091
        %v2195 = vmul.f32 %v2092, %v2092
        %v2196 = vmul.f32 %v2093, %v2093
        %v2197 = vmul.f32 %v2094, %v2094
        %v2198 = vmul.f32 %v2095, %v2095
        %v2199 = vmul.f32 %v2096, %v2096
        %v2200 = vmul.f32 %v2097, %v2097
        %v2201 = vmul.f32 %v2098, %v2098
        %v2202 = vmul.f32 %v2099, %v2099
        %v2203 = vmul.f32 %v2100, %v2100
        %v2204 = vmul.f32 %v2101, %v2101
        %v2205 = vmul.f32 %v2102, %v2102
        %v2206 = vmul.f32 %v2103, %v2103
        %v2207 = vmul.f32 %v2104, %v2104
        %v2208 = vmul.f32 %v2105, %v2105
        %v2209 = vmul.f32 %v2106, %v2106
        %v2210 = vmul.f32 %v2107, %v2107
        %v2211 = vmul.f32 %v2108, %v2108
        %v2212 = vmul.f32 %v2109, %v2109
        %v2213 = vmul.f32 %v2110, %v2110
        %v2214 = vmul.f32 %v2111, %v2111
        %v2215 = vsel %vm1517, %v2183, 0.0
        %v2216 = vsel %vm1517, %v2184, 0.0
        %v2217 = vadd.f32 %v2215, %v2216
        %v2218 = vsel %vm1517, %v2185, 0.0
        %v2219 = vadd.f32 %v2217, %v2218
        %v2220 = vsel %vm1517, %v2186, 0.0
        %v2221 = vadd.f32 %v2219, %v2220
        %v2222 = vsel %vm1517, %v2187, 0.0
        %v2223 = vadd.f32 %v2221, %v2222
        %v2224 = vsel %vm1517, %v2188, 0.0
        %v2225 = vadd.f32 %v2223, %v2224
        %v2226 = vsel %vm1517, %v2189, 0.0
        %v2227 = vadd.f32 %v2225, %v2226
        %v2228 = vsel %vm1517, %v2190, 0.0
        %v2229 = vadd.f32 %v2227, %v2228
        %v2230 = vsel %vm1517, %v2191, 0.0
        %v2231 = vadd.f32 %v2229, %v2230
        %v2232 = vsel %vm1517, %v2192, 0.0
        %v2233 = vadd.f32 %v2231, %v2232
        %v2234 = vsel %vm1517, %v2193, 0.0
        %v2235 = vadd.f32 %v2233, %v2234
        %v2236 = vsel %vm1517, %v2194, 0.0
        %v2237 = vadd.f32 %v2235, %v2236
        %v2238 = vsel %vm1517, %v2195, 0.0
        %v2239 = vadd.f32 %v2237, %v2238
        %v2240 = vsel %vm1517, %v2196, 0.0
        %v2241 = vadd.f32 %v2239, %v2240
        %v2242 = vsel %vm1517, %v2197, 0.0
        %v2243 = vadd.f32 %v2241, %v2242
        %v2244 = vsel %vm1517, %v2198, 0.0
        %v2245 = vadd.f32 %v2243, %v2244
        %v2246 = vsel %vm1517, %v2199, 0.0
        %v2247 = vadd.f32 %v2245, %v2246
        %v2248 = vsel %vm1517, %v2200, 0.0
        %v2249 = vadd.f32 %v2247, %v2248
        %v2250 = vsel %vm1517, %v2201, 0.0
        %v2251 = vadd.f32 %v2249, %v2250
        %v2252 = vsel %vm1517, %v2202, 0.0
        %v2253 = vadd.f32 %v2251, %v2252
        %v2254 = vsel %vm1517, %v2203, 0.0
        %v2255 = vadd.f32 %v2253, %v2254
        %v2256 = vsel %vm1517, %v2204, 0.0
        %v2257 = vadd.f32 %v2255, %v2256
        %v2258 = vsel %vm1517, %v2205, 0.0
        %v2259 = vadd.f32 %v2257, %v2258
        %v2260 = vsel %vm1517, %v2206, 0.0
        %v2261 = vadd.f32 %v2259, %v2260
        %v2262 = vsel %vm1517, %v2207, 0.0
        %v2263 = vadd.f32 %v2261, %v2262
        %v2264 = vsel %vm1517, %v2208, 0.0
        %v2265 = vadd.f32 %v2263, %v2264
        %v2266 = vsel %vm1517, %v2209, 0.0
        %v2267 = vadd.f32 %v2265, %v2266
        %v2268 = vsel %vm1517, %v2210, 0.0
        %v2269 = vadd.f32 %v2267, %v2268
        %v2270 = vsel %vm1517, %v2211, 0.0
        %v2271 = vadd.f32 %v2269, %v2270
        %v2272 = vsel %vm1517, %v2212, 0.0
        %v2273 = vadd.f32 %v2271, %v2272
        %v2274 = vsel %vm1517, %v2213, 0.0
        %v2275 = vadd.f32 %v2273, %v2274
        %v2276 = vsel %vm1517, %v2214, 0.0
        %v2277 = vadd.f32 %v2275, %v2276
        %v2278 = vrot.slane %v2277, 4
        %v2279 = vadd.f32 %v2277, %v2278
        %v2280 = vrot.slane %v2279, 2
        %v2281 = vadd.f32 %v2279, %v2280
        %v2282 = vrot.slane %v2281, 1
        %v2283 = vadd.f32 %v2281, %v2282
        %2284 = vst.msk [vmem:[%s287] sm:$0x1] %vm2181, %v2283
        %v2285 = vpack.c.bf16 %v2080, %v2080
        %v2286 = vpack.c.bf16 %v2081, %v2081
        %v2287 = vpack.c.bf16 %v2082, %v2082
        %v2288 = vpack.c.bf16 %v2083, %v2083
        %v2289 = vpack.c.bf16 %v2084, %v2084
        %v2290 = vpack.c.bf16 %v2085, %v2085
        %v2291 = vpack.c.bf16 %v2086, %v2086
        %v2292 = vpack.c.bf16 %v2087, %v2087
        %v2293 = vpack.c.bf16 %v2088, %v2088
        %v2294 = vpack.c.bf16 %v2089, %v2089
        %v2295 = vpack.c.bf16 %v2090, %v2090
        %v2296 = vpack.c.bf16 %v2091, %v2091
        %v2297 = vpack.c.bf16 %v2092, %v2092
        %v2298 = vpack.c.bf16 %v2093, %v2093
        %v2299 = vpack.c.bf16 %v2094, %v2094
        %v2300 = vpack.c.bf16 %v2095, %v2095
        %v2301 = vpack.c.bf16 %v2096, %v2096
        %v2302 = vpack.c.bf16 %v2097, %v2097
        %v2303 = vpack.c.bf16 %v2098, %v2098
        %v2304 = vpack.c.bf16 %v2099, %v2099
        %v2305 = vpack.c.bf16 %v2100, %v2100
        %v2306 = vpack.c.bf16 %v2101, %v2101
        %v2307 = vpack.c.bf16 %v2102, %v2102
        %v2308 = vpack.c.bf16 %v2103, %v2103
        %v2309 = vpack.c.bf16 %v2104, %v2104
        %v2310 = vpack.c.bf16 %v2105, %v2105
        %v2311 = vpack.c.bf16 %v2106, %v2106
        %v2312 = vpack.c.bf16 %v2107, %v2107
        %v2313 = vpack.c.bf16 %v2108, %v2108
        %v2314 = vpack.c.bf16 %v2109, %v2109
        %v2315 = vpack.c.bf16 %v2110, %v2110
        %v2316 = vpack.c.bf16 %v2111, %v2111
        %vm2317 = vcmask 125952
        %2318 = vst.msk [vmem:[%s297] sm:$0xf] %vm2317, %v2285
        %2319 = vst.msk [vmem:[%s297 + $0x4] sm:$0xf] %vm2317, %v2286
        %2320 = vst.msk [vmem:[%s297 + $0x8] sm:$0xf] %vm2317, %v2287
        %2321 = vst.msk [vmem:[%s297 + $0xc] sm:$0xf] %vm2317, %v2288
        %2322 = vst.msk [vmem:[%s297 + $0x10] sm:$0xf] %vm2317, %v2289
        %2323 = vst.msk [vmem:[%s297 + $0x14] sm:$0xf] %vm2317, %v2290
        %2324 = vst.msk [vmem:[%s297 + $0x18] sm:$0xf] %vm2317, %v2291
        %2325 = vst.msk [vmem:[%s297 + $0x1c] sm:$0xf] %vm2317, %v2292
        %2326 = vst.msk [vmem:[%s297 + $0x20] sm:$0xf] %vm2317, %v2293
        %2327 = vst.msk [vmem:[%s297 + $0x24] sm:$0xf] %vm2317, %v2294
        %2328 = vst.msk [vmem:[%s297 + $0x28] sm:$0xf] %vm2317, %v2295
        %2329 = vst.msk [vmem:[%s297 + $0x2c] sm:$0xf] %vm2317, %v2296
        %2330 = vst.msk [vmem:[%s297 + $0x30] sm:$0xf] %vm2317, %v2297
        %2331 = vst.msk [vmem:[%s297 + $0x34] sm:$0xf] %vm2317, %v2298
        %2332 = vst.msk [vmem:[%s297 + $0x38] sm:$0xf] %vm2317, %v2299
        %2333 = vst.msk [vmem:[%s297 + $0x3c] sm:$0xf] %vm2317, %v2300
        %2334 = vst.msk [vmem:[%s297 + $0x40] sm:$0xf] %vm2317, %v2301
        %2335 = vst.msk [vmem:[%s297 + $0x44] sm:$0xf] %vm2317, %v2302
        %2336 = vst.msk [vmem:[%s297 + $0x48] sm:$0xf] %vm2317, %v2303
        %2337 = vst.msk [vmem:[%s297 + $0x4c] sm:$0xf] %vm2317, %v2304
        %2338 = vst.msk [vmem:[%s297 + $0x50] sm:$0xf] %vm2317, %v2305
        %2339 = vst.msk [vmem:[%s297 + $0x54] sm:$0xf] %vm2317, %v2306
        %2340 = vst.msk [vmem:[%s297 + $0x58] sm:$0xf] %vm2317, %v2307
        %2341 = vst.msk [vmem:[%s297 + $0x5c] sm:$0xf] %vm2317, %v2308
        %2342 = vst.msk [vmem:[%s297 + $0x60] sm:$0xf] %vm2317, %v2309
        %2343 = vst.msk [vmem:[%s297 + $0x64] sm:$0xf] %vm2317, %v2310
        %2344 = vst.msk [vmem:[%s297 + $0x68] sm:$0xf] %vm2317, %v2311
        %2345 = vst.msk [vmem:[%s297 + $0x6c] sm:$0xf] %vm2317, %v2312
        %2346 = vst.msk [vmem:[%s297 + $0x70] sm:$0xf] %vm2317, %v2313
        %2347 = vst.msk [vmem:[%s297 + $0x74] sm:$0xf] %vm2317, %v2314
        %2348 = vst.msk [vmem:[%s297 + $0x78] sm:$0xf] %vm2317, %v2315
        %2349 = vst.msk [vmem:[%s297 + $0x7c] sm:$0xf] %vm2317, %v2316
        %p2350 = scmp.lt.s32.totalorder %s25, 1
        %s2351 = scalar_select %p2350, %s25, 1
        %s2352 = smul.addr %s2351, 32
        %s2353 = smul.addr %s2352, 4
        %s2354 = scalar_lea.vmem %s5, %s2353
        %s2355 = sand.u32 %s169, 1
        %s2356 = scalar_lea.sflag [#allocation3], %s2355
        %s2357 = sand.u32 %s169, 1
        %s2358 = scalar_lea.vmem [#allocation2], %s2357
        %s2359 = sand.u32 %s195, 1
        %s2360 = scalar_lea.sflag [#allocation5], %s2359
        %s2361 = sand.u32 %s195, 1
        %s2362 = scalar_lea.vmem [#allocation4], %s2361
        // Predicated region
        $region41: #{decoder_forward.7} parent=39 // pred_check
          %p2363 = pneg %p153
        $region42: #{decoder_forward.7} parent=39 // pred_check_branch
          %2365 = sbr.rel (%p2363) target = $region44
        $region43: #{decoder_forward.7} parent=39 // pred_region
          _
        $region44: #{decoder_forward.7} parent=39 // pred_fallthru
          _
        // Predicated region
        $region45: #{decoder_forward.7} parent=39 // pred_check
          %p2366 = pneg %p179
        $region46: #{decoder_forward.7} parent=39 // pred_check_branch
          %2368 = sbr.rel (%p2366) target = $region48
        $region47: #{decoder_forward.7} parent=39 // pred_region
          %2370 = vsyncadd %s2356, 0
          %s2371 = scalar_lea.hbm %s6, %s25
          %s2373 = sshll.u32 %s2358, 4
          %s2374 = int_to_ptr.vmem [resolvable:$true] %s2373
          %s2375 = sshll.u32 %s2371, 4
          %s2376 = int_to_ptr.hbm [resolvable:$true] %s2375
          %2378 = dma.vmem_to_hbm [thread:$0]  %s2374, 16, %s2376, %s2356
        $region48: #{decoder_forward.7} parent=39 // pred_fallthru
          _
        // Predicated region
        $region49: #{decoder_forward.7} parent=39 // pred_check
          %p2379 = pneg %p205
        $region50: #{decoder_forward.7} parent=39 // pred_check_branch
          %2381 = sbr.rel (%p2379) target = $region52
        $region51: #{decoder_forward.7} parent=39 // pred_region
          %2383 = vsyncadd %s2360, 0
          %s2384 = scalar_lea.hbm %s7, %s25
          %s2386 = sshll.u32 %s2362, 4
          %s2387 = int_to_ptr.vmem [resolvable:$true] %s2386
          %s2388 = sshll.u32 %s2384, 4
          %s2389 = int_to_ptr.hbm [resolvable:$true] %s2388
          %2391 = dma.vmem_to_hbm [thread:$0]  %s2387, 16, %s2389, %s2360
        $region52: #{decoder_forward.7} parent=39 // pred_fallthru
          _
      $region40: #{decoder_forward.7} parent=5 // pred_fallthru
        _
      %p2392 = scmp.le.s32.totalorder 2, %s20
      // Predicated region
      $region53: #{decoder_forward.7} parent=5 // pred_check
        %p2393 = pneg %p2392
      $region54: #{decoder_forward.7} parent=5 // pred_check_branch
        %2395 = sbr.rel (%p2393) target = $region56
      $region55: #{decoder_forward.7} parent=5 // pred_region
        %s2396 = ssub.s32 %s20, 2
        // Predicated region
        $region57: #{decoder_forward.7} parent=55 // pred_check
          %p2397 = pneg %p159
        $region58: #{decoder_forward.7} parent=55 // pred_check_branch
          %2399 = sbr.rel (%p2397) target = $region60
        $region59: #{decoder_forward.7} parent=55 // pred_region
          %p2400 = scmp.lt.s32.totalorder %s26, 1
          %s2401 = scalar_select %p2400, %s26, 1
          %s2402 = smul.addr %s2401, 32
          %s2403 = smul.addr %s2402, 4
          %s2404 = scalar_lea.vmem %s5, %s2403
        $region60: #{decoder_forward.7} parent=55 // pred_fallthru
          _
        // Predicated region
        $region61: #{decoder_forward.7} parent=55 // pred_check
          %p2405 = pneg %p185
        $region62: #{decoder_forward.7} parent=55 // pred_check_branch
          %2407 = sbr.rel (%p2405) target = $region64
        $region63: #{decoder_forward.7} parent=55 // pred_region
          %s2408 = sand.u32 %s170, 1
          %s2409 = scalar_lea.sflag [#allocation3], %s2408
          %s2410 = sand.u32 %s170, 1
          %s2411 = scalar_lea.vmem [#allocation2], %s2410
          %2413 = dma.done %s2409, 16
        $region64: #{decoder_forward.7} parent=55 // pred_fallthru
          _
        // Predicated region
        $region65: #{decoder_forward.7} parent=55 // pred_check
          %p2414 = pneg %p211
        $region66: #{decoder_forward.7} parent=55 // pred_check_branch
          %2416 = sbr.rel (%p2414) target = $region68
        $region67: #{decoder_forward.7} parent=55 // pred_region
          %s2417 = sand.u32 %s196, 1
          %s2418 = scalar_lea.sflag [#allocation5], %s2417
          %s2419 = sand.u32 %s196, 1
          %s2420 = scalar_lea.vmem [#allocation4], %s2419
          %2422 = dma.done %s2418, 16
        $region68: #{decoder_forward.7} parent=55 // pred_fallthru
          _
      $region56: #{decoder_forward.7} parent=5 // pred_fallthru
        _
    $region6: #{decoder_forward.7} parent=1 // loop_footer
      %s24 = sadd.s32 1, %s20
    $region7: #{decoder_forward.7} parent=1 // loop_footer_branch
      %19 = sbr.rel target = $region3
    $region8: #{decoder_forward.7} parent=1 // loop_exit
      _
    %2423 = vsyncpa [#allocation3], 1
    %s2424 = scalar_lea.sflag [#allocation3], 1
    %2425 = vsyncpa %s2424, 1
    %2426 = vsyncpa [#allocation5], 1
    %s2427 = scalar_lea.sflag [#allocation5], 1
    %2428 = vsyncpa %s2427, 1

</llo_original>
